<compile_context>
chip_gen: v6e
topology: v6e:2x2x1
jax: 0.10.0
libtpu: 0.0.40
codegen_flags: <defaults>
</compile_context>

<pallas_src>
import functools

import jax
import jax.numpy as jnp
from jax.experimental import pallas as pl
from jax.experimental.pallas import tpu as pltpu

LANE = 128      # channel (lane) padding granularity
SUBLANE = 8
LW = 8          # left W halo offset -> interior scratch stores are sublane-aligned


def _round_up(x, m):
    return (x + m - 1) // m * m


# ----------------------------- kernel helpers ------------------------------

def _conv3x3(src_ref, w_ref, h_out, w_out, stride, *, want_center=False):
    """3x3 conv (padding already materialized in the zero-bordered bf16 scratch).

    src_ref: (H_in+2, Wp, Cin) bf16 scratch; unpadded input column j lives at
             scratch column j + LW (left halo at column LW-1).
    w_ref:   (3, 3*Cin, Cout) bf16; tap (dy, dx) at w_ref[dy, dx*Cin:(dx+1)*Cin].
    Returns (acc, center): acc is a (h_out*w_out, Cout) f32 accumulator.
    `center` (if requested) is the bf16 input at the strided output centers,
    i.e. x[stride*oy, stride*ox, :], reused by the 1x1 projection shortcut.
    """
    hp, wp, cin = src_ref.shape
    cout = w_ref.shape[-1]
    xp = src_ref[...]                                   # single full bf16 read

    # dx-merged, stride-folded im2col built ONCE per conv:
    #   xcat[h, ox, dx*Cin + c] = xp[h, stride*ox + dx + LW - 1, c]
    taps = []
    if stride == 1:
        for dx in range(3):
            base = dx + LW - 1
            taps.append(xp[:, base:base + w_out, :])
    else:
        g = xp.reshape(hp, wp // stride, stride, cin)   # split W phases once
        for dx in range(3):
            q, r = divmod(dx + LW - 1, stride)
            taps.append(g[:, q:q + w_out, r, :])
    xcat = jnp.concatenate(taps, axis=-1)               # (hp, w_out, 3*Cin) bf16

    if stride != 1:
        # Row phases split on the untiled leading axis (free re-indexing).
        g2 = xcat.reshape(hp // stride, stride, w_out, 3 * cin)

    acc = jnp.zeros((h_out * w_out, cout), jnp.float32)
    center = None
    for dy in range(3):
        if stride == 1:
            rows = xcat[dy:dy + h_out]
        else:
            q, r = divmod(dy, stride)
            rows = g2[q:q + h_out, r]                   # rows dy, dy+stride, ...
        patch = rows.reshape(h_out * w_out, 3 * cin)    # bf16, no cast needed
        if want_center and dy == 1:
            center = patch[:, cin:2 * cin]              # x at strided centers
        acc = acc + jnp.dot(patch, w_ref[dy],
                            preferred_element_type=jnp.float32)
    return acc, center


# ------------------------------- fused kernel ------------------------------

def _basic_block_kernel(x_ref, w1_ref, s1_ref, b1_ref, w2_ref, s2_ref, b2_ref,
                        *rest, stride, has_proj):
    """Whole BasicBlock for one batch element (conv-BN-ReLU-conv-BN + shortcut
    + add + ReLU), intermediate never leaves VMEM."""
    if has_proj:
        wsc_ref, ssc_ref, bsc_ref, o_ref, xpad_ref, ypad_ref = rest
    else:
        o_ref, xpad_ref, ypad_ref = rest

    _, h, w, cpi = x_ref.shape
    _, ho, wo, cpo = o_ref.shape
    cpm = ypad_ref.shape[-1]

    # --- zero only the halo border (thin stores; interior fully overwritten).
    #     Not guarded by program_id==0: with "parallel" grid sharding each core
    #     has its own scratch and may never see step 0.
    for ref, hh, ww in ((xpad_ref, h, w), (ypad_ref, ho, wo)):
        hp, wp, cc = ref.shape
        zrow = jnp.zeros((wp, cc), ref.dtype)
        ref[0] = zrow
        ref[hh + 1] = zrow
        ref[:, 0:LW, :] = jnp.zeros((hp, LW, cc), ref.dtype)
        ref[:, LW + ww:wp, :] = jnp.zeros((hp, wp - LW - ww, cc), ref.dtype)

    # --- stage input into the padded scratch (bf16, sublane-aligned interior)
    xv = x_ref[0]                                        # (h, w, cpi) bf16
    xpad_ref[1:h + 1, LW:LW + w, :] = xv

    # --- conv1 (3x3, stride) + folded BN1 + ReLU ----------------------------
    acc1, x_center = _conv3x3(xpad_ref, w1_ref, ho, wo, stride,
                              want_center=has_proj and stride != 1)
    y = jnp.maximum(acc1 * s1_ref[...] + b1_ref[...], 0.0)          # f32 math
    ypad_ref[1:ho + 1, LW:LW + wo, :] = (
        y.reshape(ho, wo, cpm).astype(ypad_ref.dtype))

    # --- conv2 (3x3, stride 1) + folded BN2 ---------------------------------
    acc2, _ = _conv3x3(ypad_ref, w2_ref, ho, wo, 1)
    res = acc2 * s2_ref[...] + b2_ref[...]                           # f32 math

    # --- shortcut (fused) + residual add + ReLU ------------------------------
    if has_proj:
        if stride == 1:
            xs = xv.reshape(ho * wo, cpi)                # (HW, cpi) bf16
        else:
            xs = x_center        # reused from conv1 im2col (dy=1, dx=1 tap)
        sc = jnp.dot(xs, wsc_ref[...], preferred_element_type=jnp.float32)
        res = res + (sc * ssc_ref[...] + bsc_ref[...])
        out = res.reshape(ho, wo, cpo)
    else:
        out = res.reshape(ho, wo, cpo) + xv.astype(jnp.float32)

    o_ref[0] = jnp.maximum(out, 0.0).astype(o_ref.dtype)


# ------------------------------- wrappers -----------------------------------

def _vmem_limit_bytes():
    """Generation-aware VMEM limit: ~3/4 of per-core physical VMEM.

    v5e/v6e (128 MiB) -> 96 MiB, v7x (64 MiB) -> 48 MiB; capped for safety.
    """
    try:
        cap = int(pltpu.get_tpu_info().vmem_capacity_bytes)
    except Exception:
        cap = 128 * 1024 * 1024
    return int(min(max(cap * 3 // 4, 32 * 1024 * 1024), 112 * 1024 * 1024))


def basic_block_forward_nhwc(x, params, stride=1, *, compute_dtype=jnp.bfloat16):
    """x: (N, H, W, C) NHWC (channel axis may already be lane-padded with zeros)
    -> (N, H//stride, W//stride, Cout_padded) NHWC in compute_dtype.

    The output keeps the channel axis padded to a multiple of 128 so consecutive
    BasicBlocks chain without slice/re-pad HBM round trips; slice to the real
    channel count only at the network boundary.
    """
    assert stride in (1, 2), "ResNet BasicBlock uses stride 1 or 2"
    n, h, w, _ = x.shape
    cin = params["w1"].shape[2]          # real input channels
    cmid = params["w1"].shape[-1]
    cout = params["w2"].shape[-1]
    assert x.shape[-1] >= cin
    assert h % stride == 0 and w % stride == 0
    ho, wo = h // stride, w // stride
    has_proj = (stride != 1) or (cin != cout)

    # Channel (lane) padding -> lane-dense, unmasked stores.
    cpi = _round_up(max(x.shape[-1], cin), LANE)
    cpm = _round_up(cmid, LANE)
    cpo = _round_up(cout, LANE)
    if not has_proj:
        assert cpi == cpo

    cdt = compute_dtype

    def padc(a, target, axis):
        extra = target - a.shape[axis]
        if extra == 0:
            return a
        cfg = [(0, 0)] * a.ndim
        cfg[axis] = (0, extra)
        return jnp.pad(a, cfg)

    xk = padc(x.astype(cdt), cpi, 3)

    # Weights: (3, 3, Ci, Co) -> (3, 3*Ci, Co) so the kernel's dx-merged
    # K index (dx*Ci + ci) matches the weight layout exactly.
    w1 = padc(padc(params["w1"], cpi, 2), cpm, 3).astype(cdt).reshape(3, 3 * cpi, cpm)
    w2 = padc(padc(params["w2"], cpm, 2), cpo, 3).astype(cdt).reshape(3, 3 * cpm, cpo)
    s1 = padc(params["scale1"], cpm, 0).reshape(1, cpm)
    b1 = padc(params["bias1"], cpm, 0).reshape(1, cpm)
    s2 = padc(params["scale2"], cpo, 0).reshape(1, cpo)
    b2 = padc(params["bias2"], cpo, 0).reshape(1, cpo)

    args = [xk, w1, s1, b1, w2, s2, b2]
    in_specs = [
        pl.BlockSpec((1, h, w, cpi), lambda i: (i, 0, 0, 0)),
        pl.BlockSpec((3, 3 * cpi, cpm), lambda i: (0, 0, 0)),
        pl.BlockSpec((1, cpm), lambda i: (0, 0)),
        pl.BlockSpec((1, cpm), lambda i: (0, 0)),
        pl.BlockSpec((3, 3 * cpm, cpo), lambda i: (0, 0, 0)),
        pl.BlockSpec((1, cpo), lambda i: (0, 0)),
        pl.BlockSpec((1, cpo), lambda i: (0, 0)),
    ]
    if has_proj:
        wsc = padc(padc(params["w_sc"], cpi, 0), cpo, 1).astype(cdt)
        ssc = padc(params["scale_sc"], cpo, 0).reshape(1, cpo)
        bsc = padc(params["bias_sc"], cpo, 0).reshape(1, cpo)
        args += [wsc, ssc, bsc]
        in_specs += [
            pl.BlockSpec((cpi, cpo), lambda i: (0, 0)),
            pl.BlockSpec((1, cpo), lambda i: (0, 0)),
            pl.BlockSpec((1, cpo), lambda i: (0, 0)),
        ]

    kernel = functools.partial(_basic_block_kernel, stride=stride,
                               has_proj=has_proj)

    # Zero-padded bf16 halo scratches; LW-column left pad keeps the big interior
    # stores sublane-aligned.  Widths rounded to a sublane multiple.
    wpx = _round_up(w + LW + 1, SUBLANE)
    wpy = _round_up(wo + LW + 1, SUBLANE)

    flops = 2 * n * ho * wo * (9 * cpi * cpm + 9 * cpm * cpo
                               + (cpi * cpo if has_proj else 0))
    bytes_accessed = sum(int(a.size) * a.dtype.itemsize for a in args)
    bytes_accessed += n * ho * wo * cpo * xk.dtype.itemsize

    out = pl.pallas_call(
        kernel,
        out_shape=jax.ShapeDtypeStruct((n, ho, wo, cpo), cdt),
        grid=(n,),
        in_specs=in_specs,
        out_specs=pl.BlockSpec((1, ho, wo, cpo), lambda i: (i, 0, 0, 0)),
        scratch_shapes=[
            pltpu.VMEM((h + 2, wpx, cpi), cdt),    # padded input (bf16)
            pltpu.VMEM((ho + 2, wpy, cpm), cdt),   # padded intermediate (bf16)
        ],
        compiler_params=pltpu.CompilerParams(
            dimension_semantics=("parallel",),
            vmem_limit_bytes=_vmem_limit_bytes()),
        cost_estimate=pl.CostEstimate(flops=int(flops), transcendentals=0,
                                      bytes_accessed=int(bytes_accessed)),
    )(*args)
    return out   # channel-padded; slice at the network boundary only


@functools.partial(jax.jit, static_argnames=("stride",))
def basic_block_forward(x_nchw, params, stride=1):
    """PyTorch-convention entry (NCHW in / NCHW out, real channel count).

    NCHW<->NHWC transposes and the channel un-padding only happen at this
    module boundary; a full network stays NHWC/padded and calls
    basic_block_forward_nhwc directly.
    """
    cout = params["w2"].shape[-1]
    x = jnp.transpose(x_nchw, (0, 2, 3, 1))
    out = basic_block_forward_nhwc(x, params, stride=stride)
    return jnp.transpose(out[..., :cout], (0, 3, 1, 2))


# --------------------------- parameter setup --------------------------------

def init_params(key, in_ch, out_ch, stride):
    keys = jax.random.split(key, 10)

    def conv_w(k, kh, kw, cin, cout):
        fan_in = kh * kw * cin
        w = jax.random.normal(k, (kh, kw, cin, cout), jnp.float32) * (2.0 / fan_in) ** 0.5
        # Round through bf16 so the bf16 kernel and the f32 reference see the
        # exact same weight values.
        return w.astype(jnp.bfloat16).astype(jnp.float32)

    def folded_bn(kg, kb, c):
        eps = 1e-5
        gamma = 1.0 + 0.1 * jax.random.normal(kg, (c,), jnp.float32)
        beta = 0.1 * jax.random.normal(kb, (c,), jnp.float32)
        running_mean = 0.05 * jnp.arange(c, dtype=jnp.float32)
        running_var = 1.0 + 0.01 * jnp.arange(c, dtype=jnp.float32)
        scale = gamma / jnp.sqrt(running_var + eps)
        bias = beta - running_mean * scale
        return scale, bias

    p = {}
    p["w1"] = conv_w(keys[0], 3, 3, in_ch, out_ch)
    p["scale1"], p["bias1"] = folded_bn(keys[1], keys[2], out_ch)
    p["w2"] = conv_w(keys[3], 3, 3, out_ch, out_ch)
    p["scale2"], p["bias2"] = folded_bn(keys[4], keys[5], out_ch)
    if stride != 1 or in_ch != out_ch:
        p["w_sc"] = conv_w(keys[6], 1, 1, in_ch, out_ch)[0, 0]   # (Cin, Cout)
        p["scale_sc"], p["bias_sc"] = folded_bn(keys[7], keys[8], out_ch)
    return p


# ------------------------------ reference -----------------------------------

def reference_forward(x_nchw, params, stride):
    """Pure-JAX f32 reference (lax.conv) for correctness checking."""
    x = jnp.transpose(x_nchw, (0, 2, 3, 1))

    def conv(v, w, s, pad):
        return jax.lax.conv_general_dilated(
            v, w, window_strides=(s, s), padding=[(pad, pad), (pad, pad)],
            dimension_numbers=("NHWC", "HWIO", "NHWC"))

    y = conv(x, params["w1"], stride, 1) * params["scale1"] + params["bias1"]
    y = jnp.maximum(y, 0.0)
    y2 = conv(y, params["w2"], 1, 1) * params["scale2"] + params["bias2"]
    if "w_sc" in params:
        sc = (conv(x, params["w_sc"][None, None], stride, 0)
              * params["scale_sc"] + params["bias_sc"])
    else:
        sc = x
    out = jnp.maximum(y2 + sc, 0.0)
    return jnp.transpose(out, (0, 3, 1, 2))


# -------------------------------- main ---------------------------------------

def _check(name, out, ref):
    assert out.shape == ref.shape, (name, out.shape, ref.shape)
    out_f32 = out.astype(jnp.float32)
    if not bool(jnp.allclose(out_f32, ref, rtol=2e-2, atol=2e-2)):
        err = float(jnp.max(jnp.abs(out_f32 - ref)))
        raise AssertionError(f"{name} mismatch (max err {err})")


if __name__ == "__main__":
    key = jax.random.PRNGKey(0)
    kx, kp1, kp2, kp3 = jax.random.split(key, 4)

    N, H, W = 2, 16, 16

    # Case 1: in != out channels, stride 1 -> fused 1x1 projection shortcut.
    in_ch, out_ch = 4, 8
    x = jax.random.normal(kx, (N, in_ch, H, W), jnp.float32)
    x = x.astype(jnp.bfloat16).astype(jnp.float32)   # bf16-representable input
    params = init_params(kp1, in_ch, out_ch, 1)
    out = jax.block_until_ready(basic_block_forward(x, params, stride=1))
    _check("projection-shortcut block", out, reference_forward(x, params, 1))

    # Case 2: in == out channels, stride 1 -> identity shortcut (fully fused).
    in_ch2 = out_ch2 = 8
    x2 = jax.random.normal(kx, (N, in_ch2, H, W), jnp.float32)
    x2 = x2.astype(jnp.bfloat16).astype(jnp.float32)
    params2 = init_params(kp2, in_ch2, out_ch2, 1)
    out2 = jax.block_until_ready(basic_block_forward(x2, params2, stride=1))
    _check("identity-shortcut block", out2, reference_forward(x2, params2, 1))

    # Case 3: stride 2 -> strided conv1 + fused strided 1x1 projection.
    params3 = init_params(kp3, in_ch, out_ch, 2)
    out3 = jax.block_until_ready(basic_block_forward(x, params3, stride=2))
    _check("stride-2 projection block", out3, reference_forward(x, params3, 2))

    print("KERNEL_OK")
</pallas_src>

<mosaic_0001>
module attributes {stable_mosaic.version = 11 : i64} {
  func.func @_basic_block_kernel(%arg0: i32, %arg1: memref<1x16x16x128xbf16, #tpu.memory_space<vmem>>, %arg2: memref<3x384x128xbf16, #tpu.memory_space<vmem>>, %arg3: memref<1x128xf32, #tpu.memory_space<vmem>>, %arg4: memref<1x128xf32, #tpu.memory_space<vmem>>, %arg5: memref<3x384x128xbf16, #tpu.memory_space<vmem>>, %arg6: memref<1x128xf32, #tpu.memory_space<vmem>>, %arg7: memref<1x128xf32, #tpu.memory_space<vmem>>, %arg8: memref<128x128xbf16, #tpu.memory_space<vmem>>, %arg9: memref<1x128xf32, #tpu.memory_space<vmem>>, %arg10: memref<1x128xf32, #tpu.memory_space<vmem>>, %arg11: memref<1x16x16x128xbf16, #tpu.memory_space<vmem>>, %arg12: memref<18x32x128xbf16, #tpu.memory_space<vmem>>, %arg13: memref<18x32x128xbf16, #tpu.memory_space<vmem>>) attributes {dimension_semantics = [#tpu.dimension_semantics<parallel>], iteration_bounds = array<i64: 2>, scalar_prefetch = 0 : i64, scratch_operands = 2 : i64, tpu.core_type = #tpu.core_type<tc>, window_params = [{transform_indices = @transform_0, window_bounds = array<i64: 1, 16, 16, 128>}, {pipeline_mode = #tpu.pipeline_mode<synchronous>, transform_indices = @transform_1, window_bounds = array<i64: 3, 384, 128>}, {pipeline_mode = #tpu.pipeline_mode<synchronous>, transform_indices = @transform_2, window_bounds = array<i64: 1, 128>}, {pipeline_mode = #tpu.pipeline_mode<synchronous>, transform_indices = @transform_3, window_bounds = array<i64: 1, 128>}, {pipeline_mode = #tpu.pipeline_mode<synchronous>, transform_indices = @transform_4, window_bounds = array<i64: 3, 384, 128>}, {pipeline_mode = #tpu.pipeline_mode<synchronous>, transform_indices = @transform_5, window_bounds = array<i64: 1, 128>}, {pipeline_mode = #tpu.pipeline_mode<synchronous>, transform_indices = @transform_6, window_bounds = array<i64: 1, 128>}, {pipeline_mode = #tpu.pipeline_mode<synchronous>, transform_indices = @transform_7, window_bounds = array<i64: 128, 128>}, {pipeline_mode = #tpu.pipeline_mode<synchronous>, transform_indices = @transform_8, window_bounds = array<i64: 1, 128>}, {pipeline_mode = #tpu.pipeline_mode<synchronous>, transform_indices = @transform_9, window_bounds = array<i64: 1, 128>}, {transform_indices = @transform_10, window_bounds = array<i64: 1, 16, 16, 128>}]} {
    %cst = arith.constant 0.000000e+00 : bf16
    %0 = vector.broadcast %cst : bf16 to vector<32x128xbf16>
    %c0 = arith.constant 0 : index
    %c0_0 = arith.constant 0 : index
    %c0_1 = arith.constant 0 : index
    %1 = vector.load %arg12[%c0, %c0_0, %c0_1] : memref<18x32x128xbf16, #tpu.memory_space<vmem>>, vector<1x32x128xbf16>
    %2 = vector.shape_cast %1 : vector<1x32x128xbf16> to vector<32x128xbf16>
    %3 = vector.shape_cast %0 : vector<32x128xbf16> to vector<1x32x128xbf16>
    tpu.vector_store %arg12[%c0, %c0_0, %c0_1], %3 {strides = array<i32>} : memref<18x32x128xbf16, #tpu.memory_space<vmem>>, vector<1x32x128xbf16>,
    %c17 = arith.constant 17 : index
    %c0_2 = arith.constant 0 : index
    %c0_3 = arith.constant 0 : index
    %4 = vector.load %arg12[%c17, %c0_2, %c0_3] : memref<18x32x128xbf16, #tpu.memory_space<vmem>>, vector<1x32x128xbf16>
    %5 = vector.shape_cast %4 : vector<1x32x128xbf16> to vector<32x128xbf16>
    %6 = vector.shape_cast %0 : vector<32x128xbf16> to vector<1x32x128xbf16>
    tpu.vector_store %arg12[%c17, %c0_2, %c0_3], %6 {strides = array<i32>} : memref<18x32x128xbf16, #tpu.memory_space<vmem>>, vector<1x32x128xbf16>,
    %cst_4 = arith.constant 0.000000e+00 : bf16
    %7 = vector.broadcast %cst_4 : bf16 to vector<18x8x128xbf16>
    %c0_5 = arith.constant 0 : index
    %c0_6 = arith.constant 0 : index
    %c0_7 = arith.constant 0 : index
    %8 = vector.load %arg12[%c0_5, %c0_6, %c0_7] : memref<18x32x128xbf16, #tpu.memory_space<vmem>>, vector<18x8x128xbf16>
    tpu.vector_store %arg12[%c0_5, %c0_6, %c0_7], %7 {strides = array<i32>} : memref<18x32x128xbf16, #tpu.memory_space<vmem>>, vector<18x8x128xbf16>,
    %cst_8 = arith.constant 0.000000e+00 : bf16
    %9 = vector.broadcast %cst_8 : bf16 to vector<18x8x128xbf16>
    %c0_9 = arith.constant 0 : index
    %c24 = arith.constant 24 : index
    %c0_10 = arith.constant 0 : index
    %10 = vector.load %arg12[%c0_9, %c24, %c0_10] : memref<18x32x128xbf16, #tpu.memory_space<vmem>>, vector<18x8x128xbf16>
    tpu.vector_store %arg12[%c0_9, %c24, %c0_10], %9 {strides = array<i32>} : memref<18x32x128xbf16, #tpu.memory_space<vmem>>, vector<18x8x128xbf16>,
    %cst_11 = arith.constant 0.000000e+00 : bf16
    %11 = vector.broadcast %cst_11 : bf16 to vector<32x128xbf16>
    %c0_12 = arith.constant 0 : index
    %c0_13 = arith.constant 0 : index
    %c0_14 = arith.constant 0 : index
    %12 = vector.load %arg13[%c0_12, %c0_13, %c0_14] : memref<18x32x128xbf16, #tpu.memory_space<vmem>>, vector<1x32x128xbf16>
    %13 = vector.shape_cast %12 : vector<1x32x128xbf16> to vector<32x128xbf16>
    %14 = vector.shape_cast %11 : vector<32x128xbf16> to vector<1x32x128xbf16>
    tpu.vector_store %arg13[%c0_12, %c0_13, %c0_14], %14 {strides = array<i32>} : memref<18x32x128xbf16, #tpu.memory_space<vmem>>, vector<1x32x128xbf16>,
    %c17_15 = arith.constant 17 : index
    %c0_16 = arith.constant 0 : index
    %c0_17 = arith.constant 0 : index
    %15 = vector.load %arg13[%c17_15, %c0_16, %c0_17] : memref<18x32x128xbf16, #tpu.memory_space<vmem>>, vector<1x32x128xbf16>
    %16 = vector.shape_cast %15 : vector<1x32x128xbf16> to vector<32x128xbf16>
    %17 = vector.shape_cast %11 : vector<32x128xbf16> to vector<1x32x128xbf16>
    tpu.vector_store %arg13[%c17_15, %c0_16, %c0_17], %17 {strides = array<i32>} : memref<18x32x128xbf16, #tpu.memory_space<vmem>>, vector<1x32x128xbf16>,
    %cst_18 = arith.constant 0.000000e+00 : bf16
    %18 = vector.broadcast %cst_18 : bf16 to vector<18x8x128xbf16>
    %c0_19 = arith.constant 0 : index
    %c0_20 = arith.constant 0 : index
    %c0_21 = arith.constant 0 : index
    %19 = vector.load %arg13[%c0_19, %c0_20, %c0_21] : memref<18x32x128xbf16, #tpu.memory_space<vmem>>, vector<18x8x128xbf16>
    tpu.vector_store %arg13[%c0_19, %c0_20, %c0_21], %18 {strides = array<i32>} : memref<18x32x128xbf16, #tpu.memory_space<vmem>>, vector<18x8x128xbf16>,
    %cst_22 = arith.constant 0.000000e+00 : bf16
    %20 = vector.broadcast %cst_22 : bf16 to vector<18x8x128xbf16>
    %c0_23 = arith.constant 0 : index
    %c24_24 = arith.constant 24 : index
    %c0_25 = arith.constant 0 : index
    %21 = vector.load %arg13[%c0_23, %c24_24, %c0_25] : memref<18x32x128xbf16, #tpu.memory_space<vmem>>, vector<18x8x128xbf16>
    tpu.vector_store %arg13[%c0_23, %c24_24, %c0_25], %20 {strides = array<i32>} : memref<18x32x128xbf16, #tpu.memory_space<vmem>>, vector<18x8x128xbf16>,
    %c0_26 = arith.constant 0 : index
    %c0_27 = arith.constant 0 : index
    %c0_28 = arith.constant 0 : index
    %c0_29 = arith.constant 0 : index
    %22 = vector.load %arg1[%c0_26, %c0_27, %c0_28, %c0_29] : memref<1x16x16x128xbf16, #tpu.memory_space<vmem>>, vector<1x16x16x128xbf16>
    %23 = vector.shape_cast %22 : vector<1x16x16x128xbf16> to vector<16x16x128xbf16>
    %c1 = arith.constant 1 : index
    %c8 = arith.constant 8 : index
    %c0_30 = arith.constant 0 : index
    %24 = vector.load %arg12[%c1, %c8, %c0_30] : memref<18x32x128xbf16, #tpu.memory_space<vmem>>, vector<16x16x128xbf16>
    tpu.vector_store %arg12[%c1, %c8, %c0_30], %23 {strides = array<i32>} : memref<18x32x128xbf16, #tpu.memory_space<vmem>>, vector<16x16x128xbf16>,
    %c0_31 = arith.constant 0 : index
    %c0_32 = arith.constant 0 : index
    %c0_33 = arith.constant 0 : index
    %25 = vector.load %arg12[%c0_31, %c0_32, %c0_33] : memref<18x32x128xbf16, #tpu.memory_space<vmem>>, vector<18x32x128xbf16>
    %26 = vector.extract_strided_slice %25 {offsets = [0, 7, 0], sizes = [18, 16, 128], strides = [1, 1, 1]} : vector<18x32x128xbf16> to vector<18x16x128xbf16>
    %27 = vector.extract_strided_slice %25 {offsets = [0, 8, 0], sizes = [18, 16, 128], strides = [1, 1, 1]} : vector<18x32x128xbf16> to vector<18x16x128xbf16>
    %28 = vector.extract_strided_slice %25 {offsets = [0, 9, 0], sizes = [18, 16, 128], strides = [1, 1, 1]} : vector<18x32x128xbf16> to vector<18x16x128xbf16>
    %29 = tpu.concatenate %26, %27, %28 in 2 : vector<18x16x128xbf16>, vector<18x16x128xbf16>, vector<18x16x128xbf16> -> vector<18x16x384xbf16>
    %cst_34 = arith.constant 0.000000e+00 : f32
    %30 = vector.broadcast %cst_34 : f32 to vector<256x128xf32>
    %31 = vector.extract_strided_slice %29 {offsets = [0, 0, 0], sizes = [16, 16, 384], strides = [1, 1, 1]} : vector<18x16x384xbf16> to vector<16x16x384xbf16>
    %32 = vector.shape_cast %31 : vector<16x16x384xbf16> to vector<256x384xbf16>
    %c0_35 = arith.constant 0 : index
    %c0_36 = arith.constant 0 : index
    %c0_37 = arith.constant 0 : index
    %33 = vector.load %arg2[%c0_35, %c0_36, %c0_37] : memref<3x384x128xbf16, #tpu.memory_space<vmem>>, vector<1x384x128xbf16>
    %34 = vector.shape_cast %33 : vector<1x384x128xbf16> to vector<384x128xbf16>
    %cst_38 = arith.constant dense<0.000000e+00> : vector<256x128xf32>
    %35 = tpu.matmul %32, %34, %cst_38 {dimension_numbers = #tpu.dot_dimension_numbers<[1], [0], [0], [1], [0, 0, 1, 1], [], []>} : vector<256x384xbf16>, vector<384x128xbf16>, vector<256x128xf32> -> vector<256x128xf32>
    %36 = arith.addf %30, %35 : vector<256x128xf32>
    %37 = vector.extract_strided_slice %29 {offsets = [1, 0, 0], sizes = [16, 16, 384], strides = [1, 1, 1]} : vector<18x16x384xbf16> to vector<16x16x384xbf16>
    %38 = vector.shape_cast %37 : vector<16x16x384xbf16> to vector<256x384xbf16>
    %c1_39 = arith.constant 1 : index
    %c0_40 = arith.constant 0 : index
    %c0_41 = arith.constant 0 : index
    %39 = vector.load %arg2[%c1_39, %c0_40, %c0_41] : memref<3x384x128xbf16, #tpu.memory_space<vmem>>, vector<1x384x128xbf16>
    %40 = vector.shape_cast %39 : vector<1x384x128xbf16> to vector<384x128xbf16>
    %cst_42 = arith.constant dense<0.000000e+00> : vector<256x128xf32>
    %41 = tpu.matmul %38, %40, %cst_42 {dimension_numbers = #tpu.dot_dimension_numbers<[1], [0], [0], [1], [0, 0, 1, 1], [], []>} : vector<256x384xbf16>, vector<384x128xbf16>, vector<256x128xf32> -> vector<256x128xf32>
    %42 = arith.addf %36, %41 : vector<256x128xf32>
    %43 = vector.extract_strided_slice %29 {offsets = [2, 0, 0], sizes = [16, 16, 384], strides = [1, 1, 1]} : vector<18x16x384xbf16> to vector<16x16x384xbf16>
    %44 = vector.shape_cast %43 : vector<16x16x384xbf16> to vector<256x384xbf16>
    %c2 = arith.constant 2 : index
    %c0_43 = arith.constant 0 : index
    %c0_44 = arith.constant 0 : index
    %45 = vector.load %arg2[%c2, %c0_43, %c0_44] : memref<3x384x128xbf16, #tpu.memory_space<vmem>>, vector<1x384x128xbf16>
    %46 = vector.shape_cast %45 : vector<1x384x128xbf16> to vector<384x128xbf16>
    %cst_45 = arith.constant dense<0.000000e+00> : vector<256x128xf32>
    %47 = tpu.matmul %44, %46, %cst_45 {dimension_numbers = #tpu.dot_dimension_numbers<[1], [0], [0], [1], [0, 0, 1, 1], [], []>} : vector<256x384xbf16>, vector<384x128xbf16>, vector<256x128xf32> -> vector<256x128xf32>
    %48 = arith.addf %42, %47 : vector<256x128xf32>
    %c0_46 = arith.constant 0 : index
    %c0_47 = arith.constant 0 : index
    %49 = vector.load %arg3[%c0_46, %c0_47] : memref<1x128xf32, #tpu.memory_space<vmem>>, vector<1x128xf32>
    %50 = vector.broadcast %49 : vector<1x128xf32> to vector<256x128xf32>
    %51 = arith.mulf %48, %50 : vector<256x128xf32>
    %c0_48 = arith.constant 0 : index
    %c0_49 = arith.constant 0 : index
    %52 = vector.load %arg4[%c0_48, %c0_49] : memref<1x128xf32, #tpu.memory_space<vmem>>, vector<1x128xf32>
    %53 = vector.broadcast %52 : vector<1x128xf32> to vector<256x128xf32>
    %54 = arith.addf %51, %53 : vector<256x128xf32>
    %cst_50 = arith.constant 0.000000e+00 : f32
    %55 = vector.broadcast %cst_50 : f32 to vector<256x128xf32>
    %56 = arith.maximumf %54, %55 : vector<256x128xf32>
    %57 = vector.shape_cast %56 : vector<256x128xf32> to vector<16x16x128xf32>
    %58 = arith.truncf %57 : vector<16x16x128xf32> to vector<16x16x128xbf16>
    %c1_51 = arith.constant 1 : index
    %c8_52 = arith.constant 8 : index
    %c0_53 = arith.constant 0 : index
    %59 = vector.load %arg13[%c1_51, %c8_52, %c0_53] : memref<18x32x128xbf16, #tpu.memory_space<vmem>>, vector<16x16x128xbf16>
    tpu.vector_store %arg13[%c1_51, %c8_52, %c0_53], %58 {strides = array<i32>} : memref<18x32x128xbf16, #tpu.memory_space<vmem>>, vector<16x16x128xbf16>,
    %c0_54 = arith.constant 0 : index
    %c0_55 = arith.constant 0 : index
    %c0_56 = arith.constant 0 : index
    %60 = vector.load %arg13[%c0_54, %c0_55, %c0_56] : memref<18x32x128xbf16, #tpu.memory_space<vmem>>, vector<18x32x128xbf16>
    %61 = vector.extract_strided_slice %60 {offsets = [0, 7, 0], sizes = [18, 16, 128], strides = [1, 1, 1]} : vector<18x32x128xbf16> to vector<18x16x128xbf16>
    %62 = vector.extract_strided_slice %60 {offsets = [0, 8, 0], sizes = [18, 16, 128], strides = [1, 1, 1]} : vector<18x32x128xbf16> to vector<18x16x128xbf16>
    %63 = vector.extract_strided_slice %60 {offsets = [0, 9, 0], sizes = [18, 16, 128], strides = [1, 1, 1]} : vector<18x32x128xbf16> to vector<18x16x128xbf16>
    %64 = tpu.concatenate %61, %62, %63 in 2 : vector<18x16x128xbf16>, vector<18x16x128xbf16>, vector<18x16x128xbf16> -> vector<18x16x384xbf16>
    %cst_57 = arith.constant 0.000000e+00 : f32
    %65 = vector.broadcast %cst_57 : f32 to vector<256x128xf32>
    %66 = vector.extract_strided_slice %64 {offsets = [0, 0, 0], sizes = [16, 16, 384], strides = [1, 1, 1]} : vector<18x16x384xbf16> to vector<16x16x384xbf16>
    %67 = vector.shape_cast %66 : vector<16x16x384xbf16> to vector<256x384xbf16>
    %c0_58 = arith.constant 0 : index
    %c0_59 = arith.constant 0 : index
    %c0_60 = arith.constant 0 : index
    %68 = vector.load %arg5[%c0_58, %c0_59, %c0_60] : memref<3x384x128xbf16, #tpu.memory_space<vmem>>, vector<1x384x128xbf16>
    %69 = vector.shape_cast %68 : vector<1x384x128xbf16> to vector<384x128xbf16>
    %cst_61 = arith.constant dense<0.000000e+00> : vector<256x128xf32>
    %70 = tpu.matmul %67, %69, %cst_61 {dimension_numbers = #tpu.dot_dimension_numbers<[1], [0], [0], [1], [0, 0, 1, 1], [], []>} : vector<256x384xbf16>, vector<384x128xbf16>, vector<256x128xf32> -> vector<256x128xf32>
    %71 = arith.addf %65, %70 : vector<256x128xf32>
    %72 = vector.extract_strided_slice %64 {offsets = [1, 0, 0], sizes = [16, 16, 384], strides = [1, 1, 1]} : vector<18x16x384xbf16> to vector<16x16x384xbf16>
    %73 = vector.shape_cast %72 : vector<16x16x384xbf16> to vector<256x384xbf16>
    %c1_62 = arith.constant 1 : index
    %c0_63 = arith.constant 0 : index
    %c0_64 = arith.constant 0 : index
    %74 = vector.load %arg5[%c1_62, %c0_63, %c0_64] : memref<3x384x128xbf16, #tpu.memory_space<vmem>>, vector<1x384x128xbf16>
    %75 = vector.shape_cast %74 : vector<1x384x128xbf16> to vector<384x128xbf16>
    %cst_65 = arith.constant dense<0.000000e+00> : vector<256x128xf32>
    %76 = tpu.matmul %73, %75, %cst_65 {dimension_numbers = #tpu.dot_dimension_numbers<[1], [0], [0], [1], [0, 0, 1, 1], [], []>} : vector<256x384xbf16>, vector<384x128xbf16>, vector<256x128xf32> -> vector<256x128xf32>
    %77 = arith.addf %71, %76 : vector<256x128xf32>
    %78 = vector.extract_strided_slice %64 {offsets = [2, 0, 0], sizes = [16, 16, 384], strides = [1, 1, 1]} : vector<18x16x384xbf16> to vector<16x16x384xbf16>
    %79 = vector.shape_cast %78 : vector<16x16x384xbf16> to vector<256x384xbf16>
    %c2_66 = arith.constant 2 : index
    %c0_67 = arith.constant 0 : index
    %c0_68 = arith.constant 0 : index
    %80 = vector.load %arg5[%c2_66, %c0_67, %c0_68] : memref<3x384x128xbf16, #tpu.memory_space<vmem>>, vector<1x384x128xbf16>
    %81 = vector.shape_cast %80 : vector<1x384x128xbf16> to vector<384x128xbf16>
    %cst_69 = arith.constant dense<0.000000e+00> : vector<256x128xf32>
    %82 = tpu.matmul %79, %81, %cst_69 {dimension_numbers = #tpu.dot_dimension_numbers<[1], [0], [0], [1], [0, 0, 1, 1], [], []>} : vector<256x384xbf16>, vector<384x128xbf16>, vector<256x128xf32> -> vector<256x128xf32>
    %83 = arith.addf %77, %82 : vector<256x128xf32>
    %c0_70 = arith.constant 0 : index
    %c0_71 = arith.constant 0 : index
    %84 = vector.load %arg6[%c0_70, %c0_71] : memref<1x128xf32, #tpu.memory_space<vmem>>, vector<1x128xf32>
    %85 = vector.broadcast %84 : vector<1x128xf32> to vector<256x128xf32>
    %86 = arith.mulf %83, %85 : vector<256x128xf32>
    %c0_72 = arith.constant 0 : index
    %c0_73 = arith.constant 0 : index
    %87 = vector.load %arg7[%c0_72, %c0_73] : memref<1x128xf32, #tpu.memory_space<vmem>>, vector<1x128xf32>
    %88 = vector.broadcast %87 : vector<1x128xf32> to vector<256x128xf32>
    %89 = arith.addf %86, %88 : vector<256x128xf32>
    %90 = vector.shape_cast %23 : vector<16x16x128xbf16> to vector<256x128xbf16>
    %c0_74 = arith.constant 0 : index
    %c0_75 = arith.constant 0 : index
    %91 = vector.load %arg8[%c0_74, %c0_75] : memref<128x128xbf16, #tpu.memory_space<vmem>>, vector<128x128xbf16>
    %cst_76 = arith.constant dense<0.000000e+00> : vector<256x128xf32>
    %92 = tpu.matmul %90, %91, %cst_76 {dimension_numbers = #tpu.dot_dimension_numbers<[1], [0], [0], [1], [0, 0, 1, 1], [], []>} : vector<256x128xbf16>, vector<128x128xbf16>, vector<256x128xf32> -> vector<256x128xf32>
    %c0_77 = arith.constant 0 : index
    %c0_78 = arith.constant 0 : index
    %93 = vector.load %arg9[%c0_77, %c0_78] : memref<1x128xf32, #tpu.memory_space<vmem>>, vector<1x128xf32>
    %94 = vector.broadcast %93 : vector<1x128xf32> to vector<256x128xf32>
    %95 = arith.mulf %92, %94 : vector<256x128xf32>
    %c0_79 = arith.constant 0 : index
    %c0_80 = arith.constant 0 : index
    %96 = vector.load %arg10[%c0_79, %c0_80] : memref<1x128xf32, #tpu.memory_space<vmem>>, vector<1x128xf32>
    %97 = vector.broadcast %96 : vector<1x128xf32> to vector<256x128xf32>
    %98 = arith.addf %95, %97 : vector<256x128xf32>
    %99 = arith.addf %89, %98 : vector<256x128xf32>
    %100 = vector.shape_cast %99 : vector<256x128xf32> to vector<16x16x128xf32>
    %cst_81 = arith.constant 0.000000e+00 : f32
    %101 = vector.broadcast %cst_81 : f32 to vector<16x16x128xf32>
    %102 = arith.maximumf %100, %101 : vector<16x16x128xf32>
    %103 = arith.truncf %102 : vector<16x16x128xf32> to vector<16x16x128xbf16>
    %c0_82 = arith.constant 0 : index
    %c0_83 = arith.constant 0 : index
    %c0_84 = arith.constant 0 : index
    %c0_85 = arith.constant 0 : index
    %104 = vector.load %arg11[%c0_82, %c0_83, %c0_84, %c0_85] : memref<1x16x16x128xbf16, #tpu.memory_space<vmem>>, vector<1x16x16x128xbf16>
    %105 = vector.shape_cast %104 : vector<1x16x16x128xbf16> to vector<16x16x128xbf16>
    %106 = vector.shape_cast %103 : vector<16x16x128xbf16> to vector<1x16x16x128xbf16>
    tpu.vector_store %arg11[%c0_82, %c0_83, %c0_84, %c0_85], %106 {strides = array<i32>} : memref<1x16x16x128xbf16, #tpu.memory_space<vmem>>, vector<1x16x16x128xbf16>,
    return
  }
  func.func @transform_0(%arg0: i32) -> (i32, i32, i32, i32) {
    %c0_i32 = arith.constant 0 : i32
    %c0_i32_0 = arith.constant 0 : i32
    %c0_i32_1 = arith.constant 0 : i32
    %c0_i32_2 = arith.constant 0 : i32
    return %arg0, %c0_i32, %c0_i32_0, %c0_i32_1 : i32, i32, i32, i32
  }
  func.func @transform_1(%arg0: i32) -> (i32, i32, i32) {
    %c0_i32 = arith.constant 0 : i32
    %c0_i32_0 = arith.constant 0 : i32
    %c0_i32_1 = arith.constant 0 : i32
    %c0_i32_2 = arith.constant 0 : i32
    return %c0_i32, %c0_i32_0, %c0_i32_1 : i32, i32, i32
  }
  func.func @transform_2(%arg0: i32) -> (i32, i32) {
    %c0_i32 = arith.constant 0 : i32
    %c0_i32_0 = arith.constant 0 : i32
    %c0_i32_1 = arith.constant 0 : i32
    return %c0_i32, %c0_i32_0 : i32, i32
  }
  func.func @transform_3(%arg0: i32) -> (i32, i32) {
    %c0_i32 = arith.constant 0 : i32
    %c0_i32_0 = arith.constant 0 : i32
    %c0_i32_1 = arith.constant 0 : i32
    return %c0_i32, %c0_i32_0 : i32, i32
  }
  func.func @transform_4(%arg0: i32) -> (i32, i32, i32) {
    %c0_i32 = arith.constant 0 : i32
    %c0_i32_0 = arith.constant 0 : i32
    %c0_i32_1 = arith.constant 0 : i32
    %c0_i32_2 = arith.constant 0 : i32
    return %c0_i32, %c0_i32_0, %c0_i32_1 : i32, i32, i32
  }
  func.func @transform_5(%arg0: i32) -> (i32, i32) {
    %c0_i32 = arith.constant 0 : i32
    %c0_i32_0 = arith.constant 0 : i32
    %c0_i32_1 = arith.constant 0 : i32
    return %c0_i32, %c0_i32_0 : i32, i32
  }
  func.func @transform_6(%arg0: i32) -> (i32, i32) {
    %c0_i32 = arith.constant 0 : i32
    %c0_i32_0 = arith.constant 0 : i32
    %c0_i32_1 = arith.constant 0 : i32
    return %c0_i32, %c0_i32_0 : i32, i32
  }
  func.func @transform_7(%arg0: i32) -> (i32, i32) {
    %c0_i32 = arith.constant 0 : i32
    %c0_i32_0 = arith.constant 0 : i32
    %c0_i32_1 = arith.constant 0 : i32
    return %c0_i32, %c0_i32_0 : i32, i32
  }
  func.func @transform_8(%arg0: i32) -> (i32, i32) {
    %c0_i32 = arith.constant 0 : i32
    %c0_i32_0 = arith.constant 0 : i32
    %c0_i32_1 = arith.constant 0 : i32
    return %c0_i32, %c0_i32_0 : i32, i32
  }
  func.func @transform_9(%arg0: i32) -> (i32, i32) {
    %c0_i32 = arith.constant 0 : i32
    %c0_i32_0 = arith.constant 0 : i32
    %c0_i32_1 = arith.constant 0 : i32
    return %c0_i32, %c0_i32_0 : i32, i32
  }
  func.func @transform_10(%arg0: i32) -> (i32, i32, i32, i32) {
    %c0_i32 = arith.constant 0 : i32
    %c0_i32_0 = arith.constant 0 : i32
    %c0_i32_1 = arith.constant 0 : i32
    %c0_i32_2 = arith.constant 0 : i32
    return %arg0, %c0_i32, %c0_i32_0, %c0_i32_1 : i32, i32, i32, i32
  }
}

</mosaic_0001>

<llo_original>
// kernel: basic_block_forward.1
$region0: #{basic_block_forward.1}
  #allocation0 [shape = 'u32[]', space=smem, size = 0x4, offset = 0x4, fixed_abs, tag = 'smem constant byte address 0x4 - core index']
  #allocation1 [shape = 'u32[144,128]{1,0:T(1,128)}', space=vmem, size = 0x12000, scoped, tag = 'internal scratch']
  #allocation2 [shape = 'bf16[18,32,128]{2,1,0:T(8,128)(2,1)}', space=vmem, size = 0x24000, scoped, tag = 'scratch operand']
  #allocation3 [shape = 'bf16[18,32,128]{2,1,0:T(8,128)(2,1)}', space=vmem, size = 0x24000, scoped, tag = 'scratch operand']
  %s0 = inlined_call_operand.vmem [shape: bf16[2,16,16,128], index: 0, kind: input, shape index: {}]
  %s1 = inlined_call_operand.vmem [shape: bf16[3,384,128], index: 1, kind: input, shape index: {}]
  %s2 = inlined_call_operand.vmem [shape: f32[1,128], index: 2, kind: input, shape index: {}]
  %s3 = inlined_call_operand.vmem [shape: f32[1,128], index: 3, kind: input, shape index: {}]
  %s4 = inlined_call_operand.vmem [shape: bf16[3,384,128], index: 4, kind: input, shape index: {}]
  %s5 = inlined_call_operand.vmem [shape: f32[1,128], index: 5, kind: input, shape index: {}]
  %s6 = inlined_call_operand.vmem [shape: f32[1,128], index: 6, kind: input, shape index: {}]
  %s7 = inlined_call_operand.vmem [shape: bf16[128,128], index: 7, kind: input, shape index: {}]
  %s8 = inlined_call_operand.vmem [shape: f32[1,128], index: 8, kind: input, shape index: {}]
  %s9 = inlined_call_operand.vmem [shape: f32[1,128], index: 9, kind: input, shape index: {}]
  %s10 = inlined_call_operand.vmem [shape: bf16[2,16,16,128], index: 10, kind: output, shape index: {}]
  %s11 = sld [smem:[#allocation0]]
  $region73: #{basic_block_forward.1} parent=0
    _
  %s13 = ssub.s32 1, %s11
  %s14 = scalar_select 0, %s13, %s11
  loop: start=0, step=1, limit=4
  $region2: #{basic_block_forward.1} parent=0 // loop_pre_header
    _
  $region3: #{basic_block_forward.1} parent=0 // loop_header
    %s16 = sphi 0, %s20
    %p17 = scmp.ge.s32.totalorder %s16, 4
    %s26 = sphi 0, %s28
    %s29 = sphi 0, %s26
    %s30 = sphi 0, %s29
    %s46 = sphi 0, %s30
    %s50 = sphi 0, %s50
    %s52 = sphi 0, %s50
    %s53 = sphi 0, %s52
    %s67 = sphi 0, %s53
    %s71 = sphi 0, %s71
    %s73 = sphi 0, %s71
    %s74 = sphi 0, %s73
    %s88 = sphi 0, %s74
    %s92 = sphi 0, %s92
    %s94 = sphi 0, %s92
    %s95 = sphi 0, %s94
    %s109 = sphi 0, %s95
    %s113 = sphi 0, %s113
    %s115 = sphi 0, %s113
    %s116 = sphi 0, %s115
    %s130 = sphi 0, %s116
    %s134 = sphi 0, %s134
    %s136 = sphi 0, %s134
    %s137 = sphi 0, %s136
    %s151 = sphi 0, %s137
    %s155 = sphi 0, %s155
    %s157 = sphi 0, %s155
    %s158 = sphi 0, %s157
    %s172 = sphi 0, %s158
    %s176 = sphi 0, %s176
    %s178 = sphi 0, %s176
    %s179 = sphi 0, %s178
    %s193 = sphi 0, %s179
    %s197 = sphi 0, %s197
    %s199 = sphi 0, %s197
    %s200 = sphi 0, %s199
    %s214 = sphi 0, %s200
    %s218 = sphi 0, %s218
    %s220 = sphi 0, %s218
    %s221 = sphi 0, %s220
    %s235 = sphi 0, %s221
    %s241 = sphi 0, %s243
    %s244 = sphi 0, %s241
    %s245 = sphi 0, %s244
    %s261 = sphi 0, %s245
  $region4: #{basic_block_forward.1} parent=0 // loop_header_branch
    %19 = sbr.rel (%p17) target = $region8
  $region5: #{basic_block_forward.1} parent=0 // loop_body
    %s21 = ssub.s32 %s16, 1
    %s22 = ssub.s32 %s16, 2
    %s23 = sadd.s32 %s16, 1
    %s24 = ssub.s32 %s16, %s23
    %p25 = scmp.eq.s32.totalorder %s24, 0
    %s27 = sadd.s32 %s26, 1
    %s28 = scalar_select %p25, %s26, %s27
    %p31 = pneg %p25
    %p32 = scmp.eq.s32.totalorder %s16, 1
    %p33 = por %p31, %p32
    %p34 = scmp.ne.s32.totalorder %s26, %s29
    %p35 = scmp.eq.s32.totalorder %s16, 0
    %p36 = por %p34, %p35
    %p37 = scmp.ne.s32.totalorder %s26, %s29
    %p38 = scmp.eq.s32.totalorder %s21, 1
    %p39 = por %p37, %p38
    %p40 = scmp.ne.s32.totalorder %s29, %s30
    %p41 = scmp.eq.s32.totalorder %s21, 0
    %p42 = por %p40, %p41
    %p43 = scmp.ne.s32.totalorder %s29, %s30
    %p44 = scmp.eq.s32.totalorder %s22, 1
    %p45 = por %p43, %p44
    %p47 = scmp.ne.s32.totalorder %s30, %s46
    %p48 = scmp.eq.s32.totalorder %s22, 0
    %p49 = por %p47, %p48
    %s51 = sadd.s32 %s50, 1
    %p54 = scmp.eq.s32.totalorder %s16, 1
    %p55 = scmp.ne.s32.totalorder %s50, %s52
    %p56 = scmp.eq.s32.totalorder %s16, 0
    %p57 = por %p55, %p56
    %p58 = scmp.ne.s32.totalorder %s50, %s52
    %p59 = scmp.eq.s32.totalorder %s21, 1
    %p60 = por %p58, %p59
    %p61 = scmp.ne.s32.totalorder %s52, %s53
    %p62 = scmp.eq.s32.totalorder %s21, 0
    %p63 = por %p61, %p62
    %p64 = scmp.ne.s32.totalorder %s52, %s53
    %p65 = scmp.eq.s32.totalorder %s22, 1
    %p66 = por %p64, %p65
    %p68 = scmp.ne.s32.totalorder %s53, %s67
    %p69 = scmp.eq.s32.totalorder %s22, 0
    %p70 = por %p68, %p69
    %s72 = sadd.s32 %s71, 1
    %p75 = scmp.eq.s32.totalorder %s16, 1
    %p76 = scmp.ne.s32.totalorder %s71, %s73
    %p77 = scmp.eq.s32.totalorder %s16, 0
    %p78 = por %p76, %p77
    %p79 = scmp.ne.s32.totalorder %s71, %s73
    %p80 = scmp.eq.s32.totalorder %s21, 1
    %p81 = por %p79, %p80
    %p82 = scmp.ne.s32.totalorder %s73, %s74
    %p83 = scmp.eq.s32.totalorder %s21, 0
    %p84 = por %p82, %p83
    %p85 = scmp.ne.s32.totalorder %s73, %s74
    %p86 = scmp.eq.s32.totalorder %s22, 1
    %p87 = por %p85, %p86
    %p89 = scmp.ne.s32.totalorder %s74, %s88
    %p90 = scmp.eq.s32.totalorder %s22, 0
    %p91 = por %p89, %p90
    %s93 = sadd.s32 %s92, 1
    %p96 = scmp.eq.s32.totalorder %s16, 1
    %p97 = scmp.ne.s32.totalorder %s92, %s94
    %p98 = scmp.eq.s32.totalorder %s16, 0
    %p99 = por %p97, %p98
    %p100 = scmp.ne.s32.totalorder %s92, %s94
    %p101 = scmp.eq.s32.totalorder %s21, 1
    %p102 = por %p100, %p101
    %p103 = scmp.ne.s32.totalorder %s94, %s95
    %p104 = scmp.eq.s32.totalorder %s21, 0
    %p105 = por %p103, %p104
    %p106 = scmp.ne.s32.totalorder %s94, %s95
    %p107 = scmp.eq.s32.totalorder %s22, 1
    %p108 = por %p106, %p107
    %p110 = scmp.ne.s32.totalorder %s95, %s109
    %p111 = scmp.eq.s32.totalorder %s22, 0
    %p112 = por %p110, %p111
    %s114 = sadd.s32 %s113, 1
    %p117 = scmp.eq.s32.totalorder %s16, 1
    %p118 = scmp.ne.s32.totalorder %s113, %s115
    %p119 = scmp.eq.s32.totalorder %s16, 0
    %p120 = por %p118, %p119
    %p121 = scmp.ne.s32.totalorder %s113, %s115
    %p122 = scmp.eq.s32.totalorder %s21, 1
    %p123 = por %p121, %p122
    %p124 = scmp.ne.s32.totalorder %s115, %s116
    %p125 = scmp.eq.s32.totalorder %s21, 0
    %p126 = por %p124, %p125
    %p127 = scmp.ne.s32.totalorder %s115, %s116
    %p128 = scmp.eq.s32.totalorder %s22, 1
    %p129 = por %p127, %p128
    %p131 = scmp.ne.s32.totalorder %s116, %s130
    %p132 = scmp.eq.s32.totalorder %s22, 0
    %p133 = por %p131, %p132
    %s135 = sadd.s32 %s134, 1
    %p138 = scmp.eq.s32.totalorder %s16, 1
    %p139 = scmp.ne.s32.totalorder %s134, %s136
    %p140 = scmp.eq.s32.totalorder %s16, 0
    %p141 = por %p139, %p140
    %p142 = scmp.ne.s32.totalorder %s134, %s136
    %p143 = scmp.eq.s32.totalorder %s21, 1
    %p144 = por %p142, %p143
    %p145 = scmp.ne.s32.totalorder %s136, %s137
    %p146 = scmp.eq.s32.totalorder %s21, 0
    %p147 = por %p145, %p146
    %p148 = scmp.ne.s32.totalorder %s136, %s137
    %p149 = scmp.eq.s32.totalorder %s22, 1
    %p150 = por %p148, %p149
    %p152 = scmp.ne.s32.totalorder %s137, %s151
    %p153 = scmp.eq.s32.totalorder %s22, 0
    %p154 = por %p152, %p153
    %s156 = sadd.s32 %s155, 1
    %p159 = scmp.eq.s32.totalorder %s16, 1
    %p160 = scmp.ne.s32.totalorder %s155, %s157
    %p161 = scmp.eq.s32.totalorder %s16, 0
    %p162 = por %p160, %p161
    %p163 = scmp.ne.s32.totalorder %s155, %s157
    %p164 = scmp.eq.s32.totalorder %s21, 1
    %p165 = por %p163, %p164
    %p166 = scmp.ne.s32.totalorder %s157, %s158
    %p167 = scmp.eq.s32.totalorder %s21, 0
    %p168 = por %p166, %p167
    %p169 = scmp.ne.s32.totalorder %s157, %s158
    %p170 = scmp.eq.s32.totalorder %s22, 1
    %p171 = por %p169, %p170
    %p173 = scmp.ne.s32.totalorder %s158, %s172
    %p174 = scmp.eq.s32.totalorder %s22, 0
    %p175 = por %p173, %p174
    %s177 = sadd.s32 %s176, 1
    %p180 = scmp.eq.s32.totalorder %s16, 1
    %p181 = scmp.ne.s32.totalorder %s176, %s178
    %p182 = scmp.eq.s32.totalorder %s16, 0
    %p183 = por %p181, %p182
    %p184 = scmp.ne.s32.totalorder %s176, %s178
    %p185 = scmp.eq.s32.totalorder %s21, 1
    %p186 = por %p184, %p185
    %p187 = scmp.ne.s32.totalorder %s178, %s179
    %p188 = scmp.eq.s32.totalorder %s21, 0
    %p189 = por %p187, %p188
    %p190 = scmp.ne.s32.totalorder %s178, %s179
    %p191 = scmp.eq.s32.totalorder %s22, 1
    %p192 = por %p190, %p191
    %p194 = scmp.ne.s32.totalorder %s179, %s193
    %p195 = scmp.eq.s32.totalorder %s22, 0
    %p196 = por %p194, %p195
    %s198 = sadd.s32 %s197, 1
    %p201 = scmp.eq.s32.totalorder %s16, 1
    %p202 = scmp.ne.s32.totalorder %s197, %s199
    %p203 = scmp.eq.s32.totalorder %s16, 0
    %p204 = por %p202, %p203
    %p205 = scmp.ne.s32.totalorder %s197, %s199
    %p206 = scmp.eq.s32.totalorder %s21, 1
    %p207 = por %p205, %p206
    %p208 = scmp.ne.s32.totalorder %s199, %s200
    %p209 = scmp.eq.s32.totalorder %s21, 0
    %p210 = por %p208, %p209
    %p211 = scmp.ne.s32.totalorder %s199, %s200
    %p212 = scmp.eq.s32.totalorder %s22, 1
    %p213 = por %p211, %p212
    %p215 = scmp.ne.s32.totalorder %s200, %s214
    %p216 = scmp.eq.s32.totalorder %s22, 0
    %p217 = por %p215, %p216
    %s219 = sadd.s32 %s218, 1
    %p222 = scmp.eq.s32.totalorder %s16, 1
    %p223 = scmp.ne.s32.totalorder %s218, %s220
    %p224 = scmp.eq.s32.totalorder %s16, 0
    %p225 = por %p223, %p224
    %p226 = scmp.ne.s32.totalorder %s218, %s220
    %p227 = scmp.eq.s32.totalorder %s21, 1
    %p228 = por %p226, %p227
    %p229 = scmp.ne.s32.totalorder %s220, %s221
    %p230 = scmp.eq.s32.totalorder %s21, 0
    %p231 = por %p229, %p230
    %p232 = scmp.ne.s32.totalorder %s220, %s221
    %p233 = scmp.eq.s32.totalorder %s22, 1
    %p234 = por %p232, %p233
    %p236 = scmp.ne.s32.totalorder %s221, %s235
    %p237 = scmp.eq.s32.totalorder %s22, 0
    %p238 = por %p236, %p237
    %s239 = ssub.s32 %s16, %s23
    %p240 = scmp.eq.s32.totalorder %s239, 0
    %s242 = sadd.s32 %s241, 1
    %s243 = scalar_select %p240, %s241, %s242
    %p246 = pneg %p240
    %p247 = scmp.eq.s32.totalorder %s16, 1
    %p248 = por %p246, %p247
    %p249 = scmp.ne.s32.totalorder %s241, %s244
    %p250 = scmp.eq.s32.totalorder %s16, 0
    %p251 = por %p249, %p250
    %p252 = scmp.ne.s32.totalorder %s241, %s244
    %p253 = scmp.eq.s32.totalorder %s21, 1
    %p254 = por %p252, %p253
    %p255 = scmp.ne.s32.totalorder %s244, %s245
    %p256 = scmp.eq.s32.totalorder %s21, 0
    %p257 = por %p255, %p256
    %p258 = scmp.ne.s32.totalorder %s244, %s245
    %p259 = scmp.eq.s32.totalorder %s22, 1
    %p260 = por %p258, %p259
    %p262 = scmp.ne.s32.totalorder %s245, %s261
    %p263 = scmp.eq.s32.totalorder %s22, 0
    %p264 = por %p262, %p263
    %p265 = scmp.le.s32.totalorder 1, %s16
    %p266 = scmp.lt.s32.totalorder %s16, 3
    %p267 = pnand %p265, %p266
    %p268 = pneg %p267
    // Predicated region
    $region9: #{basic_block_forward.1} parent=5 // pred_check
      _
    $region10: #{basic_block_forward.1} parent=5 // pred_check_branch
      %270 = sbr.rel (%p267) target = $region12
    $region11: #{basic_block_forward.1} parent=5 // pred_region
      %s271 = ssub.s32 %s16, 1
      // Predicated region
      $region13: #{basic_block_forward.1} parent=11 // pred_check
        %p272 = pneg %p63
      $region14: #{basic_block_forward.1} parent=11 // pred_check_branch
        %274 = sbr.rel (%p272) target = $region16
      $region15: #{basic_block_forward.1} parent=11 // pred_region
        _
      $region16: #{basic_block_forward.1} parent=11 // pred_fallthru
        _
      // Predicated region
      $region17: #{basic_block_forward.1} parent=11 // pred_check
        %p275 = pneg %p84
      $region18: #{basic_block_forward.1} parent=11 // pred_check_branch
        %277 = sbr.rel (%p275) target = $region20
      $region19: #{basic_block_forward.1} parent=11 // pred_region
        _
      $region20: #{basic_block_forward.1} parent=11 // pred_fallthru
        _
      // Predicated region
      $region21: #{basic_block_forward.1} parent=11 // pred_check
        %p278 = pneg %p105
      $region22: #{basic_block_forward.1} parent=11 // pred_check_branch
        %280 = sbr.rel (%p278) target = $region24
      $region23: #{basic_block_forward.1} parent=11 // pred_region
        _
      $region24: #{basic_block_forward.1} parent=11 // pred_fallthru
        _
      // Predicated region
      $region25: #{basic_block_forward.1} parent=11 // pred_check
        %p281 = pneg %p126
      $region26: #{basic_block_forward.1} parent=11 // pred_check_branch
        %283 = sbr.rel (%p281) target = $region28
      $region27: #{basic_block_forward.1} parent=11 // pred_region
        _
      $region28: #{basic_block_forward.1} parent=11 // pred_fallthru
        _
      // Predicated region
      $region29: #{basic_block_forward.1} parent=11 // pred_check
        %p284 = pneg %p147
      $region30: #{basic_block_forward.1} parent=11 // pred_check_branch
        %286 = sbr.rel (%p284) target = $region32
      $region31: #{basic_block_forward.1} parent=11 // pred_region
        _
      $region32: #{basic_block_forward.1} parent=11 // pred_fallthru
        _
      // Predicated region
      $region33: #{basic_block_forward.1} parent=11 // pred_check
        %p287 = pneg %p168
      $region34: #{basic_block_forward.1} parent=11 // pred_check_branch
        %289 = sbr.rel (%p287) target = $region36
      $region35: #{basic_block_forward.1} parent=11 // pred_region
        _
      $region36: #{basic_block_forward.1} parent=11 // pred_fallthru
        _
      // Predicated region
      $region37: #{basic_block_forward.1} parent=11 // pred_check
        %p290 = pneg %p189
      $region38: #{basic_block_forward.1} parent=11 // pred_check_branch
        %292 = sbr.rel (%p290) target = $region40
      $region39: #{basic_block_forward.1} parent=11 // pred_region
        _
      $region40: #{basic_block_forward.1} parent=11 // pred_fallthru
        _
      // Predicated region
      $region41: #{basic_block_forward.1} parent=11 // pred_check
        %p293 = pneg %p210
      $region42: #{basic_block_forward.1} parent=11 // pred_check_branch
        %295 = sbr.rel (%p293) target = $region44
      $region43: #{basic_block_forward.1} parent=11 // pred_region
        _
      $region44: #{basic_block_forward.1} parent=11 // pred_fallthru
        _
      // Predicated region
      $region45: #{basic_block_forward.1} parent=11 // pred_check
        %p296 = pneg %p231
      $region46: #{basic_block_forward.1} parent=11 // pred_check_branch
        %298 = sbr.rel (%p296) target = $region48
      $region47: #{basic_block_forward.1} parent=11 // pred_region
        _
      $region48: #{basic_block_forward.1} parent=11 // pred_fallthru
        _
    $region12: #{basic_block_forward.1} parent=5 // pred_fallthru
      _
    %p299 = scmp.lt.s32.totalorder %s16, 2
    // Predicated region
    $region49: #{basic_block_forward.1} parent=5 // pred_check
      %p300 = pneg %p299
    $region50: #{basic_block_forward.1} parent=5 // pred_check_branch
      %302 = sbr.rel (%p300) target = $region52
    $region51: #{basic_block_forward.1} parent=5 // pred_region
      // Predicated region
      $region53: #{basic_block_forward.1} parent=51 // pred_check
        %p303 = pneg %p36
      $region54: #{basic_block_forward.1} parent=51 // pred_check_branch
        %305 = sbr.rel (%p303) target = $region56
      $region55: #{basic_block_forward.1} parent=51 // pred_region
        %p306 = scmp.lt.s32.totalorder %s16, 1
        %s307 = scalar_select %p306, %s16, 1
        %s308 = smul.addr %s307, 32
        %s309 = smul.addr %s308, 4
        %s310 = scalar_lea.vmem %s0, %s309
      $region56: #{basic_block_forward.1} parent=51 // pred_fallthru
        _
    $region52: #{basic_block_forward.1} parent=5 // pred_fallthru
      _
    %p311 = scmp.le.s32.totalorder 1, %s16
    %p312 = scmp.lt.s32.totalorder %s16, 3
    %p313 = pnand %p311, %p312
    %p314 = pneg %p313
    // Predicated region
    $region57: #{basic_block_forward.1} parent=5 // pred_check
      _
    $region58: #{basic_block_forward.1} parent=5 // pred_check_branch
      %316 = sbr.rel (%p313) target = $region60
    $region59: #{basic_block_forward.1} parent=5 // pred_region
      %s317 = ssub.s32 %s16, 1
      %p318 = scmp.lt.s32.totalorder %s21, 1
      %s319 = scalar_select %p318, %s21, 1
      %s320 = smul.addr %s319, 32
      %s321 = smul.addr %s320, 4
      %s322 = scalar_lea.vmem %s0, %s321
      %p323 = pneg %p42
      %p324 = pneg %p39
      %p325 = pneg %p63
      %p326 = pneg %p60
      %p327 = pneg %p84
      %p328 = pneg %p81
      %p329 = pneg %p105
      %p330 = pneg %p102
      %p331 = pneg %p126
      %p332 = pneg %p123
      %p333 = pneg %p147
      %p334 = pneg %p144
      %p335 = pneg %p168
      %p336 = pneg %p165
      %p337 = pneg %p189
      %p338 = pneg %p186
      %p339 = pneg %p210
      %p340 = pneg %p207
      %p341 = pneg %p231
      %p342 = pneg %p228
      %p343 = pneg %p257
      %p344 = pneg %p254
      %p345 = scmp.lt.s32.totalorder %s21, 1
      %s346 = scalar_select %p345, %s21, 1
      %s347 = smul.addr %s346, 32
      %s348 = smul.addr %s347, 4
      %s349 = scalar_lea.vmem %s10, %s348
      %p350 = scmp.lt.s32.totalorder %s21, 1
      %s351 = scalar_select %p350, %s21, 1
      %s352 = smul.addr %s351, 32
      %s353 = smul.addr %s352, 4
      %s354 = scalar_lea.vmem %s0, %s353
      %p355 = scmp.lt.s32.totalorder %s21, 1
      %s356 = scalar_select %p355, %s21, 1
      %s357 = smul.addr %s356, 32
      %s358 = smul.addr %s357, 4
      %s359 = scalar_lea.vmem %s10, %s358
      %361 = vst [vmem:[#allocation2] sm:$0xf] 0
      %362 = vst [vmem:[#allocation2 + $0x4] sm:$0xf] 0
      %363 = vst [vmem:[#allocation2 + $0x8] sm:$0xf] 0
      %364 = vst [vmem:[#allocation2 + $0xc] sm:$0xf] 0
      %s365 = scalar_lea.vmem [#allocation2], 272
      %366 = vst [vmem:[%s365] sm:$0xf] 0
      %367 = vst [vmem:[%s365 + $0x4] sm:$0xf] 0
      %368 = vst [vmem:[%s365 + $0x8] sm:$0xf] 0
      %369 = vst [vmem:[%s365 + $0xc] sm:$0xf] 0
      %370 = vst [vmem:[#allocation2] sm:$0xf] 0
      %371 = vst [vmem:[#allocation2 + $0x10] sm:$0xf] 0
      %372 = vst [vmem:[#allocation2 + $0x20] sm:$0xf] 0
      %373 = vst [vmem:[#allocation2 + $0x30] sm:$0xf] 0
      %374 = vst [vmem:[#allocation2 + $0x40] sm:$0xf] 0
      %375 = vst [vmem:[#allocation2 + $0x50] sm:$0xf] 0
      %376 = vst [vmem:[#allocation2 + $0x60] sm:$0xf] 0
      %377 = vst [vmem:[#allocation2 + $0x70] sm:$0xf] 0
      %378 = vst [vmem:[#allocation2 + $0x80] sm:$0xf] 0
      %379 = vst [vmem:[#allocation2 + $0x90] sm:$0xf] 0
      %380 = vst [vmem:[#allocation2 + $0xa0] sm:$0xf] 0
      %381 = vst [vmem:[#allocation2 + $0xb0] sm:$0xf] 0
      %382 = vst [vmem:[#allocation2 + $0xc0] sm:$0xf] 0
      %383 = vst [vmem:[#allocation2 + $0xd0] sm:$0xf] 0
      %384 = vst [vmem:[#allocation2 + $0xe0] sm:$0xf] 0
      %385 = vst [vmem:[#allocation2 + $0xf0] sm:$0xf] 0
      %386 = vst [vmem:[#allocation2 + $0x100] sm:$0xf] 0
      %387 = vst [vmem:[#allocation2 + $0x110] sm:$0xf] 0
      %388 = vst [vmem:[#allocation2 + $0xc] sm:$0xf] 0
      %389 = vst [vmem:[#allocation2 + $0x1c] sm:$0xf] 0
      %390 = vst [vmem:[#allocation2 + $0x2c] sm:$0xf] 0
      %391 = vst [vmem:[#allocation2 + $0x3c] sm:$0xf] 0
      %392 = vst [vmem:[#allocation2 + $0x4c] sm:$0xf] 0
      %393 = vst [vmem:[#allocation2 + $0x5c] sm:$0xf] 0
      %394 = vst [vmem:[#allocation2 + $0x6c] sm:$0xf] 0
      %395 = vst [vmem:[#allocation2 + $0x7c] sm:$0xf] 0
      %396 = vst [vmem:[#allocation2 + $0x8c] sm:$0xf] 0
      %397 = vst [vmem:[#allocation2 + $0x9c] sm:$0xf] 0
      %398 = vst [vmem:[#allocation2 + $0xac] sm:$0xf] 0
      %399 = vst [vmem:[#allocation2 + $0xbc] sm:$0xf] 0
      %400 = vst [vmem:[#allocation2 + $0xcc] sm:$0xf] 0
      %401 = vst [vmem:[#allocation2 + $0xdc] sm:$0xf] 0
      %402 = vst [vmem:[#allocation2 + $0xec] sm:$0xf] 0
      %403 = vst [vmem:[#allocation2 + $0xfc] sm:$0xf] 0
      %404 = vst [vmem:[#allocation2 + $0x10c] sm:$0xf] 0
      %405 = vst [vmem:[#allocation2 + $0x11c] sm:$0xf] 0
      %406 = vst [vmem:[#allocation3] sm:$0xf] 0
      %407 = vst [vmem:[#allocation3 + $0x4] sm:$0xf] 0
      %408 = vst [vmem:[#allocation3 + $0x8] sm:$0xf] 0
      %409 = vst [vmem:[#allocation3 + $0xc] sm:$0xf] 0
      %s410 = scalar_lea.vmem [#allocation3], 272
      %411 = vst [vmem:[%s410] sm:$0xf] 0
      %412 = vst [vmem:[%s410 + $0x4] sm:$0xf] 0
      %413 = vst [vmem:[%s410 + $0x8] sm:$0xf] 0
      %414 = vst [vmem:[%s410 + $0xc] sm:$0xf] 0
      %415 = vst [vmem:[#allocation3] sm:$0xf] 0
      %416 = vst [vmem:[#allocation3 + $0x10] sm:$0xf] 0
      %417 = vst [vmem:[#allocation3 + $0x20] sm:$0xf] 0
      %418 = vst [vmem:[#allocation3 + $0x30] sm:$0xf] 0
      %419 = vst [vmem:[#allocation3 + $0x40] sm:$0xf] 0
      %420 = vst [vmem:[#allocation3 + $0x50] sm:$0xf] 0
      %421 = vst [vmem:[#allocation3 + $0x60] sm:$0xf] 0
      %422 = vst [vmem:[#allocation3 + $0x70] sm:$0xf] 0
      %423 = vst [vmem:[#allocation3 + $0x80] sm:$0xf] 0
      %424 = vst [vmem:[#allocation3 + $0x90] sm:$0xf] 0
      %425 = vst [vmem:[#allocation3 + $0xa0] sm:$0xf] 0
      %426 = vst [vmem:[#allocation3 + $0xb0] sm:$0xf] 0
      %427 = vst [vmem:[#allocation3 + $0xc0] sm:$0xf] 0
      %428 = vst [vmem:[#allocation3 + $0xd0] sm:$0xf] 0
      %429 = vst [vmem:[#allocation3 + $0xe0] sm:$0xf] 0
      %430 = vst [vmem:[#allocation3 + $0xf0] sm:$0xf] 0
      %431 = vst [vmem:[#allocation3 + $0x100] sm:$0xf] 0
      %432 = vst [vmem:[#allocation3 + $0x110] sm:$0xf] 0
      %433 = vst [vmem:[#allocation3 + $0xc] sm:$0xf] 0
      %434 = vst [vmem:[#allocation3 + $0x1c] sm:$0xf] 0
      %435 = vst [vmem:[#allocation3 + $0x2c] sm:$0xf] 0
      %436 = vst [vmem:[#allocation3 + $0x3c] sm:$0xf] 0
      %437 = vst [vmem:[#allocation3 + $0x4c] sm:$0xf] 0
      %438 = vst [vmem:[#allocation3 + $0x5c] sm:$0xf] 0
      %439 = vst [vmem:[#allocation3 + $0x6c] sm:$0xf] 0
      %440 = vst [vmem:[#allocation3 + $0x7c] sm:$0xf] 0
      %441 = vst [vmem:[#allocation3 + $0x8c] sm:$0xf] 0
      %442 = vst [vmem:[#allocation3 + $0x9c] sm:$0xf] 0
      %443 = vst [vmem:[#allocation3 + $0xac] sm:$0xf] 0
      %444 = vst [vmem:[#allocation3 + $0xbc] sm:$0xf] 0
      %445 = vst [vmem:[#allocation3 + $0xcc] sm:$0xf] 0
      %446 = vst [vmem:[#allocation3 + $0xdc] sm:$0xf] 0
      %447 = vst [vmem:[#allocation3 + $0xec] sm:$0xf] 0
      %448 = vst [vmem:[#allocation3 + $0xfc] sm:$0xf] 0
      %449 = vst [vmem:[#allocation3 + $0x10c] sm:$0xf] 0
      %450 = vst [vmem:[#allocation3 + $0x11c] sm:$0xf] 0
      %v451 = vld [vmem:[%s354] sm:$0xf]
      %v452 = vld [vmem:[%s354 + $0x4] sm:$0xf]
      %v453 = vld [vmem:[%s354 + $0x8] sm:$0xf]
      %v454 = vld [vmem:[%s354 + $0xc] sm:$0xf]
      %v455 = vld [vmem:[%s354 + $0x10] sm:$0xf]
      %v456 = vld [vmem:[%s354 + $0x14] sm:$0xf]
      %v457 = vld [vmem:[%s354 + $0x18] sm:$0xf]
      %v458 = vld [vmem:[%s354 + $0x1c] sm:$0xf]
      %v459 = vld [vmem:[%s354 + $0x20] sm:$0xf]
      %v460 = vld [vmem:[%s354 + $0x24] sm:$0xf]
      %v461 = vld [vmem:[%s354 + $0x28] sm:$0xf]
      %v462 = vld [vmem:[%s354 + $0x2c] sm:$0xf]
      %v463 = vld [vmem:[%s354 + $0x30] sm:$0xf]
      %v464 = vld [vmem:[%s354 + $0x34] sm:$0xf]
      %v465 = vld [vmem:[%s354 + $0x38] sm:$0xf]
      %v466 = vld [vmem:[%s354 + $0x3c] sm:$0xf]
      %v467 = vld [vmem:[%s354 + $0x40] sm:$0xf]
      %v468 = vld [vmem:[%s354 + $0x44] sm:$0xf]
      %v469 = vld [vmem:[%s354 + $0x48] sm:$0xf]
      %v470 = vld [vmem:[%s354 + $0x4c] sm:$0xf]
      %v471 = vld [vmem:[%s354 + $0x50] sm:$0xf]
      %v472 = vld [vmem:[%s354 + $0x54] sm:$0xf]
      %v473 = vld [vmem:[%s354 + $0x58] sm:$0xf]
      %v474 = vld [vmem:[%s354 + $0x5c] sm:$0xf]
      %v475 = vld [vmem:[%s354 + $0x60] sm:$0xf]
      %v476 = vld [vmem:[%s354 + $0x64] sm:$0xf]
      %v477 = vld [vmem:[%s354 + $0x68] sm:$0xf]
      %v478 = vld [vmem:[%s354 + $0x6c] sm:$0xf]
      %v479 = vld [vmem:[%s354 + $0x70] sm:$0xf]
      %v480 = vld [vmem:[%s354 + $0x74] sm:$0xf]
      %v481 = vld [vmem:[%s354 + $0x78] sm:$0xf]
      %v482 = vld [vmem:[%s354 + $0x7c] sm:$0xf]
      %s483 = scalar_lea.vmem [#allocation2], 16
      %484 = vst [vmem:[%s483 + $0x4] sm:$0xf] %v451
      %485 = vst [vmem:[%s483 + $0x8] sm:$0xf] %v452
      %486 = vst [vmem:[%s483 + $0x14] sm:$0xf] %v453
      %487 = vst [vmem:[%s483 + $0x18] sm:$0xf] %v454
      %488 = vst [vmem:[%s483 + $0x24] sm:$0xf] %v455
      %489 = vst [vmem:[%s483 + $0x28] sm:$0xf] %v456
      %490 = vst [vmem:[%s483 + $0x34] sm:$0xf] %v457
      %491 = vst [vmem:[%s483 + $0x38] sm:$0xf] %v458
      %492 = vst [vmem:[%s483 + $0x44] sm:$0xf] %v459
      %493 = vst [vmem:[%s483 + $0x48] sm:$0xf] %v460
      %494 = vst [vmem:[%s483 + $0x54] sm:$0xf] %v461
      %495 = vst [vmem:[%s483 + $0x58] sm:$0xf] %v462
      %496 = vst [vmem:[%s483 + $0x64] sm:$0xf] %v463
      %497 = vst [vmem:[%s483 + $0x68] sm:$0xf] %v464
      %498 = vst [vmem:[%s483 + $0x74] sm:$0xf] %v465
      %499 = vst [vmem:[%s483 + $0x78] sm:$0xf] %v466
      %500 = vst [vmem:[%s483 + $0x84] sm:$0xf] %v467
      %501 = vst [vmem:[%s483 + $0x88] sm:$0xf] %v468
      %502 = vst [vmem:[%s483 + $0x94] sm:$0xf] %v469
      %503 = vst [vmem:[%s483 + $0x98] sm:$0xf] %v470
      %504 = vst [vmem:[%s483 + $0xa4] sm:$0xf] %v471
      %505 = vst [vmem:[%s483 + $0xa8] sm:$0xf] %v472
      %506 = vst [vmem:[%s483 + $0xb4] sm:$0xf] %v473
      %507 = vst [vmem:[%s483 + $0xb8] sm:$0xf] %v474
      %508 = vst [vmem:[%s483 + $0xc4] sm:$0xf] %v475
      %509 = vst [vmem:[%s483 + $0xc8] sm:$0xf] %v476
      %510 = vst [vmem:[%s483 + $0xd4] sm:$0xf] %v477
      %511 = vst [vmem:[%s483 + $0xd8] sm:$0xf] %v478
      %512 = vst [vmem:[%s483 + $0xe4] sm:$0xf] %v479
      %513 = vst [vmem:[%s483 + $0xe8] sm:$0xf] %v480
      %514 = vst [vmem:[%s483 + $0xf4] sm:$0xf] %v481
      %515 = vst [vmem:[%s483 + $0xf8] sm:$0xf] %v482
      %v516 = vld [vmem:[#allocation2] sm:$0xf]
      %v517 = vld [vmem:[#allocation2 + $0x4] sm:$0xf]
      %v518 = vld [vmem:[#allocation2 + $0x8] sm:$0xf]
      %v519 = vld [vmem:[#allocation2 + $0xc] sm:$0xf]
      %v520 = vld [vmem:[#allocation2 + $0x10] sm:$0xf]
      %v521 = vld [vmem:[#allocation2 + $0x14] sm:$0xf]
      %v522 = vld [vmem:[#allocation2 + $0x18] sm:$0xf]
      %v523 = vld [vmem:[#allocation2 + $0x1c] sm:$0xf]
      %v524 = vld [vmem:[#allocation2 + $0x20] sm:$0xf]
      %v525 = vld [vmem:[#allocation2 + $0x24] sm:$0xf]
      %v526 = vld [vmem:[#allocation2 + $0x28] sm:$0xf]
      %v527 = vld [vmem:[#allocation2 + $0x2c] sm:$0xf]
      %v528 = vld [vmem:[#allocation2 + $0x30] sm:$0xf]
      %v529 = vld [vmem:[#allocation2 + $0x34] sm:$0xf]
      %v530 = vld [vmem:[#allocation2 + $0x38] sm:$0xf]
      %v531 = vld [vmem:[#allocation2 + $0x3c] sm:$0xf]
      %v532 = vld [vmem:[#allocation2 + $0x40] sm:$0xf]
      %v533 = vld [vmem:[#allocation2 + $0x44] sm:$0xf]
      %v534 = vld [vmem:[#allocation2 + $0x48] sm:$0xf]
      %v535 = vld [vmem:[#allocation2 + $0x4c] sm:$0xf]
      %v536 = vld [vmem:[#allocation2 + $0x50] sm:$0xf]
      %v537 = vld [vmem:[#allocation2 + $0x54] sm:$0xf]
      %v538 = vld [vmem:[#allocation2 + $0x58] sm:$0xf]
      %v539 = vld [vmem:[#allocation2 + $0x5c] sm:$0xf]
      %v540 = vld [vmem:[#allocation2 + $0x60] sm:$0xf]
      %v541 = vld [vmem:[#allocation2 + $0x64] sm:$0xf]
      %v542 = vld [vmem:[#allocation2 + $0x68] sm:$0xf]
      %v543 = vld [vmem:[#allocation2 + $0x6c] sm:$0xf]
      %v544 = vld [vmem:[#allocation2 + $0x70] sm:$0xf]
      %v545 = vld [vmem:[#allocation2 + $0x74] sm:$0xf]
      %v546 = vld [vmem:[#allocation2 + $0x78] sm:$0xf]
      %v547 = vld [vmem:[#allocation2 + $0x7c] sm:$0xf]
      %v548 = vld [vmem:[#allocation2 + $0x80] sm:$0xf]
      %v549 = vld [vmem:[#allocation2 + $0x84] sm:$0xf]
      %v550 = vld [vmem:[#allocation2 + $0x88] sm:$0xf]
      %v551 = vld [vmem:[#allocation2 + $0x8c] sm:$0xf]
      %v552 = vld [vmem:[#allocation2 + $0x90] sm:$0xf]
      %v553 = vld [vmem:[#allocation2 + $0x94] sm:$0xf]
      %v554 = vld [vmem:[#allocation2 + $0x98] sm:$0xf]
      %v555 = vld [vmem:[#allocation2 + $0x9c] sm:$0xf]
      %v556 = vld [vmem:[#allocation2 + $0xa0] sm:$0xf]
      %v557 = vld [vmem:[#allocation2 + $0xa4] sm:$0xf]
      %v558 = vld [vmem:[#allocation2 + $0xa8] sm:$0xf]
      %v559 = vld [vmem:[#allocation2 + $0xac] sm:$0xf]
      %v560 = vld [vmem:[#allocation2 + $0xb0] sm:$0xf]
      %v561 = vld [vmem:[#allocation2 + $0xb4] sm:$0xf]
      %v562 = vld [vmem:[#allocation2 + $0xb8] sm:$0xf]
      %v563 = vld [vmem:[#allocation2 + $0xbc] sm:$0xf]
      %v564 = vld [vmem:[#allocation2 + $0xc0] sm:$0xf]
      %v565 = vld [vmem:[#allocation2 + $0xc4] sm:$0xf]
      %v566 = vld [vmem:[#allocation2 + $0xc8] sm:$0xf]
      %v567 = vld [vmem:[#allocation2 + $0xcc] sm:$0xf]
      %v568 = vld [vmem:[#allocation2 + $0xd0] sm:$0xf]
      %v569 = vld [vmem:[#allocation2 + $0xd4] sm:$0xf]
      %v570 = vld [vmem:[#allocation2 + $0xd8] sm:$0xf]
      %v571 = vld [vmem:[#allocation2 + $0xdc] sm:$0xf]
      %v572 = vld [vmem:[#allocation2 + $0xe0] sm:$0xf]
      %v573 = vld [vmem:[#allocation2 + $0xe4] sm:$0xf]
      %v574 = vld [vmem:[#allocation2 + $0xe8] sm:$0xf]
      %v575 = vld [vmem:[#allocation2 + $0xec] sm:$0xf]
      %v576 = vld [vmem:[#allocation2 + $0xf0] sm:$0xf]
      %v577 = vld [vmem:[#allocation2 + $0xf4] sm:$0xf]
      %v578 = vld [vmem:[#allocation2 + $0xf8] sm:$0xf]
      %v579 = vld [vmem:[#allocation2 + $0xfc] sm:$0xf]
      %v580 = vld [vmem:[#allocation2 + $0x100] sm:$0xf]
      %v581 = vld [vmem:[#allocation2 + $0x104] sm:$0xf]
      %v582 = vld [vmem:[#allocation2 + $0x108] sm:$0xf]
      %v583 = vld [vmem:[#allocation2 + $0x10c] sm:$0xf]
      %v584 = vld [vmem:[#allocation2 + $0x110] sm:$0xf]
      %v585 = vld [vmem:[#allocation2 + $0x114] sm:$0xf]
      %v586 = vld [vmem:[#allocation2 + $0x118] sm:$0xf]
      %v587 = vld [vmem:[#allocation2 + $0x11c] sm:$0xf]
      %v642 = vunpack.c.l.b16 %v516
      %v643 = vunpack.c.l.b16 %v517
      %v644 = vunpack.c.l.b16 %v518
      %v645 = vunpack.c.l.b16 %v520
      %v646 = vunpack.c.l.b16 %v521
      %v647 = vunpack.c.l.b16 %v522
      %v648 = vunpack.c.l.b16 %v524
      %v649 = vunpack.c.l.b16 %v525
      %v650 = vunpack.c.l.b16 %v526
      %v651 = vunpack.c.l.b16 %v528
      %v652 = vunpack.c.l.b16 %v529
      %v653 = vunpack.c.l.b16 %v530
      %v654 = vunpack.c.l.b16 %v532
      %v655 = vunpack.c.l.b16 %v533
      %v656 = vunpack.c.l.b16 %v534
      %v657 = vunpack.c.l.b16 %v536
      %v658 = vunpack.c.l.b16 %v537
      %v659 = vunpack.c.l.b16 %v538
      %v660 = vunpack.c.l.b16 %v540
      %v661 = vunpack.c.l.b16 %v541
      %v662 = vunpack.c.l.b16 %v542
      %v663 = vunpack.c.l.b16 %v544
      %v664 = vunpack.c.l.b16 %v545
      %v665 = vunpack.c.l.b16 %v546
      %v666 = vunpack.c.l.b16 %v548
      %v667 = vunpack.c.l.b16 %v549
      %v668 = vunpack.c.l.b16 %v550
      %v669 = vunpack.c.l.b16 %v552
      %v670 = vunpack.c.l.b16 %v553
      %v671 = vunpack.c.l.b16 %v554
      %v672 = vunpack.c.l.b16 %v556
      %v673 = vunpack.c.l.b16 %v557
      %v674 = vunpack.c.l.b16 %v558
      %v675 = vunpack.c.l.b16 %v560
      %v676 = vunpack.c.l.b16 %v561
      %v677 = vunpack.c.l.b16 %v562
      %v678 = vunpack.c.l.b16 %v564
      %v679 = vunpack.c.l.b16 %v565
      %v680 = vunpack.c.l.b16 %v566
      %v681 = vunpack.c.l.b16 %v568
      %v682 = vunpack.c.l.b16 %v569
      %v683 = vunpack.c.l.b16 %v570
      %v684 = vunpack.c.l.b16 %v572
      %v685 = vunpack.c.l.b16 %v573
      %v686 = vunpack.c.l.b16 %v574
      %v687 = vunpack.c.l.b16 %v576
      %v688 = vunpack.c.l.b16 %v577
      %v689 = vunpack.c.l.b16 %v578
      %v690 = vunpack.c.l.b16 %v580
      %v691 = vunpack.c.l.b16 %v581
      %v692 = vunpack.c.l.b16 %v582
      %v693 = vunpack.c.l.b16 %v584
      %v694 = vunpack.c.l.b16 %v585
      %v695 = vunpack.c.l.b16 %v586
      %v696 = vpack.c.b16 %v643, %v642
      %v697 = vpack.c.b16 %v644, %v644
      %v698 = vpack.c.b16 %v646, %v645
      %v699 = vpack.c.b16 %v647, %v647
      %v700 = vpack.c.b16 %v649, %v648
      %v701 = vpack.c.b16 %v650, %v650
      %v702 = vpack.c.b16 %v652, %v651
      %v703 = vpack.c.b16 %v653, %v653
      %v704 = vpack.c.b16 %v655, %v654
      %v705 = vpack.c.b16 %v656, %v656
      %v706 = vpack.c.b16 %v658, %v657
      %v707 = vpack.c.b16 %v659, %v659
      %v708 = vpack.c.b16 %v661, %v660
      %v709 = vpack.c.b16 %v662, %v662
      %v710 = vpack.c.b16 %v664, %v663
      %v711 = vpack.c.b16 %v665, %v665
      %v712 = vpack.c.b16 %v667, %v666
      %v713 = vpack.c.b16 %v668, %v668
      %v714 = vpack.c.b16 %v670, %v669
      %v715 = vpack.c.b16 %v671, %v671
      %v716 = vpack.c.b16 %v673, %v672
      %v717 = vpack.c.b16 %v674, %v674
      %v718 = vpack.c.b16 %v676, %v675
      %v719 = vpack.c.b16 %v677, %v677
      %v720 = vpack.c.b16 %v679, %v678
      %v721 = vpack.c.b16 %v680, %v680
      %v722 = vpack.c.b16 %v682, %v681
      %v723 = vpack.c.b16 %v683, %v683
      %v724 = vpack.c.b16 %v685, %v684
      %v725 = vpack.c.b16 %v686, %v686
      %v726 = vpack.c.b16 %v688, %v687
      %v727 = vpack.c.b16 %v689, %v689
      %v728 = vpack.c.b16 %v691, %v690
      %v729 = vpack.c.b16 %v692, %v692
      %v730 = vpack.c.b16 %v694, %v693
      %v731 = vpack.c.b16 %v695, %v695
      %v732 = vpack.c.b16 %v644, %v643
      %v733 = vpack.c.b16 %v647, %v646
      %v734 = vpack.c.b16 %v650, %v649
      %v735 = vpack.c.b16 %v653, %v652
      %v736 = vpack.c.b16 %v656, %v655
      %v737 = vpack.c.b16 %v659, %v658
      %v738 = vpack.c.b16 %v662, %v661
      %v739 = vpack.c.b16 %v665, %v664
      %v740 = vpack.c.b16 %v668, %v667
      %v741 = vpack.c.b16 %v671, %v670
      %v742 = vpack.c.b16 %v674, %v673
      %v743 = vpack.c.b16 %v677, %v676
      %v744 = vpack.c.b16 %v680, %v679
      %v745 = vpack.c.b16 %v683, %v682
      %v746 = vpack.c.b16 %v686, %v685
      %v747 = vpack.c.b16 %v689, %v688
      %v748 = vpack.c.b16 %v692, %v691
      %v749 = vpack.c.b16 %v695, %v694
      %v751 = vshrl.u32 %v732, 16
      %v753 = vrot.slane %v751, 4
      %v754 = vshll.u32 %v732, 16
      %v756 = vrot.slane %v754, 5
      %v757 = vor.u32 %v753, %v756
      %v759 = vshrl.u32 %v733, 16
      %v761 = vrot.slane %v759, 4
      %v762 = vshll.u32 %v733, 16
      %v764 = vrot.slane %v762, 5
      %v765 = vor.u32 %v761, %v764
      %v767 = vshrl.u32 %v734, 16
      %v769 = vrot.slane %v767, 4
      %v770 = vshll.u32 %v734, 16
      %v772 = vrot.slane %v770, 5
      %v773 = vor.u32 %v769, %v772
      %v775 = vshrl.u32 %v735, 16
      %v777 = vrot.slane %v775, 4
      %v778 = vshll.u32 %v735, 16
      %v780 = vrot.slane %v778, 5
      %v781 = vor.u32 %v777, %v780
      %v783 = vshrl.u32 %v736, 16
      %v785 = vrot.slane %v783, 4
      %v786 = vshll.u32 %v736, 16
      %v788 = vrot.slane %v786, 5
      %v789 = vor.u32 %v785, %v788
      %v791 = vshrl.u32 %v737, 16
      %v793 = vrot.slane %v791, 4
      %v794 = vshll.u32 %v737, 16
      %v796 = vrot.slane %v794, 5
      %v797 = vor.u32 %v793, %v796
      %v799 = vshrl.u32 %v738, 16
      %v801 = vrot.slane %v799, 4
      %v802 = vshll.u32 %v738, 16
      %v804 = vrot.slane %v802, 5
      %v805 = vor.u32 %v801, %v804
      %v807 = vshrl.u32 %v739, 16
      %v809 = vrot.slane %v807, 4
      %v810 = vshll.u32 %v739, 16
      %v812 = vrot.slane %v810, 5
      %v813 = vor.u32 %v809, %v812
      %v815 = vshrl.u32 %v740, 16
      %v817 = vrot.slane %v815, 4
      %v818 = vshll.u32 %v740, 16
      %v820 = vrot.slane %v818, 5
      %v821 = vor.u32 %v817, %v820
      %v823 = vshrl.u32 %v741, 16
      %v825 = vrot.slane %v823, 4
      %v826 = vshll.u32 %v741, 16
      %v828 = vrot.slane %v826, 5
      %v829 = vor.u32 %v825, %v828
      %v831 = vshrl.u32 %v742, 16
      %v833 = vrot.slane %v831, 4
      %v834 = vshll.u32 %v742, 16
      %v836 = vrot.slane %v834, 5
      %v837 = vor.u32 %v833, %v836
      %v839 = vshrl.u32 %v743, 16
      %v841 = vrot.slane %v839, 4
      %v842 = vshll.u32 %v743, 16
      %v844 = vrot.slane %v842, 5
      %v845 = vor.u32 %v841, %v844
      %v847 = vshrl.u32 %v744, 16
      %v849 = vrot.slane %v847, 4
      %v850 = vshll.u32 %v744, 16
      %v852 = vrot.slane %v850, 5
      %v853 = vor.u32 %v849, %v852
      %v855 = vshrl.u32 %v745, 16
      %v857 = vrot.slane %v855, 4
      %v858 = vshll.u32 %v745, 16
      %v860 = vrot.slane %v858, 5
      %v861 = vor.u32 %v857, %v860
      %v863 = vshrl.u32 %v746, 16
      %v865 = vrot.slane %v863, 4
      %v866 = vshll.u32 %v746, 16
      %v868 = vrot.slane %v866, 5
      %v869 = vor.u32 %v865, %v868
      %v871 = vshrl.u32 %v747, 16
      %v873 = vrot.slane %v871, 4
      %v874 = vshll.u32 %v747, 16
      %v876 = vrot.slane %v874, 5
      %v877 = vor.u32 %v873, %v876
      %v879 = vshrl.u32 %v748, 16
      %v881 = vrot.slane %v879, 4
      %v882 = vshll.u32 %v748, 16
      %v884 = vrot.slane %v882, 5
      %v885 = vor.u32 %v881, %v884
      %v887 = vshrl.u32 %v749, 16
      %v889 = vrot.slane %v887, 4
      %v890 = vshll.u32 %v749, 16
      %v892 = vrot.slane %v890, 5
      %v893 = vor.u32 %v889, %v892
      %v912 = vunpack.c.l.b16 %v519
      %v913 = vunpack.c.l.b16 %v523
      %v914 = vunpack.c.l.b16 %v527
      %v915 = vunpack.c.l.b16 %v531
      %v916 = vunpack.c.l.b16 %v535
      %v917 = vunpack.c.l.b16 %v539
      %v918 = vunpack.c.l.b16 %v543
      %v919 = vunpack.c.l.b16 %v547
      %v920 = vunpack.c.l.b16 %v551
      %v921 = vunpack.c.l.b16 %v555
      %v922 = vunpack.c.l.b16 %v559
      %v923 = vunpack.c.l.b16 %v563
      %v924 = vunpack.c.l.b16 %v567
      %v925 = vunpack.c.l.b16 %v571
      %v926 = vunpack.c.l.b16 %v575
      %v927 = vunpack.c.l.b16 %v579
      %v928 = vunpack.c.l.b16 %v583
      %v929 = vunpack.c.l.b16 %v587
      %v930 = vpack.c.b16 %v912, %v912
      %v931 = vpack.c.b16 %v913, %v913
      %v932 = vpack.c.b16 %v914, %v914
      %v933 = vpack.c.b16 %v915, %v915
      %v934 = vpack.c.b16 %v916, %v916
      %v935 = vpack.c.b16 %v917, %v917
      %v936 = vpack.c.b16 %v918, %v918
      %v937 = vpack.c.b16 %v919, %v919
      %v938 = vpack.c.b16 %v920, %v920
      %v939 = vpack.c.b16 %v921, %v921
      %v940 = vpack.c.b16 %v922, %v922
      %v941 = vpack.c.b16 %v923, %v923
      %v942 = vpack.c.b16 %v924, %v924
      %v943 = vpack.c.b16 %v925, %v925
      %v944 = vpack.c.b16 %v926, %v926
      %v945 = vpack.c.b16 %v927, %v927
      %v946 = vpack.c.b16 %v928, %v928
      %v947 = vpack.c.b16 %v929, %v929
      %vm948 = vcmask 1042432
      %v949 = vrot.slane %v732, 5
      %v950 = vrot.slane %v930, 5
      %v951 = vsel %vm948, %v949, %v950
      %v952 = vrot.slane %v733, 5
      %v953 = vrot.slane %v931, 5
      %v954 = vsel %vm948, %v952, %v953
      %v955 = vrot.slane %v734, 5
      %v956 = vrot.slane %v932, 5
      %v957 = vsel %vm948, %v955, %v956
      %v958 = vrot.slane %v735, 5
      %v959 = vrot.slane %v933, 5
      %v960 = vsel %vm948, %v958, %v959
      %v961 = vrot.slane %v736, 5
      %v962 = vrot.slane %v934, 5
      %v963 = vsel %vm948, %v961, %v962
      %v964 = vrot.slane %v737, 5
      %v965 = vrot.slane %v935, 5
      %v966 = vsel %vm948, %v964, %v965
      %v967 = vrot.slane %v738, 5
      %v968 = vrot.slane %v936, 5
      %v969 = vsel %vm948, %v967, %v968
      %v970 = vrot.slane %v739, 5
      %v971 = vrot.slane %v937, 5
      %v972 = vsel %vm948, %v970, %v971
      %v973 = vrot.slane %v740, 5
      %v974 = vrot.slane %v938, 5
      %v975 = vsel %vm948, %v973, %v974
      %v976 = vrot.slane %v741, 5
      %v977 = vrot.slane %v939, 5
      %v978 = vsel %vm948, %v976, %v977
      %v979 = vrot.slane %v742, 5
      %v980 = vrot.slane %v940, 5
      %v981 = vsel %vm948, %v979, %v980
      %v982 = vrot.slane %v743, 5
      %v983 = vrot.slane %v941, 5
      %v984 = vsel %vm948, %v982, %v983
      %v985 = vrot.slane %v744, 5
      %v986 = vrot.slane %v942, 5
      %v987 = vsel %vm948, %v985, %v986
      %v988 = vrot.slane %v745, 5
      %v989 = vrot.slane %v943, 5
      %v990 = vsel %vm948, %v988, %v989
      %v991 = vrot.slane %v746, 5
      %v992 = vrot.slane %v944, 5
      %v993 = vsel %vm948, %v991, %v992
      %v994 = vrot.slane %v747, 5
      %v995 = vrot.slane %v945, 5
      %v996 = vsel %vm948, %v994, %v995
      %v997 = vrot.slane %v748, 5
      %v998 = vrot.slane %v946, 5
      %v999 = vsel %vm948, %v997, %v998
      %v1000 = vrot.slane %v749, 5
      %v1001 = vrot.slane %v947, 5
      %v1002 = vsel %vm948, %v1000, %v1001
      %vm1003 = vsmask.f32 4352
      %v1005 = vshrl.u32 %v696, 16
      %v1007 = vrot.slane %v1005, 3
      %v1008 = vshll.u32 %v696, 16
      %v1010 = vrot.slane %v1008, 4
      %v1011 = vor.u32 %v1007, %v1010
      %v1013 = vshrl.u32 %v697, 16
      %v1015 = vrot.slane %v1013, 3
      %v1016 = vshll.u32 %v697, 16
      %v1018 = vrot.slane %v1016, 4
      %v1019 = vor.u32 %v1015, %v1018
      %v1020 = vsel %vm1003, %v1011, %v1019
      %v1022 = vshrl.u32 %v757, 16
      %v1024 = vrot.slane %v1022, 3
      %v1025 = vshll.u32 %v757, 16
      %v1027 = vrot.slane %v1025, 4
      %v1028 = vor.u32 %v1024, %v1027
      %v1029 = vsel %vm1003, %v1028, %v1028
      %v1031 = vshrl.u32 %v949, 16
      %v1033 = vrot.slane %v1031, 3
      %v1034 = vshll.u32 %v949, 16
      %v1036 = vrot.slane %v1034, 4
      %v1037 = vor.u32 %v1033, %v1036
      %v1039 = vshrl.u32 %v951, 16
      %v1041 = vrot.slane %v1039, 3
      %v1042 = vshll.u32 %v951, 16
      %v1044 = vrot.slane %v1042, 4
      %v1045 = vor.u32 %v1041, %v1044
      %v1046 = vsel %vm1003, %v1037, %v1045
      %v1048 = vshrl.u32 %v698, 16
      %v1050 = vrot.slane %v1048, 3
      %v1051 = vshll.u32 %v698, 16
      %v1053 = vrot.slane %v1051, 4
      %v1054 = vor.u32 %v1050, %v1053
      %v1056 = vshrl.u32 %v699, 16
      %v1058 = vrot.slane %v1056, 3
      %v1059 = vshll.u32 %v699, 16
      %v1061 = vrot.slane %v1059, 4
      %v1062 = vor.u32 %v1058, %v1061
      %v1063 = vsel %vm1003, %v1054, %v1062
      %v1065 = vshrl.u32 %v765, 16
      %v1067 = vrot.slane %v1065, 3
      %v1068 = vshll.u32 %v765, 16
      %v1070 = vrot.slane %v1068, 4
      %v1071 = vor.u32 %v1067, %v1070
      %v1072 = vsel %vm1003, %v1071, %v1071
      %v1074 = vshrl.u32 %v952, 16
      %v1076 = vrot.slane %v1074, 3
      %v1077 = vshll.u32 %v952, 16
      %v1079 = vrot.slane %v1077, 4
      %v1080 = vor.u32 %v1076, %v1079
      %v1082 = vshrl.u32 %v954, 16
      %v1084 = vrot.slane %v1082, 3
      %v1085 = vshll.u32 %v954, 16
      %v1087 = vrot.slane %v1085, 4
      %v1088 = vor.u32 %v1084, %v1087
      %v1089 = vsel %vm1003, %v1080, %v1088
      %v1091 = vshrl.u32 %v700, 16
      %v1093 = vrot.slane %v1091, 3
      %v1094 = vshll.u32 %v700, 16
      %v1096 = vrot.slane %v1094, 4
      %v1097 = vor.u32 %v1093, %v1096
      %v1099 = vshrl.u32 %v701, 16
      %v1101 = vrot.slane %v1099, 3
      %v1102 = vshll.u32 %v701, 16
      %v1104 = vrot.slane %v1102, 4
      %v1105 = vor.u32 %v1101, %v1104
      %v1106 = vsel %vm1003, %v1097, %v1105
      %v1108 = vshrl.u32 %v773, 16
      %v1110 = vrot.slane %v1108, 3
      %v1111 = vshll.u32 %v773, 16
      %v1113 = vrot.slane %v1111, 4
      %v1114 = vor.u32 %v1110, %v1113
      %v1115 = vsel %vm1003, %v1114, %v1114
      %v1117 = vshrl.u32 %v955, 16
      %v1119 = vrot.slane %v1117, 3
      %v1120 = vshll.u32 %v955, 16
      %v1122 = vrot.slane %v1120, 4
      %v1123 = vor.u32 %v1119, %v1122
      %v1125 = vshrl.u32 %v957, 16
      %v1127 = vrot.slane %v1125, 3
      %v1128 = vshll.u32 %v957, 16
      %v1130 = vrot.slane %v1128, 4
      %v1131 = vor.u32 %v1127, %v1130
      %v1132 = vsel %vm1003, %v1123, %v1131
      %v1134 = vshrl.u32 %v702, 16
      %v1136 = vrot.slane %v1134, 3
      %v1137 = vshll.u32 %v702, 16
      %v1139 = vrot.slane %v1137, 4
      %v1140 = vor.u32 %v1136, %v1139
      %v1142 = vshrl.u32 %v703, 16
      %v1144 = vrot.slane %v1142, 3
      %v1145 = vshll.u32 %v703, 16
      %v1147 = vrot.slane %v1145, 4
      %v1148 = vor.u32 %v1144, %v1147
      %v1149 = vsel %vm1003, %v1140, %v1148
      %v1151 = vshrl.u32 %v781, 16
      %v1153 = vrot.slane %v1151, 3
      %v1154 = vshll.u32 %v781, 16
      %v1156 = vrot.slane %v1154, 4
      %v1157 = vor.u32 %v1153, %v1156
      %v1158 = vsel %vm1003, %v1157, %v1157
      %v1160 = vshrl.u32 %v958, 16
      %v1162 = vrot.slane %v1160, 3
      %v1163 = vshll.u32 %v958, 16
      %v1165 = vrot.slane %v1163, 4
      %v1166 = vor.u32 %v1162, %v1165
      %v1168 = vshrl.u32 %v960, 16
      %v1170 = vrot.slane %v1168, 3
      %v1171 = vshll.u32 %v960, 16
      %v1173 = vrot.slane %v1171, 4
      %v1174 = vor.u32 %v1170, %v1173
      %v1175 = vsel %vm1003, %v1166, %v1174
      %v1177 = vshrl.u32 %v704, 16
      %v1179 = vrot.slane %v1177, 3
      %v1180 = vshll.u32 %v704, 16
      %v1182 = vrot.slane %v1180, 4
      %v1183 = vor.u32 %v1179, %v1182
      %v1185 = vshrl.u32 %v705, 16
      %v1187 = vrot.slane %v1185, 3
      %v1188 = vshll.u32 %v705, 16
      %v1190 = vrot.slane %v1188, 4
      %v1191 = vor.u32 %v1187, %v1190
      %v1192 = vsel %vm1003, %v1183, %v1191
      %v1194 = vshrl.u32 %v789, 16
      %v1196 = vrot.slane %v1194, 3
      %v1197 = vshll.u32 %v789, 16
      %v1199 = vrot.slane %v1197, 4
      %v1200 = vor.u32 %v1196, %v1199
      %v1201 = vsel %vm1003, %v1200, %v1200
      %v1203 = vshrl.u32 %v961, 16
      %v1205 = vrot.slane %v1203, 3
      %v1206 = vshll.u32 %v961, 16
      %v1208 = vrot.slane %v1206, 4
      %v1209 = vor.u32 %v1205, %v1208
      %v1211 = vshrl.u32 %v963, 16
      %v1213 = vrot.slane %v1211, 3
      %v1214 = vshll.u32 %v963, 16
      %v1216 = vrot.slane %v1214, 4
      %v1217 = vor.u32 %v1213, %v1216
      %v1218 = vsel %vm1003, %v1209, %v1217
      %v1220 = vshrl.u32 %v706, 16
      %v1222 = vrot.slane %v1220, 3
      %v1223 = vshll.u32 %v706, 16
      %v1225 = vrot.slane %v1223, 4
      %v1226 = vor.u32 %v1222, %v1225
      %v1228 = vshrl.u32 %v707, 16
      %v1230 = vrot.slane %v1228, 3
      %v1231 = vshll.u32 %v707, 16
      %v1233 = vrot.slane %v1231, 4
      %v1234 = vor.u32 %v1230, %v1233
      %v1235 = vsel %vm1003, %v1226, %v1234
      %v1237 = vshrl.u32 %v797, 16
      %v1239 = vrot.slane %v1237, 3
      %v1240 = vshll.u32 %v797, 16
      %v1242 = vrot.slane %v1240, 4
      %v1243 = vor.u32 %v1239, %v1242
      %v1244 = vsel %vm1003, %v1243, %v1243
      %v1246 = vshrl.u32 %v964, 16
      %v1248 = vrot.slane %v1246, 3
      %v1249 = vshll.u32 %v964, 16
      %v1251 = vrot.slane %v1249, 4
      %v1252 = vor.u32 %v1248, %v1251
      %v1254 = vshrl.u32 %v966, 16
      %v1256 = vrot.slane %v1254, 3
      %v1257 = vshll.u32 %v966, 16
      %v1259 = vrot.slane %v1257, 4
      %v1260 = vor.u32 %v1256, %v1259
      %v1261 = vsel %vm1003, %v1252, %v1260
      %v1263 = vshrl.u32 %v708, 16
      %v1265 = vrot.slane %v1263, 3
      %v1266 = vshll.u32 %v708, 16
      %v1268 = vrot.slane %v1266, 4
      %v1269 = vor.u32 %v1265, %v1268
      %v1271 = vshrl.u32 %v709, 16
      %v1273 = vrot.slane %v1271, 3
      %v1274 = vshll.u32 %v709, 16
      %v1276 = vrot.slane %v1274, 4
      %v1277 = vor.u32 %v1273, %v1276
      %v1278 = vsel %vm1003, %v1269, %v1277
      %v1280 = vshrl.u32 %v805, 16
      %v1282 = vrot.slane %v1280, 3
      %v1283 = vshll.u32 %v805, 16
      %v1285 = vrot.slane %v1283, 4
      %v1286 = vor.u32 %v1282, %v1285
      %v1287 = vsel %vm1003, %v1286, %v1286
      %v1289 = vshrl.u32 %v967, 16
      %v1291 = vrot.slane %v1289, 3
      %v1292 = vshll.u32 %v967, 16
      %v1294 = vrot.slane %v1292, 4
      %v1295 = vor.u32 %v1291, %v1294
      %v1297 = vshrl.u32 %v969, 16
      %v1299 = vrot.slane %v1297, 3
      %v1300 = vshll.u32 %v969, 16
      %v1302 = vrot.slane %v1300, 4
      %v1303 = vor.u32 %v1299, %v1302
      %v1304 = vsel %vm1003, %v1295, %v1303
      %v1306 = vshrl.u32 %v710, 16
      %v1308 = vrot.slane %v1306, 3
      %v1309 = vshll.u32 %v710, 16
      %v1311 = vrot.slane %v1309, 4
      %v1312 = vor.u32 %v1308, %v1311
      %v1314 = vshrl.u32 %v711, 16
      %v1316 = vrot.slane %v1314, 3
      %v1317 = vshll.u32 %v711, 16
      %v1319 = vrot.slane %v1317, 4
      %v1320 = vor.u32 %v1316, %v1319
      %v1321 = vsel %vm1003, %v1312, %v1320
      %v1323 = vshrl.u32 %v813, 16
      %v1325 = vrot.slane %v1323, 3
      %v1326 = vshll.u32 %v813, 16
      %v1328 = vrot.slane %v1326, 4
      %v1329 = vor.u32 %v1325, %v1328
      %v1330 = vsel %vm1003, %v1329, %v1329
      %v1332 = vshrl.u32 %v970, 16
      %v1334 = vrot.slane %v1332, 3
      %v1335 = vshll.u32 %v970, 16
      %v1337 = vrot.slane %v1335, 4
      %v1338 = vor.u32 %v1334, %v1337
      %v1340 = vshrl.u32 %v972, 16
      %v1342 = vrot.slane %v1340, 3
      %v1343 = vshll.u32 %v972, 16
      %v1345 = vrot.slane %v1343, 4
      %v1346 = vor.u32 %v1342, %v1345
      %v1347 = vsel %vm1003, %v1338, %v1346
      %v1349 = vshrl.u32 %v712, 16
      %v1351 = vrot.slane %v1349, 3
      %v1352 = vshll.u32 %v712, 16
      %v1354 = vrot.slane %v1352, 4
      %v1355 = vor.u32 %v1351, %v1354
      %v1357 = vshrl.u32 %v713, 16
      %v1359 = vrot.slane %v1357, 3
      %v1360 = vshll.u32 %v713, 16
      %v1362 = vrot.slane %v1360, 4
      %v1363 = vor.u32 %v1359, %v1362
      %v1364 = vsel %vm1003, %v1355, %v1363
      %v1366 = vshrl.u32 %v821, 16
      %v1368 = vrot.slane %v1366, 3
      %v1369 = vshll.u32 %v821, 16
      %v1371 = vrot.slane %v1369, 4
      %v1372 = vor.u32 %v1368, %v1371
      %v1373 = vsel %vm1003, %v1372, %v1372
      %v1375 = vshrl.u32 %v973, 16
      %v1377 = vrot.slane %v1375, 3
      %v1378 = vshll.u32 %v973, 16
      %v1380 = vrot.slane %v1378, 4
      %v1381 = vor.u32 %v1377, %v1380
      %v1383 = vshrl.u32 %v975, 16
      %v1385 = vrot.slane %v1383, 3
      %v1386 = vshll.u32 %v975, 16
      %v1388 = vrot.slane %v1386, 4
      %v1389 = vor.u32 %v1385, %v1388
      %v1390 = vsel %vm1003, %v1381, %v1389
      %v1392 = vshrl.u32 %v714, 16
      %v1394 = vrot.slane %v1392, 3
      %v1395 = vshll.u32 %v714, 16
      %v1397 = vrot.slane %v1395, 4
      %v1398 = vor.u32 %v1394, %v1397
      %v1400 = vshrl.u32 %v715, 16
      %v1402 = vrot.slane %v1400, 3
      %v1403 = vshll.u32 %v715, 16
      %v1405 = vrot.slane %v1403, 4
      %v1406 = vor.u32 %v1402, %v1405
      %v1407 = vsel %vm1003, %v1398, %v1406
      %v1409 = vshrl.u32 %v829, 16
      %v1411 = vrot.slane %v1409, 3
      %v1412 = vshll.u32 %v829, 16
      %v1414 = vrot.slane %v1412, 4
      %v1415 = vor.u32 %v1411, %v1414
      %v1416 = vsel %vm1003, %v1415, %v1415
      %v1418 = vshrl.u32 %v976, 16
      %v1420 = vrot.slane %v1418, 3
      %v1421 = vshll.u32 %v976, 16
      %v1423 = vrot.slane %v1421, 4
      %v1424 = vor.u32 %v1420, %v1423
      %v1426 = vshrl.u32 %v978, 16
      %v1428 = vrot.slane %v1426, 3
      %v1429 = vshll.u32 %v978, 16
      %v1431 = vrot.slane %v1429, 4
      %v1432 = vor.u32 %v1428, %v1431
      %v1433 = vsel %vm1003, %v1424, %v1432
      %v1435 = vshrl.u32 %v716, 16
      %v1437 = vrot.slane %v1435, 3
      %v1438 = vshll.u32 %v716, 16
      %v1440 = vrot.slane %v1438, 4
      %v1441 = vor.u32 %v1437, %v1440
      %v1443 = vshrl.u32 %v717, 16
      %v1445 = vrot.slane %v1443, 3
      %v1446 = vshll.u32 %v717, 16
      %v1448 = vrot.slane %v1446, 4
      %v1449 = vor.u32 %v1445, %v1448
      %v1450 = vsel %vm1003, %v1441, %v1449
      %v1452 = vshrl.u32 %v837, 16
      %v1454 = vrot.slane %v1452, 3
      %v1455 = vshll.u32 %v837, 16
      %v1457 = vrot.slane %v1455, 4
      %v1458 = vor.u32 %v1454, %v1457
      %v1459 = vsel %vm1003, %v1458, %v1458
      %v1461 = vshrl.u32 %v979, 16
      %v1463 = vrot.slane %v1461, 3
      %v1464 = vshll.u32 %v979, 16
      %v1466 = vrot.slane %v1464, 4
      %v1467 = vor.u32 %v1463, %v1466
      %v1469 = vshrl.u32 %v981, 16
      %v1471 = vrot.slane %v1469, 3
      %v1472 = vshll.u32 %v981, 16
      %v1474 = vrot.slane %v1472, 4
      %v1475 = vor.u32 %v1471, %v1474
      %v1476 = vsel %vm1003, %v1467, %v1475
      %v1478 = vshrl.u32 %v718, 16
      %v1480 = vrot.slane %v1478, 3
      %v1481 = vshll.u32 %v718, 16
      %v1483 = vrot.slane %v1481, 4
      %v1484 = vor.u32 %v1480, %v1483
      %v1486 = vshrl.u32 %v719, 16
      %v1488 = vrot.slane %v1486, 3
      %v1489 = vshll.u32 %v719, 16
      %v1491 = vrot.slane %v1489, 4
      %v1492 = vor.u32 %v1488, %v1491
      %v1493 = vsel %vm1003, %v1484, %v1492
      %v1495 = vshrl.u32 %v845, 16
      %v1497 = vrot.slane %v1495, 3
      %v1498 = vshll.u32 %v845, 16
      %v1500 = vrot.slane %v1498, 4
      %v1501 = vor.u32 %v1497, %v1500
      %v1502 = vsel %vm1003, %v1501, %v1501
      %v1504 = vshrl.u32 %v982, 16
      %v1506 = vrot.slane %v1504, 3
      %v1507 = vshll.u32 %v982, 16
      %v1509 = vrot.slane %v1507, 4
      %v1510 = vor.u32 %v1506, %v1509
      %v1512 = vshrl.u32 %v984, 16
      %v1514 = vrot.slane %v1512, 3
      %v1515 = vshll.u32 %v984, 16
      %v1517 = vrot.slane %v1515, 4
      %v1518 = vor.u32 %v1514, %v1517
      %v1519 = vsel %vm1003, %v1510, %v1518
      %v1521 = vshrl.u32 %v720, 16
      %v1523 = vrot.slane %v1521, 3
      %v1524 = vshll.u32 %v720, 16
      %v1526 = vrot.slane %v1524, 4
      %v1527 = vor.u32 %v1523, %v1526
      %v1529 = vshrl.u32 %v721, 16
      %v1531 = vrot.slane %v1529, 3
      %v1532 = vshll.u32 %v721, 16
      %v1534 = vrot.slane %v1532, 4
      %v1535 = vor.u32 %v1531, %v1534
      %v1536 = vsel %vm1003, %v1527, %v1535
      %v1538 = vshrl.u32 %v853, 16
      %v1540 = vrot.slane %v1538, 3
      %v1541 = vshll.u32 %v853, 16
      %v1543 = vrot.slane %v1541, 4
      %v1544 = vor.u32 %v1540, %v1543
      %v1545 = vsel %vm1003, %v1544, %v1544
      %v1547 = vshrl.u32 %v985, 16
      %v1549 = vrot.slane %v1547, 3
      %v1550 = vshll.u32 %v985, 16
      %v1552 = vrot.slane %v1550, 4
      %v1553 = vor.u32 %v1549, %v1552
      %v1555 = vshrl.u32 %v987, 16
      %v1557 = vrot.slane %v1555, 3
      %v1558 = vshll.u32 %v987, 16
      %v1560 = vrot.slane %v1558, 4
      %v1561 = vor.u32 %v1557, %v1560
      %v1562 = vsel %vm1003, %v1553, %v1561
      %v1564 = vshrl.u32 %v722, 16
      %v1566 = vrot.slane %v1564, 3
      %v1567 = vshll.u32 %v722, 16
      %v1569 = vrot.slane %v1567, 4
      %v1570 = vor.u32 %v1566, %v1569
      %v1572 = vshrl.u32 %v723, 16
      %v1574 = vrot.slane %v1572, 3
      %v1575 = vshll.u32 %v723, 16
      %v1577 = vrot.slane %v1575, 4
      %v1578 = vor.u32 %v1574, %v1577
      %v1579 = vsel %vm1003, %v1570, %v1578
      %v1581 = vshrl.u32 %v861, 16
      %v1583 = vrot.slane %v1581, 3
      %v1584 = vshll.u32 %v861, 16
      %v1586 = vrot.slane %v1584, 4
      %v1587 = vor.u32 %v1583, %v1586
      %v1588 = vsel %vm1003, %v1587, %v1587
      %v1590 = vshrl.u32 %v988, 16
      %v1592 = vrot.slane %v1590, 3
      %v1593 = vshll.u32 %v988, 16
      %v1595 = vrot.slane %v1593, 4
      %v1596 = vor.u32 %v1592, %v1595
      %v1598 = vshrl.u32 %v990, 16
      %v1600 = vrot.slane %v1598, 3
      %v1601 = vshll.u32 %v990, 16
      %v1603 = vrot.slane %v1601, 4
      %v1604 = vor.u32 %v1600, %v1603
      %v1605 = vsel %vm1003, %v1596, %v1604
      %v1607 = vshrl.u32 %v724, 16
      %v1609 = vrot.slane %v1607, 3
      %v1610 = vshll.u32 %v724, 16
      %v1612 = vrot.slane %v1610, 4
      %v1613 = vor.u32 %v1609, %v1612
      %v1615 = vshrl.u32 %v725, 16
      %v1617 = vrot.slane %v1615, 3
      %v1618 = vshll.u32 %v725, 16
      %v1620 = vrot.slane %v1618, 4
      %v1621 = vor.u32 %v1617, %v1620
      %v1622 = vsel %vm1003, %v1613, %v1621
      %v1624 = vshrl.u32 %v869, 16
      %v1626 = vrot.slane %v1624, 3
      %v1627 = vshll.u32 %v869, 16
      %v1629 = vrot.slane %v1627, 4
      %v1630 = vor.u32 %v1626, %v1629
      %v1631 = vsel %vm1003, %v1630, %v1630
      %v1633 = vshrl.u32 %v991, 16
      %v1635 = vrot.slane %v1633, 3
      %v1636 = vshll.u32 %v991, 16
      %v1638 = vrot.slane %v1636, 4
      %v1639 = vor.u32 %v1635, %v1638
      %v1641 = vshrl.u32 %v993, 16
      %v1643 = vrot.slane %v1641, 3
      %v1644 = vshll.u32 %v993, 16
      %v1646 = vrot.slane %v1644, 4
      %v1647 = vor.u32 %v1643, %v1646
      %v1648 = vsel %vm1003, %v1639, %v1647
      %v1650 = vshrl.u32 %v726, 16
      %v1652 = vrot.slane %v1650, 3
      %v1653 = vshll.u32 %v726, 16
      %v1655 = vrot.slane %v1653, 4
      %v1656 = vor.u32 %v1652, %v1655
      %v1658 = vshrl.u32 %v727, 16
      %v1660 = vrot.slane %v1658, 3
      %v1661 = vshll.u32 %v727, 16
      %v1663 = vrot.slane %v1661, 4
      %v1664 = vor.u32 %v1660, %v1663
      %v1665 = vsel %vm1003, %v1656, %v1664
      %v1667 = vshrl.u32 %v877, 16
      %v1669 = vrot.slane %v1667, 3
      %v1670 = vshll.u32 %v877, 16
      %v1672 = vrot.slane %v1670, 4
      %v1673 = vor.u32 %v1669, %v1672
      %v1674 = vsel %vm1003, %v1673, %v1673
      %v1676 = vshrl.u32 %v994, 16
      %v1678 = vrot.slane %v1676, 3
      %v1679 = vshll.u32 %v994, 16
      %v1681 = vrot.slane %v1679, 4
      %v1682 = vor.u32 %v1678, %v1681
      %v1684 = vshrl.u32 %v996, 16
      %v1686 = vrot.slane %v1684, 3
      %v1687 = vshll.u32 %v996, 16
      %v1689 = vrot.slane %v1687, 4
      %v1690 = vor.u32 %v1686, %v1689
      %v1691 = vsel %vm1003, %v1682, %v1690
      %v1740 = vld [vmem:[%s1] sm:$0xf]
      %v1741 = vld [vmem:[%s1 + $0x4] sm:$0xf]
      %v1742 = vld [vmem:[%s1 + $0x8] sm:$0xf]
      %v1743 = vld [vmem:[%s1 + $0xc] sm:$0xf]
      %v1744 = vld [vmem:[%s1 + $0x10] sm:$0xf]
      %v1745 = vld [vmem:[%s1 + $0x14] sm:$0xf]
      %v1746 = vld [vmem:[%s1 + $0x18] sm:$0xf]
      %v1747 = vld [vmem:[%s1 + $0x1c] sm:$0xf]
      %v1748 = vld [vmem:[%s1 + $0x20] sm:$0xf]
      %v1749 = vld [vmem:[%s1 + $0x24] sm:$0xf]
      %v1750 = vld [vmem:[%s1 + $0x28] sm:$0xf]
      %v1751 = vld [vmem:[%s1 + $0x2c] sm:$0xf]
      %v1752 = vld [vmem:[%s1 + $0x30] sm:$0xf]
      %v1753 = vld [vmem:[%s1 + $0x34] sm:$0xf]
      %v1754 = vld [vmem:[%s1 + $0x38] sm:$0xf]
      %v1755 = vld [vmem:[%s1 + $0x3c] sm:$0xf]
      %v1756 = vld [vmem:[%s1 + $0x40] sm:$0xf]
      %v1757 = vld [vmem:[%s1 + $0x44] sm:$0xf]
      %v1758 = vld [vmem:[%s1 + $0x48] sm:$0xf]
      %v1759 = vld [vmem:[%s1 + $0x4c] sm:$0xf]
      %v1760 = vld [vmem:[%s1 + $0x50] sm:$0xf]
      %v1761 = vld [vmem:[%s1 + $0x54] sm:$0xf]
      %v1762 = vld [vmem:[%s1 + $0x58] sm:$0xf]
      %v1763 = vld [vmem:[%s1 + $0x5c] sm:$0xf]
      %v1764 = vld [vmem:[%s1 + $0x60] sm:$0xf]
      %v1765 = vld [vmem:[%s1 + $0x64] sm:$0xf]
      %v1766 = vld [vmem:[%s1 + $0x68] sm:$0xf]
      %v1767 = vld [vmem:[%s1 + $0x6c] sm:$0xf]
      %v1768 = vld [vmem:[%s1 + $0x70] sm:$0xf]
      %v1769 = vld [vmem:[%s1 + $0x74] sm:$0xf]
      %v1770 = vld [vmem:[%s1 + $0x78] sm:$0xf]
      %v1771 = vld [vmem:[%s1 + $0x7c] sm:$0xf]
      %v1772 = vld [vmem:[%s1 + $0x80] sm:$0xf]
      %v1773 = vld [vmem:[%s1 + $0x84] sm:$0xf]
      %v1774 = vld [vmem:[%s1 + $0x88] sm:$0xf]
      %v1775 = vld [vmem:[%s1 + $0x8c] sm:$0xf]
      %v1776 = vld [vmem:[%s1 + $0x90] sm:$0xf]
      %v1777 = vld [vmem:[%s1 + $0x94] sm:$0xf]
      %v1778 = vld [vmem:[%s1 + $0x98] sm:$0xf]
      %v1779 = vld [vmem:[%s1 + $0x9c] sm:$0xf]
      %v1780 = vld [vmem:[%s1 + $0xa0] sm:$0xf]
      %v1781 = vld [vmem:[%s1 + $0xa4] sm:$0xf]
      %v1782 = vld [vmem:[%s1 + $0xa8] sm:$0xf]
      %v1783 = vld [vmem:[%s1 + $0xac] sm:$0xf]
      %v1784 = vld [vmem:[%s1 + $0xb0] sm:$0xf]
      %v1785 = vld [vmem:[%s1 + $0xb4] sm:$0xf]
      %v1786 = vld [vmem:[%s1 + $0xb8] sm:$0xf]
      %v1787 = vld [vmem:[%s1 + $0xbc] sm:$0xf]
      %v1789 = vshrl.u32 %v728, 16
      %v1791 = vrot.slane %v1789, 3
      %v1792 = vshll.u32 %v728, 16
      %v1794 = vrot.slane %v1792, 4
      %v1795 = vor.u32 %v1791, %v1794
      %v1797 = vshrl.u32 %v729, 16
      %v1799 = vrot.slane %v1797, 3
      %v1800 = vshll.u32 %v729, 16
      %v1802 = vrot.slane %v1800, 4
      %v1803 = vor.u32 %v1799, %v1802
      %v1804 = vsel %vm1003, %v1795, %v1803
      %v1806 = vshrl.u32 %v885, 16
      %v1808 = vrot.slane %v1806, 3
      %v1809 = vshll.u32 %v885, 16
      %v1811 = vrot.slane %v1809, 4
      %v1812 = vor.u32 %v1808, %v1811
      %v1813 = vsel %vm1003, %v1812, %v1812
      %v1815 = vshrl.u32 %v997, 16
      %v1817 = vrot.slane %v1815, 3
      %v1818 = vshll.u32 %v997, 16
      %v1820 = vrot.slane %v1818, 4
      %v1821 = vor.u32 %v1817, %v1820
      %v1823 = vshrl.u32 %v999, 16
      %v1825 = vrot.slane %v1823, 3
      %v1826 = vshll.u32 %v999, 16
      %v1828 = vrot.slane %v1826, 4
      %v1829 = vor.u32 %v1825, %v1828
      %v1830 = vsel %vm1003, %v1821, %v1829
      %s1834 = scalar_lea.vmem %s1, 192
      %v1835 = vld [vmem:[%s1834] sm:$0xf]
      %v1836 = vld [vmem:[%s1834 + $0x4] sm:$0xf]
      %v1837 = vld [vmem:[%s1834 + $0x8] sm:$0xf]
      %v1838 = vld [vmem:[%s1834 + $0xc] sm:$0xf]
      %v1839 = vld [vmem:[%s1834 + $0x10] sm:$0xf]
      %v1840 = vld [vmem:[%s1834 + $0x14] sm:$0xf]
      %v1841 = vld [vmem:[%s1834 + $0x18] sm:$0xf]
      %v1842 = vld [vmem:[%s1834 + $0x1c] sm:$0xf]
      %v1843 = vld [vmem:[%s1834 + $0x20] sm:$0xf]
      %v1844 = vld [vmem:[%s1834 + $0x24] sm:$0xf]
      %v1845 = vld [vmem:[%s1834 + $0x28] sm:$0xf]
      %v1846 = vld [vmem:[%s1834 + $0x2c] sm:$0xf]
      %v1847 = vld [vmem:[%s1834 + $0x30] sm:$0xf]
      %v1848 = vld [vmem:[%s1834 + $0x34] sm:$0xf]
      %v1849 = vld [vmem:[%s1834 + $0x38] sm:$0xf]
      %v1850 = vld [vmem:[%s1834 + $0x3c] sm:$0xf]
      %v1851 = vld [vmem:[%s1834 + $0x40] sm:$0xf]
      %v1852 = vld [vmem:[%s1834 + $0x44] sm:$0xf]
      %v1853 = vld [vmem:[%s1834 + $0x48] sm:$0xf]
      %v1854 = vld [vmem:[%s1834 + $0x4c] sm:$0xf]
      %v1855 = vld [vmem:[%s1834 + $0x50] sm:$0xf]
      %v1856 = vld [vmem:[%s1834 + $0x54] sm:$0xf]
      %v1857 = vld [vmem:[%s1834 + $0x58] sm:$0xf]
      %v1858 = vld [vmem:[%s1834 + $0x5c] sm:$0xf]
      %v1859 = vld [vmem:[%s1834 + $0x60] sm:$0xf]
      %v1860 = vld [vmem:[%s1834 + $0x64] sm:$0xf]
      %v1861 = vld [vmem:[%s1834 + $0x68] sm:$0xf]
      %v1862 = vld [vmem:[%s1834 + $0x6c] sm:$0xf]
      %v1863 = vld [vmem:[%s1834 + $0x70] sm:$0xf]
      %v1864 = vld [vmem:[%s1834 + $0x74] sm:$0xf]
      %v1865 = vld [vmem:[%s1834 + $0x78] sm:$0xf]
      %v1866 = vld [vmem:[%s1834 + $0x7c] sm:$0xf]
      %v1867 = vld [vmem:[%s1834 + $0x80] sm:$0xf]
      %v1868 = vld [vmem:[%s1834 + $0x84] sm:$0xf]
      %v1869 = vld [vmem:[%s1834 + $0x88] sm:$0xf]
      %v1870 = vld [vmem:[%s1834 + $0x8c] sm:$0xf]
      %v1871 = vld [vmem:[%s1834 + $0x90] sm:$0xf]
      %v1872 = vld [vmem:[%s1834 + $0x94] sm:$0xf]
      %v1873 = vld [vmem:[%s1834 + $0x98] sm:$0xf]
      %v1874 = vld [vmem:[%s1834 + $0x9c] sm:$0xf]
      %v1875 = vld [vmem:[%s1834 + $0xa0] sm:$0xf]
      %v1876 = vld [vmem:[%s1834 + $0xa4] sm:$0xf]
      %v1877 = vld [vmem:[%s1834 + $0xa8] sm:$0xf]
      %v1878 = vld [vmem:[%s1834 + $0xac] sm:$0xf]
      %v1879 = vld [vmem:[%s1834 + $0xb0] sm:$0xf]
      %v1880 = vld [vmem:[%s1834 + $0xb4] sm:$0xf]
      %v1881 = vld [vmem:[%s1834 + $0xb8] sm:$0xf]
      %v1882 = vld [vmem:[%s1834 + $0xbc] sm:$0xf]
      %v1931 = vunpack.c.l.b16 %v1835
      %v1932 = vunpack.c.l.b16 %v1836
      %v1933 = vunpack.c.l.b16 %v1837
      %v1934 = vunpack.c.l.b16 %v1838
      %v1935 = vunpack.c.l.b16 %v1839
      %v1936 = vunpack.c.l.b16 %v1840
      %v1937 = vunpack.c.l.b16 %v1841
      %v1938 = vunpack.c.l.b16 %v1842
      %v1939 = vunpack.c.l.b16 %v1843
      %v1940 = vunpack.c.l.b16 %v1844
      %v1941 = vunpack.c.l.b16 %v1845
      %v1942 = vunpack.c.l.b16 %v1846
      %v1943 = vunpack.c.l.b16 %v1847
      %v1944 = vunpack.c.l.b16 %v1848
      %v1945 = vunpack.c.l.b16 %v1849
      %v1946 = vunpack.c.l.b16 %v1850
      %v1947 = vunpack.c.l.b16 %v1851
      %v1948 = vunpack.c.l.b16 %v1852
      %v1949 = vunpack.c.l.b16 %v1853
      %v1950 = vunpack.c.l.b16 %v1854
      %v1951 = vunpack.c.l.b16 %v1855
      %v1952 = vunpack.c.l.b16 %v1856
      %v1953 = vunpack.c.l.b16 %v1857
      %v1954 = vunpack.c.l.b16 %v1858
      %v1955 = vunpack.c.l.b16 %v1859
      %v1956 = vunpack.c.l.b16 %v1860
      %v1957 = vunpack.c.l.b16 %v1861
      %v1958 = vunpack.c.l.b16 %v1862
      %v1959 = vunpack.c.l.b16 %v1863
      %v1960 = vunpack.c.l.b16 %v1864
      %v1961 = vunpack.c.l.b16 %v1865
      %v1962 = vunpack.c.l.b16 %v1866
      %v1963 = vunpack.c.l.b16 %v1867
      %v1964 = vunpack.c.l.b16 %v1868
      %v1965 = vunpack.c.l.b16 %v1869
      %v1966 = vunpack.c.l.b16 %v1870
      %v1967 = vunpack.c.l.b16 %v1871
      %v1968 = vunpack.c.l.b16 %v1872
      %v1969 = vunpack.c.l.b16 %v1873
      %v1970 = vunpack.c.l.b16 %v1874
      %v1971 = vunpack.c.l.b16 %v1875
      %v1972 = vunpack.c.l.b16 %v1876
      %v1973 = vunpack.c.l.b16 %v1877
      %v1974 = vunpack.c.l.b16 %v1878
      %v1975 = vunpack.c.l.b16 %v1879
      %v1976 = vunpack.c.l.b16 %v1880
      %v1977 = vunpack.c.l.b16 %v1881
      %v1978 = vunpack.c.l.b16 %v1882
      %v1979 = vpack.c.b16 %v1932, %v1931
      %v1980 = vpack.c.b16 %v1934, %v1933
      %v1981 = vpack.c.b16 %v1936, %v1935
      %v1982 = vpack.c.b16 %v1938, %v1937
      %v1983 = vpack.c.b16 %v1940, %v1939
      %v1984 = vpack.c.b16 %v1942, %v1941
      %v1985 = vpack.c.b16 %v1944, %v1943
      %v1986 = vpack.c.b16 %v1946, %v1945
      %v1987 = vpack.c.b16 %v1948, %v1947
      %v1988 = vpack.c.b16 %v1950, %v1949
      %v1989 = vpack.c.b16 %v1952, %v1951
      %v1990 = vpack.c.b16 %v1954, %v1953
      %v1991 = vpack.c.b16 %v1956, %v1955
      %v1992 = vpack.c.b16 %v1958, %v1957
      %v1993 = vpack.c.b16 %v1960, %v1959
      %v1994 = vpack.c.b16 %v1962, %v1961
      %v1995 = vpack.c.b16 %v1964, %v1963
      %v1996 = vpack.c.b16 %v1966, %v1965
      %v1997 = vpack.c.b16 %v1968, %v1967
      %v1998 = vpack.c.b16 %v1970, %v1969
      %v1999 = vpack.c.b16 %v1972, %v1971
      %v2000 = vpack.c.b16 %v1974, %v1973
      %v2001 = vpack.c.b16 %v1976, %v1975
      %v2002 = vpack.c.b16 %v1978, %v1977
      %2027 = vmatprep.subr.bf16.mxu0 0
      %2028 = vmatpush1.bf16.msra.mxu0 %v1986
      %2029 = vmatprep.subr.bf16.mxu0 0
      %2030 = vmatpush1.bf16.msra.mxu0 %v1985
      %2031 = vmatprep.subr.bf16.mxu0 0
      %2032 = vmatpush1.bf16.msra.mxu0 %v1984
      %2033 = vmatprep.subr.bf16.mxu0 0
      %2034 = vmatpush1.bf16.msra.mxu0 %v1983
      %2035 = vmatprep.subr.bf16.mxu0 0
      %2036 = vmatpush1.bf16.msra.mxu0 %v1982
      %2037 = vmatprep.subr.bf16.mxu0 0
      %2038 = vmatpush1.bf16.msra.mxu0 %v1981
      %2039 = vmatprep.subr.bf16.mxu0 0
      %2040 = vmatpush1.bf16.msra.mxu0 %v1980
      %2041 = vmatprep.subr.bf16.mxu0 0
      %2042 = vmatpush1.bf16.msra.mxu0 %v1979
      %2043 = vmatprep.subr.bf16.mxu0 0
      %2044 = vmatpush2.bf16.msra.mxu0 %v1994
      %2045 = vmatprep.subr.bf16.mxu0 0
      %2046 = vmatpush2.bf16.msra.mxu0 %v1993
      %2047 = vmatprep.subr.bf16.mxu0 0
      %2048 = vmatpush2.bf16.msra.mxu0 %v1992
      %2049 = vmatprep.subr.bf16.mxu0 0
      %2050 = vmatpush2.bf16.msra.mxu0 %v1991
      %2051 = vmatprep.subr.bf16.mxu0 0
      %2052 = vmatpush2.bf16.msra.mxu0 %v1990
      %2053 = vmatprep.subr.bf16.mxu0 0
      %2054 = vmatpush2.bf16.msra.mxu0 %v1989
      %2055 = vmatprep.subr.bf16.mxu0 0
      %2056 = vmatpush2.bf16.msra.mxu0 %v1988
      %2057 = vmatprep.subr.bf16.mxu0 0
      %2058 = vmatpush2.bf16.msra.mxu0 %v1987
      %2059 = vmatprep.mubr.bf16.mxu0 %v1072
      %2060 = vmatmul.mubr.bf16.gmra.mxu0 %v1063
      %v2061 = vpop.f32.mrf.mxu0
      %v2062 = vadd.f32 0.0, %v2061
      %v2063 = vpop.f32.mrf.mxu0
      %v2064 = vpop.f32.mrf.mxu0
      %v2065 = vadd.f32 0.0, %v2064
      %v2066 = vpop.f32.mrf.mxu0
      %2067 = vmatprep.mubr.bf16.mxu0 %v1115
      %2068 = vmatmul.mubr.bf16.gmra.mxu0 %v1106
      %v2069 = vpop.f32.mrf.mxu0
      %v2070 = vadd.f32 0.0, %v2069
      %v2071 = vpop.f32.mrf.mxu0
      %v2072 = vpop.f32.mrf.mxu0
      %v2073 = vadd.f32 0.0, %v2072
      %v2074 = vpop.f32.mrf.mxu0
      %2075 = vmatprep.mubr.bf16.mxu0 %v1158
      %2076 = vmatmul.mubr.bf16.gmra.mxu0 %v1149
      %v2077 = vpop.f32.mrf.mxu0
      %v2078 = vadd.f32 0.0, %v2077
      %v2079 = vpop.f32.mrf.mxu0
      %v2080 = vpop.f32.mrf.mxu0
      %v2081 = vadd.f32 0.0, %v2080
      %v2082 = vpop.f32.mrf.mxu0
      %2083 = vmatprep.mubr.bf16.mxu0 %v1201
      %2084 = vmatmul.mubr.bf16.gmra.mxu0 %v1192
      %v2085 = vpop.f32.mrf.mxu0
      %v2086 = vadd.f32 0.0, %v2085
      %v2087 = vpop.f32.mrf.mxu0
      %v2088 = vpop.f32.mrf.mxu0
      %v2089 = vadd.f32 0.0, %v2088
      %v2090 = vpop.f32.mrf.mxu0
      %2091 = vmatprep.mubr.bf16.mxu0 %v1244
      %2092 = vmatmul.mubr.bf16.gmra.mxu0 %v1235
      %v2093 = vpop.f32.mrf.mxu0
      %v2094 = vadd.f32 0.0, %v2093
      %v2095 = vpop.f32.mrf.mxu0
      %v2096 = vpop.f32.mrf.mxu0
      %v2097 = vadd.f32 0.0, %v2096
      %v2098 = vpop.f32.mrf.mxu0
      %2099 = vmatprep.mubr.bf16.mxu0 %v1287
      %2100 = vmatmul.mubr.bf16.gmra.mxu0 %v1278
      %v2101 = vpop.f32.mrf.mxu0
      %v2102 = vadd.f32 0.0, %v2101
      %v2103 = vpop.f32.mrf.mxu0
      %v2104 = vpop.f32.mrf.mxu0
      %v2105 = vadd.f32 0.0, %v2104
      %v2106 = vpop.f32.mrf.mxu0
      %2107 = vmatprep.mubr.bf16.mxu0 %v1330
      %2108 = vmatmul.mubr.bf16.gmra.mxu0 %v1321
      %v2109 = vpop.f32.mrf.mxu0
      %v2110 = vadd.f32 0.0, %v2109
      %v2111 = vpop.f32.mrf.mxu0
      %v2112 = vpop.f32.mrf.mxu0
      %v2113 = vadd.f32 0.0, %v2112
      %v2114 = vpop.f32.mrf.mxu0
      %2115 = vmatprep.mubr.bf16.mxu0 %v1373
      %2116 = vmatmul.mubr.bf16.gmra.mxu0 %v1364
      %v2117 = vpop.f32.mrf.mxu0
      %v2118 = vadd.f32 0.0, %v2117
      %v2119 = vpop.f32.mrf.mxu0
      %v2120 = vpop.f32.mrf.mxu0
      %v2121 = vadd.f32 0.0, %v2120
      %v2122 = vpop.f32.mrf.mxu0
      %2123 = vmatprep.mubr.bf16.mxu0 %v1416
      %2124 = vmatmul.mubr.bf16.gmra.mxu0 %v1407
      %v2125 = vpop.f32.mrf.mxu0
      %v2126 = vadd.f32 0.0, %v2125
      %v2127 = vpop.f32.mrf.mxu0
      %v2128 = vpop.f32.mrf.mxu0
      %v2129 = vadd.f32 0.0, %v2128
      %v2130 = vpop.f32.mrf.mxu0
      %2131 = vmatprep.mubr.bf16.mxu0 %v1459
      %2132 = vmatmul.mubr.bf16.gmra.mxu0 %v1450
      %v2133 = vpop.f32.mrf.mxu0
      %v2134 = vadd.f32 0.0, %v2133
      %v2135 = vpop.f32.mrf.mxu0
      %v2136 = vpop.f32.mrf.mxu0
      %v2137 = vadd.f32 0.0, %v2136
      %v2138 = vpop.f32.mrf.mxu0
      %2139 = vmatprep.mubr.bf16.mxu0 %v1502
      %2140 = vmatmul.mubr.bf16.gmra.mxu0 %v1493
      %v2141 = vpop.f32.mrf.mxu0
      %v2142 = vadd.f32 0.0, %v2141
      %v2143 = vpop.f32.mrf.mxu0
      %v2144 = vpop.f32.mrf.mxu0
      %v2145 = vadd.f32 0.0, %v2144
      %v2146 = vpop.f32.mrf.mxu0
      %2147 = vmatprep.mubr.bf16.mxu0 %v1545
      %2148 = vmatmul.mubr.bf16.gmra.mxu0 %v1536
      %v2149 = vpop.f32.mrf.mxu0
      %v2150 = vadd.f32 0.0, %v2149
      %v2151 = vpop.f32.mrf.mxu0
      %v2152 = vpop.f32.mrf.mxu0
      %v2153 = vadd.f32 0.0, %v2152
      %v2154 = vpop.f32.mrf.mxu0
      %2155 = vmatprep.mubr.bf16.mxu0 %v1588
      %2156 = vmatmul.mubr.bf16.gmra.mxu0 %v1579
      %v2157 = vpop.f32.mrf.mxu0
      %v2158 = vadd.f32 0.0, %v2157
      %v2159 = vpop.f32.mrf.mxu0
      %v2160 = vpop.f32.mrf.mxu0
      %v2161 = vadd.f32 0.0, %v2160
      %v2162 = vpop.f32.mrf.mxu0
      %2163 = vmatprep.mubr.bf16.mxu0 %v1631
      %2164 = vmatmul.mubr.bf16.gmra.mxu0 %v1622
      %v2165 = vpop.f32.mrf.mxu0
      %v2166 = vadd.f32 0.0, %v2165
      %v2167 = vpop.f32.mrf.mxu0
      %v2168 = vpop.f32.mrf.mxu0
      %v2169 = vadd.f32 0.0, %v2168
      %v2170 = vpop.f32.mrf.mxu0
      %2171 = vmatprep.mubr.bf16.mxu0 %v1674
      %2172 = vmatmul.mubr.bf16.gmra.mxu0 %v1665
      %v2173 = vpop.f32.mrf.mxu0
      %v2174 = vadd.f32 0.0, %v2173
      %v2175 = vpop.f32.mrf.mxu0
      %v2176 = vpop.f32.mrf.mxu0
      %v2177 = vadd.f32 0.0, %v2176
      %v2178 = vpop.f32.mrf.mxu0
      %2179 = vmatprep.mubr.bf16.mxu0 %v1813
      %2180 = vmatmul.mubr.bf16.gmra.mxu0 %v1804
      %v2181 = vpop.f32.mrf.mxu0
      %v2182 = vadd.f32 0.0, %v2181
      %v2183 = vpop.f32.mrf.mxu0
      %v2184 = vpop.f32.mrf.mxu0
      %v2185 = vadd.f32 0.0, %v2184
      %v2186 = vpop.f32.mrf.mxu0
      %2187 = vdwg.mxu0
      %2188 = vmatprep.subr.bf16.mxu0 0
      %2189 = vmatpush1.bf16.msra.mxu0 %v2002
      %2190 = vmatprep.subr.bf16.mxu0 0
      %2191 = vmatpush1.bf16.msra.mxu0 %v2001
      %2192 = vmatprep.subr.bf16.mxu0 0
      %2193 = vmatpush1.bf16.msra.mxu0 %v2000
      %2194 = vmatprep.subr.bf16.mxu0 0
      %2195 = vmatpush1.bf16.msra.mxu0 %v1999
      %2196 = vmatprep.subr.bf16.mxu0 0
      %2197 = vmatpush1.bf16.msra.mxu0 %v1998
      %2198 = vmatprep.subr.bf16.mxu0 0
      %2199 = vmatpush1.bf16.msra.mxu0 %v1997
      %2200 = vmatprep.subr.bf16.mxu0 0
      %2201 = vmatpush1.bf16.msra.mxu0 %v1996
      %2202 = vmatprep.subr.bf16.mxu0 0
      %2203 = vmatpush1.bf16.msra.mxu0 %v1995
      %2204 = vmatprep.subr.bf16.mxu0 0
      %2205 = vmatpush2.bf16.msra.mxu0 0
      %2206 = vmatprep.subr.bf16.mxu0 0
      %2207 = vmatpush2.bf16.msra.mxu0 0
      %2208 = vmatprep.subr.bf16.mxu0 0
      %2209 = vmatpush2.bf16.msra.mxu0 0
      %2210 = vmatprep.subr.bf16.mxu0 0
      %2211 = vmatpush2.bf16.msra.mxu0 0
      %2212 = vmatprep.subr.bf16.mxu0 0
      %2213 = vmatpush2.bf16.msra.mxu0 0
      %2214 = vmatprep.subr.bf16.mxu0 0
      %2215 = vmatpush2.bf16.msra.mxu0 0
      %2216 = vmatprep.subr.bf16.mxu0 0
      %2217 = vmatpush2.bf16.msra.mxu0 0
      %2218 = vmatprep.subr.bf16.mxu0 0
      %2219 = vmatpush2.bf16.msra.mxu0 0
      %2220 = vmatprep.mubr.bf16.mxu0 0
      %2221 = vmatmul.mubr.bf16.gmra.mxu0 %v1089
      %v2222 = vpop.f32.mrf.mxu0
      %v2223 = vadd.f32 %v2062, %v2222
      %v2224 = vpop.f32.mrf.mxu0
      %v2225 = vpop.f32.mrf.mxu0
      %v2226 = vadd.f32 %v2065, %v2225
      %v2227 = vpop.f32.mrf.mxu0
      %2228 = vmatprep.mubr.bf16.mxu0 0
      %2229 = vmatmul.mubr.bf16.gmra.mxu0 %v1132
      %v2230 = vpop.f32.mrf.mxu0
      %v2231 = vadd.f32 %v2070, %v2230
      %v2232 = vpop.f32.mrf.mxu0
      %v2233 = vpop.f32.mrf.mxu0
      %v2234 = vadd.f32 %v2073, %v2233
      %v2235 = vpop.f32.mrf.mxu0
      %2236 = vmatprep.mubr.bf16.mxu0 0
      %2237 = vmatmul.mubr.bf16.gmra.mxu0 %v1175
      %v2238 = vpop.f32.mrf.mxu0
      %v2239 = vadd.f32 %v2078, %v2238
      %v2240 = vpop.f32.mrf.mxu0
      %v2241 = vpop.f32.mrf.mxu0
      %v2242 = vadd.f32 %v2081, %v2241
      %v2243 = vpop.f32.mrf.mxu0
      %2244 = vmatprep.mubr.bf16.mxu0 0
      %2245 = vmatmul.mubr.bf16.gmra.mxu0 %v1218
      %v2246 = vpop.f32.mrf.mxu0
      %v2247 = vadd.f32 %v2086, %v2246
      %v2248 = vpop.f32.mrf.mxu0
      %v2249 = vpop.f32.mrf.mxu0
      %v2250 = vadd.f32 %v2089, %v2249
      %v2251 = vpop.f32.mrf.mxu0
      %2252 = vmatprep.mubr.bf16.mxu0 0
      %2253 = vmatmul.mubr.bf16.gmra.mxu0 %v1261
      %v2254 = vpop.f32.mrf.mxu0
      %v2255 = vadd.f32 %v2094, %v2254
      %v2256 = vpop.f32.mrf.mxu0
      %v2257 = vpop.f32.mrf.mxu0
      %v2258 = vadd.f32 %v2097, %v2257
      %v2259 = vpop.f32.mrf.mxu0
      %2260 = vmatprep.mubr.bf16.mxu0 0
      %2261 = vmatmul.mubr.bf16.gmra.mxu0 %v1304
      %v2262 = vpop.f32.mrf.mxu0
      %v2263 = vadd.f32 %v2102, %v2262
      %v2264 = vpop.f32.mrf.mxu0
      %v2265 = vpop.f32.mrf.mxu0
      %v2266 = vadd.f32 %v2105, %v2265
      %v2267 = vpop.f32.mrf.mxu0
      %2268 = vmatprep.mubr.bf16.mxu0 0
      %2269 = vmatmul.mubr.bf16.gmra.mxu0 %v1347
      %v2270 = vpop.f32.mrf.mxu0
      %v2271 = vadd.f32 %v2110, %v2270
      %v2272 = vpop.f32.mrf.mxu0
      %v2273 = vpop.f32.mrf.mxu0
      %v2274 = vadd.f32 %v2113, %v2273
      %v2275 = vpop.f32.mrf.mxu0
      %2276 = vmatprep.mubr.bf16.mxu0 0
      %2277 = vmatmul.mubr.bf16.gmra.mxu0 %v1390
      %v2278 = vpop.f32.mrf.mxu0
      %v2279 = vadd.f32 %v2118, %v2278
      %v2280 = vpop.f32.mrf.mxu0
      %v2281 = vpop.f32.mrf.mxu0
      %v2282 = vadd.f32 %v2121, %v2281
      %v2283 = vpop.f32.mrf.mxu0
      %2284 = vmatprep.mubr.bf16.mxu0 0
      %2285 = vmatmul.mubr.bf16.gmra.mxu0 %v1433
      %v2286 = vpop.f32.mrf.mxu0
      %v2287 = vadd.f32 %v2126, %v2286
      %v2288 = vpop.f32.mrf.mxu0
      %v2289 = vpop.f32.mrf.mxu0
      %v2290 = vadd.f32 %v2129, %v2289
      %v2291 = vpop.f32.mrf.mxu0
      %2292 = vmatprep.mubr.bf16.mxu0 0
      %2293 = vmatmul.mubr.bf16.gmra.mxu0 %v1476
      %v2294 = vpop.f32.mrf.mxu0
      %v2295 = vadd.f32 %v2134, %v2294
      %v2296 = vpop.f32.mrf.mxu0
      %v2297 = vpop.f32.mrf.mxu0
      %v2298 = vadd.f32 %v2137, %v2297
      %v2299 = vpop.f32.mrf.mxu0
      %2300 = vmatprep.mubr.bf16.mxu0 0
      %2301 = vmatmul.mubr.bf16.gmra.mxu0 %v1519
      %v2302 = vpop.f32.mrf.mxu0
      %v2303 = vadd.f32 %v2142, %v2302
      %v2304 = vpop.f32.mrf.mxu0
      %v2305 = vpop.f32.mrf.mxu0
      %v2306 = vadd.f32 %v2145, %v2305
      %v2307 = vpop.f32.mrf.mxu0
      %2308 = vmatprep.mubr.bf16.mxu0 0
      %2309 = vmatmul.mubr.bf16.gmra.mxu0 %v1562
      %v2310 = vpop.f32.mrf.mxu0
      %v2311 = vadd.f32 %v2150, %v2310
      %v2312 = vpop.f32.mrf.mxu0
      %v2313 = vpop.f32.mrf.mxu0
      %v2314 = vadd.f32 %v2153, %v2313
      %v2315 = vpop.f32.mrf.mxu0
      %2316 = vmatprep.mubr.bf16.mxu0 0
      %2317 = vmatmul.mubr.bf16.gmra.mxu0 %v1605
      %v2318 = vpop.f32.mrf.mxu0
      %v2319 = vadd.f32 %v2158, %v2318
      %v2320 = vpop.f32.mrf.mxu0
      %v2321 = vpop.f32.mrf.mxu0
      %v2322 = vadd.f32 %v2161, %v2321
      %v2323 = vpop.f32.mrf.mxu0
      %2324 = vmatprep.mubr.bf16.mxu0 0
      %2325 = vmatmul.mubr.bf16.gmra.mxu0 %v1648
      %v2326 = vpop.f32.mrf.mxu0
      %v2327 = vadd.f32 %v2166, %v2326
      %v2328 = vpop.f32.mrf.mxu0
      %v2329 = vpop.f32.mrf.mxu0
      %v2330 = vadd.f32 %v2169, %v2329
      %v2331 = vpop.f32.mrf.mxu0
      %2332 = vmatprep.mubr.bf16.mxu0 0
      %2333 = vmatmul.mubr.bf16.gmra.mxu0 %v1691
      %v2334 = vpop.f32.mrf.mxu0
      %v2335 = vadd.f32 %v2174, %v2334
      %v2336 = vpop.f32.mrf.mxu0
      %v2337 = vpop.f32.mrf.mxu0
      %v2338 = vadd.f32 %v2177, %v2337
      %v2339 = vpop.f32.mrf.mxu0
      %2340 = vmatprep.mubr.bf16.mxu0 0
      %2341 = vmatmul.mubr.bf16.gmra.mxu0 %v1830
      %v2342 = vpop.f32.mrf.mxu0
      %v2343 = vadd.f32 %v2182, %v2342
      %v2344 = vpop.f32.mrf.mxu0
      %v2345 = vpop.f32.mrf.mxu0
      %v2346 = vadd.f32 %v2185, %v2345
      %v2347 = vpop.f32.mrf.mxu0
      %2348 = vdwg.mxu0
      %v2397 = vunpack.c.l.b16 %v1740
      %v2398 = vunpack.c.l.b16 %v1741
      %v2399 = vunpack.c.l.b16 %v1742
      %v2400 = vunpack.c.l.b16 %v1743
      %v2401 = vunpack.c.l.b16 %v1744
      %v2402 = vunpack.c.l.b16 %v1745
      %v2403 = vunpack.c.l.b16 %v1746
      %v2404 = vunpack.c.l.b16 %v1747
      %v2405 = vunpack.c.l.b16 %v1748
      %v2406 = vunpack.c.l.b16 %v1749
      %v2407 = vunpack.c.l.b16 %v1750
      %v2408 = vunpack.c.l.b16 %v1751
      %v2409 = vunpack.c.l.b16 %v1752
      %v2410 = vunpack.c.l.b16 %v1753
      %v2411 = vunpack.c.l.b16 %v1754
      %v2412 = vunpack.c.l.b16 %v1755
      %v2413 = vunpack.c.l.b16 %v1756
      %v2414 = vunpack.c.l.b16 %v1757
      %v2415 = vunpack.c.l.b16 %v1758
      %v2416 = vunpack.c.l.b16 %v1759
      %v2417 = vunpack.c.l.b16 %v1760
      %v2418 = vunpack.c.l.b16 %v1761
      %v2419 = vunpack.c.l.b16 %v1762
      %v2420 = vunpack.c.l.b16 %v1763
      %v2421 = vunpack.c.l.b16 %v1764
      %v2422 = vunpack.c.l.b16 %v1765
      %v2423 = vunpack.c.l.b16 %v1766
      %v2424 = vunpack.c.l.b16 %v1767
      %v2425 = vunpack.c.l.b16 %v1768
      %v2426 = vunpack.c.l.b16 %v1769
      %v2427 = vunpack.c.l.b16 %v1770
      %v2428 = vunpack.c.l.b16 %v1771
      %v2429 = vunpack.c.l.b16 %v1772
      %v2430 = vunpack.c.l.b16 %v1773
      %v2431 = vunpack.c.l.b16 %v1774
      %v2432 = vunpack.c.l.b16 %v1775
      %v2433 = vunpack.c.l.b16 %v1776
      %v2434 = vunpack.c.l.b16 %v1777
      %v2435 = vunpack.c.l.b16 %v1778
      %v2436 = vunpack.c.l.b16 %v1779
      %v2437 = vunpack.c.l.b16 %v1780
      %v2438 = vunpack.c.l.b16 %v1781
      %v2439 = vunpack.c.l.b16 %v1782
      %v2440 = vunpack.c.l.b16 %v1783
      %v2441 = vunpack.c.l.b16 %v1784
      %v2442 = vunpack.c.l.b16 %v1785
      %v2443 = vunpack.c.l.b16 %v1786
      %v2444 = vunpack.c.l.b16 %v1787
      %v2445 = vpack.c.b16 %v2398, %v2397
      %v2446 = vpack.c.b16 %v2400, %v2399
      %v2447 = vpack.c.b16 %v2402, %v2401
      %v2448 = vpack.c.b16 %v2404, %v2403
      %v2449 = vpack.c.b16 %v2406, %v2405
      %v2450 = vpack.c.b16 %v2408, %v2407
      %v2451 = vpack.c.b16 %v2410, %v2409
      %v2452 = vpack.c.b16 %v2412, %v2411
      %v2453 = vpack.c.b16 %v2414, %v2413
      %v2454 = vpack.c.b16 %v2416, %v2415
      %v2455 = vpack.c.b16 %v2418, %v2417
      %v2456 = vpack.c.b16 %v2420, %v2419
      %v2457 = vpack.c.b16 %v2422, %v2421
      %v2458 = vpack.c.b16 %v2424, %v2423
      %v2459 = vpack.c.b16 %v2426, %v2425
      %v2460 = vpack.c.b16 %v2428, %v2427
      %v2461 = vpack.c.b16 %v2430, %v2429
      %v2462 = vpack.c.b16 %v2432, %v2431
      %v2463 = vpack.c.b16 %v2434, %v2433
      %v2464 = vpack.c.b16 %v2436, %v2435
      %v2465 = vpack.c.b16 %v2438, %v2437
      %v2466 = vpack.c.b16 %v2440, %v2439
      %v2467 = vpack.c.b16 %v2442, %v2441
      %v2468 = vpack.c.b16 %v2444, %v2443
      %2493 = vmatprep.subr.bf16.mxu0 0
      %2494 = vmatpush1.bf16.msra.mxu0 %v2452
      %2495 = vmatprep.subr.bf16.mxu0 0
      %2496 = vmatpush1.bf16.msra.mxu0 %v2451
      %2497 = vmatprep.subr.bf16.mxu0 0
      %2498 = vmatpush1.bf16.msra.mxu0 %v2450
      %2499 = vmatprep.subr.bf16.mxu0 0
      %2500 = vmatpush1.bf16.msra.mxu0 %v2449
      %2501 = vmatprep.subr.bf16.mxu0 0
      %2502 = vmatpush1.bf16.msra.mxu0 %v2448
      %2503 = vmatprep.subr.bf16.mxu0 0
      %2504 = vmatpush1.bf16.msra.mxu0 %v2447
      %2505 = vmatprep.subr.bf16.mxu0 0
      %2506 = vmatpush1.bf16.msra.mxu0 %v2446
      %2507 = vmatprep.subr.bf16.mxu0 0
      %2508 = vmatpush1.bf16.msra.mxu0 %v2445
      %2509 = vmatprep.subr.bf16.mxu0 0
      %2510 = vmatpush2.bf16.msra.mxu0 %v2460
      %2511 = vmatprep.subr.bf16.mxu0 0
      %2512 = vmatpush2.bf16.msra.mxu0 %v2459
      %2513 = vmatprep.subr.bf16.mxu0 0
      %2514 = vmatpush2.bf16.msra.mxu0 %v2458
      %2515 = vmatprep.subr.bf16.mxu0 0
      %2516 = vmatpush2.bf16.msra.mxu0 %v2457
      %2517 = vmatprep.subr.bf16.mxu0 0
      %2518 = vmatpush2.bf16.msra.mxu0 %v2456
      %2519 = vmatprep.subr.bf16.mxu0 0
      %2520 = vmatpush2.bf16.msra.mxu0 %v2455
      %2521 = vmatprep.subr.bf16.mxu0 0
      %2522 = vmatpush2.bf16.msra.mxu0 %v2454
      %2523 = vmatprep.subr.bf16.mxu0 0
      %2524 = vmatpush2.bf16.msra.mxu0 %v2453
      %2525 = vmatprep.mubr.bf16.mxu0 %v1029
      %2526 = vmatmul.mubr.bf16.gmra.mxu0 %v1020
      %v2527 = vpop.f32.mrf.mxu0
      %v2528 = vadd.f32 %v2223, %v2527
      %v2529 = vpop.f32.mrf.mxu0
      %v2530 = vpop.f32.mrf.mxu0
      %v2531 = vadd.f32 %v2226, %v2530
      %v2532 = vpop.f32.mrf.mxu0
      %2533 = vmatprep.mubr.bf16.mxu0 %v1072
      %2534 = vmatmul.mubr.bf16.gmra.mxu0 %v1063
      %v2535 = vpop.f32.mrf.mxu0
      %v2536 = vadd.f32 %v2231, %v2535
      %v2537 = vpop.f32.mrf.mxu0
      %v2538 = vpop.f32.mrf.mxu0
      %v2539 = vadd.f32 %v2234, %v2538
      %v2540 = vpop.f32.mrf.mxu0
      %2541 = vmatprep.mubr.bf16.mxu0 %v1115
      %2542 = vmatmul.mubr.bf16.gmra.mxu0 %v1106
      %v2543 = vpop.f32.mrf.mxu0
      %v2544 = vadd.f32 %v2239, %v2543
      %v2545 = vpop.f32.mrf.mxu0
      %v2546 = vpop.f32.mrf.mxu0
      %v2547 = vadd.f32 %v2242, %v2546
      %v2548 = vpop.f32.mrf.mxu0
      %2549 = vmatprep.mubr.bf16.mxu0 %v1158
      %2550 = vmatmul.mubr.bf16.gmra.mxu0 %v1149
      %v2551 = vpop.f32.mrf.mxu0
      %v2552 = vadd.f32 %v2247, %v2551
      %v2553 = vpop.f32.mrf.mxu0
      %v2554 = vpop.f32.mrf.mxu0
      %v2555 = vadd.f32 %v2250, %v2554
      %v2556 = vpop.f32.mrf.mxu0
      %2557 = vmatprep.mubr.bf16.mxu0 %v1201
      %2558 = vmatmul.mubr.bf16.gmra.mxu0 %v1192
      %v2559 = vpop.f32.mrf.mxu0
      %v2560 = vadd.f32 %v2255, %v2559
      %v2561 = vpop.f32.mrf.mxu0
      %v2562 = vpop.f32.mrf.mxu0
      %v2563 = vadd.f32 %v2258, %v2562
      %v2564 = vpop.f32.mrf.mxu0
      %2565 = vmatprep.mubr.bf16.mxu0 %v1244
      %2566 = vmatmul.mubr.bf16.gmra.mxu0 %v1235
      %v2567 = vpop.f32.mrf.mxu0
      %v2568 = vadd.f32 %v2263, %v2567
      %v2569 = vpop.f32.mrf.mxu0
      %v2570 = vpop.f32.mrf.mxu0
      %v2571 = vadd.f32 %v2266, %v2570
      %v2572 = vpop.f32.mrf.mxu0
      %2573 = vmatprep.mubr.bf16.mxu0 %v1287
      %2574 = vmatmul.mubr.bf16.gmra.mxu0 %v1278
      %v2575 = vpop.f32.mrf.mxu0
      %v2576 = vadd.f32 %v2271, %v2575
      %v2577 = vpop.f32.mrf.mxu0
      %v2578 = vpop.f32.mrf.mxu0
      %v2579 = vadd.f32 %v2274, %v2578
      %v2580 = vpop.f32.mrf.mxu0
      %2581 = vmatprep.mubr.bf16.mxu0 %v1330
      %2582 = vmatmul.mubr.bf16.gmra.mxu0 %v1321
      %v2583 = vpop.f32.mrf.mxu0
      %v2584 = vadd.f32 %v2279, %v2583
      %v2585 = vpop.f32.mrf.mxu0
      %v2586 = vpop.f32.mrf.mxu0
      %v2587 = vadd.f32 %v2282, %v2586
      %v2588 = vpop.f32.mrf.mxu0
      %2589 = vmatprep.mubr.bf16.mxu0 %v1373
      %2590 = vmatmul.mubr.bf16.gmra.mxu0 %v1364
      %v2591 = vpop.f32.mrf.mxu0
      %v2592 = vadd.f32 %v2287, %v2591
      %v2593 = vpop.f32.mrf.mxu0
      %v2594 = vpop.f32.mrf.mxu0
      %v2595 = vadd.f32 %v2290, %v2594
      %v2596 = vpop.f32.mrf.mxu0
      %2597 = vmatprep.mubr.bf16.mxu0 %v1416
      %2598 = vmatmul.mubr.bf16.gmra.mxu0 %v1407
      %v2599 = vpop.f32.mrf.mxu0
      %v2600 = vadd.f32 %v2295, %v2599
      %v2601 = vpop.f32.mrf.mxu0
      %v2602 = vpop.f32.mrf.mxu0
      %v2603 = vadd.f32 %v2298, %v2602
      %v2604 = vpop.f32.mrf.mxu0
      %2605 = vmatprep.mubr.bf16.mxu0 %v1459
      %2606 = vmatmul.mubr.bf16.gmra.mxu0 %v1450
      %v2607 = vpop.f32.mrf.mxu0
      %v2608 = vadd.f32 %v2303, %v2607
      %v2609 = vpop.f32.mrf.mxu0
      %v2610 = vpop.f32.mrf.mxu0
      %v2611 = vadd.f32 %v2306, %v2610
      %v2612 = vpop.f32.mrf.mxu0
      %2613 = vmatprep.mubr.bf16.mxu0 %v1502
      %2614 = vmatmul.mubr.bf16.gmra.mxu0 %v1493
      %v2615 = vpop.f32.mrf.mxu0
      %v2616 = vadd.f32 %v2311, %v2615
      %v2617 = vpop.f32.mrf.mxu0
      %v2618 = vpop.f32.mrf.mxu0
      %v2619 = vadd.f32 %v2314, %v2618
      %v2620 = vpop.f32.mrf.mxu0
      %2621 = vmatprep.mubr.bf16.mxu0 %v1545
      %2622 = vmatmul.mubr.bf16.gmra.mxu0 %v1536
      %v2623 = vpop.f32.mrf.mxu0
      %v2624 = vadd.f32 %v2319, %v2623
      %v2625 = vpop.f32.mrf.mxu0
      %v2626 = vpop.f32.mrf.mxu0
      %v2627 = vadd.f32 %v2322, %v2626
      %v2628 = vpop.f32.mrf.mxu0
      %2629 = vmatprep.mubr.bf16.mxu0 %v1588
      %2630 = vmatmul.mubr.bf16.gmra.mxu0 %v1579
      %v2631 = vpop.f32.mrf.mxu0
      %v2632 = vadd.f32 %v2327, %v2631
      %v2633 = vpop.f32.mrf.mxu0
      %v2634 = vpop.f32.mrf.mxu0
      %v2635 = vadd.f32 %v2330, %v2634
      %v2636 = vpop.f32.mrf.mxu0
      %2637 = vmatprep.mubr.bf16.mxu0 %v1631
      %2638 = vmatmul.mubr.bf16.gmra.mxu0 %v1622
      %v2639 = vpop.f32.mrf.mxu0
      %v2640 = vadd.f32 %v2335, %v2639
      %v2641 = vpop.f32.mrf.mxu0
      %v2642 = vpop.f32.mrf.mxu0
      %v2643 = vadd.f32 %v2338, %v2642
      %v2644 = vpop.f32.mrf.mxu0
      %2645 = vmatprep.mubr.bf16.mxu0 %v1674
      %2646 = vmatmul.mubr.bf16.gmra.mxu0 %v1665
      %v2647 = vpop.f32.mrf.mxu0
      %v2648 = vadd.f32 %v2343, %v2647
      %v2649 = vpop.f32.mrf.mxu0
      %v2650 = vpop.f32.mrf.mxu0
      %v2651 = vadd.f32 %v2346, %v2650
      %v2652 = vpop.f32.mrf.mxu0
      %2653 = vdwg.mxu0
      %2654 = vmatprep.subr.bf16.mxu0 0
      %2655 = vmatpush1.bf16.msra.mxu0 %v2468
      %2656 = vmatprep.subr.bf16.mxu0 0
      %2657 = vmatpush1.bf16.msra.mxu0 %v2467
      %2658 = vmatprep.subr.bf16.mxu0 0
      %2659 = vmatpush1.bf16.msra.mxu0 %v2466
      %2660 = vmatprep.subr.bf16.mxu0 0
      %2661 = vmatpush1.bf16.msra.mxu0 %v2465
      %2662 = vmatprep.subr.bf16.mxu0 0
      %2663 = vmatpush1.bf16.msra.mxu0 %v2464
      %2664 = vmatprep.subr.bf16.mxu0 0
      %2665 = vmatpush1.bf16.msra.mxu0 %v2463
      %2666 = vmatprep.subr.bf16.mxu0 0
      %2667 = vmatpush1.bf16.msra.mxu0 %v2462
      %2668 = vmatprep.subr.bf16.mxu0 0
      %2669 = vmatpush1.bf16.msra.mxu0 %v2461
      %2670 = vmatprep.subr.bf16.mxu0 0
      %2671 = vmatpush2.bf16.msra.mxu0 0
      %2672 = vmatprep.subr.bf16.mxu0 0
      %2673 = vmatpush2.bf16.msra.mxu0 0
      %2674 = vmatprep.subr.bf16.mxu0 0
      %2675 = vmatpush2.bf16.msra.mxu0 0
      %2676 = vmatprep.subr.bf16.mxu0 0
      %2677 = vmatpush2.bf16.msra.mxu0 0
      %2678 = vmatprep.subr.bf16.mxu0 0
      %2679 = vmatpush2.bf16.msra.mxu0 0
      %2680 = vmatprep.subr.bf16.mxu0 0
      %2681 = vmatpush2.bf16.msra.mxu0 0
      %2682 = vmatprep.subr.bf16.mxu0 0
      %2683 = vmatpush2.bf16.msra.mxu0 0
      %2684 = vmatprep.subr.bf16.mxu0 0
      %2685 = vmatpush2.bf16.msra.mxu0 0
      %2686 = vmatprep.mubr.bf16.mxu0 0
      %2687 = vmatmul.mubr.bf16.gmra.mxu0 %v1046
      %v2688 = vpop.f32.mrf.mxu0
      %v2689 = vadd.f32 %v2528, %v2688
      %v2690 = vpop.f32.mrf.mxu0
      %v2691 = vpop.f32.mrf.mxu0
      %v2692 = vadd.f32 %v2531, %v2691
      %v2693 = vpop.f32.mrf.mxu0
      %2694 = vmatprep.mubr.bf16.mxu0 0
      %2695 = vmatmul.mubr.bf16.gmra.mxu0 %v1089
      %v2696 = vpop.f32.mrf.mxu0
      %v2697 = vadd.f32 %v2536, %v2696
      %v2698 = vpop.f32.mrf.mxu0
      %v2699 = vpop.f32.mrf.mxu0
      %v2700 = vadd.f32 %v2539, %v2699
      %v2701 = vpop.f32.mrf.mxu0
      %2702 = vmatprep.mubr.bf16.mxu0 0
      %2703 = vmatmul.mubr.bf16.gmra.mxu0 %v1132
      %v2704 = vpop.f32.mrf.mxu0
      %v2705 = vadd.f32 %v2544, %v2704
      %v2706 = vpop.f32.mrf.mxu0
      %v2707 = vpop.f32.mrf.mxu0
      %v2708 = vadd.f32 %v2547, %v2707
      %v2709 = vpop.f32.mrf.mxu0
      %2710 = vmatprep.mubr.bf16.mxu0 0
      %2711 = vmatmul.mubr.bf16.gmra.mxu0 %v1175
      %v2712 = vpop.f32.mrf.mxu0
      %v2713 = vadd.f32 %v2552, %v2712
      %v2714 = vpop.f32.mrf.mxu0
      %v2715 = vpop.f32.mrf.mxu0
      %v2716 = vadd.f32 %v2555, %v2715
      %v2717 = vpop.f32.mrf.mxu0
      %2718 = vmatprep.mubr.bf16.mxu0 0
      %2719 = vmatmul.mubr.bf16.gmra.mxu0 %v1218
      %v2720 = vpop.f32.mrf.mxu0
      %v2721 = vadd.f32 %v2560, %v2720
      %v2722 = vpop.f32.mrf.mxu0
      %v2723 = vpop.f32.mrf.mxu0
      %v2724 = vadd.f32 %v2563, %v2723
      %v2725 = vpop.f32.mrf.mxu0
      %2726 = vmatprep.mubr.bf16.mxu0 0
      %2727 = vmatmul.mubr.bf16.gmra.mxu0 %v1261
      %v2728 = vpop.f32.mrf.mxu0
      %v2729 = vadd.f32 %v2568, %v2728
      %v2730 = vpop.f32.mrf.mxu0
      %v2731 = vpop.f32.mrf.mxu0
      %v2732 = vadd.f32 %v2571, %v2731
      %v2733 = vpop.f32.mrf.mxu0
      %2734 = vmatprep.mubr.bf16.mxu0 0
      %2735 = vmatmul.mubr.bf16.gmra.mxu0 %v1304
      %v2736 = vpop.f32.mrf.mxu0
      %v2737 = vadd.f32 %v2576, %v2736
      %v2738 = vpop.f32.mrf.mxu0
      %v2739 = vpop.f32.mrf.mxu0
      %v2740 = vadd.f32 %v2579, %v2739
      %v2741 = vpop.f32.mrf.mxu0
      %2742 = vmatprep.mubr.bf16.mxu0 0
      %2743 = vmatmul.mubr.bf16.gmra.mxu0 %v1347
      %v2744 = vpop.f32.mrf.mxu0
      %v2745 = vadd.f32 %v2584, %v2744
      %v2746 = vpop.f32.mrf.mxu0
      %v2747 = vpop.f32.mrf.mxu0
      %v2748 = vadd.f32 %v2587, %v2747
      %v2749 = vpop.f32.mrf.mxu0
      %2750 = vmatprep.mubr.bf16.mxu0 0
      %2751 = vmatmul.mubr.bf16.gmra.mxu0 %v1390
      %v2752 = vpop.f32.mrf.mxu0
      %v2753 = vadd.f32 %v2592, %v2752
      %v2754 = vpop.f32.mrf.mxu0
      %v2755 = vpop.f32.mrf.mxu0
      %v2756 = vadd.f32 %v2595, %v2755
      %v2757 = vpop.f32.mrf.mxu0
      %2758 = vmatprep.mubr.bf16.mxu0 0
      %2759 = vmatmul.mubr.bf16.gmra.mxu0 %v1433
      %v2760 = vpop.f32.mrf.mxu0
      %v2761 = vadd.f32 %v2600, %v2760
      %v2762 = vpop.f32.mrf.mxu0
      %v2763 = vpop.f32.mrf.mxu0
      %v2764 = vadd.f32 %v2603, %v2763
      %v2765 = vpop.f32.mrf.mxu0
      %2766 = vmatprep.mubr.bf16.mxu0 0
      %2767 = vmatmul.mubr.bf16.gmra.mxu0 %v1476
      %v2768 = vpop.f32.mrf.mxu0
      %v2769 = vadd.f32 %v2608, %v2768
      %v2770 = vpop.f32.mrf.mxu0
      %v2771 = vpop.f32.mrf.mxu0
      %v2772 = vadd.f32 %v2611, %v2771
      %v2773 = vpop.f32.mrf.mxu0
      %2774 = vmatprep.mubr.bf16.mxu0 0
      %2775 = vmatmul.mubr.bf16.gmra.mxu0 %v1519
      %v2776 = vpop.f32.mrf.mxu0
      %v2777 = vadd.f32 %v2616, %v2776
      %v2778 = vpop.f32.mrf.mxu0
      %v2779 = vpop.f32.mrf.mxu0
      %v2780 = vadd.f32 %v2619, %v2779
      %v2781 = vpop.f32.mrf.mxu0
      %2782 = vmatprep.mubr.bf16.mxu0 0
      %2783 = vmatmul.mubr.bf16.gmra.mxu0 %v1562
      %v2784 = vpop.f32.mrf.mxu0
      %v2785 = vadd.f32 %v2624, %v2784
      %v2786 = vpop.f32.mrf.mxu0
      %v2787 = vpop.f32.mrf.mxu0
      %v2788 = vadd.f32 %v2627, %v2787
      %v2789 = vpop.f32.mrf.mxu0
      %2790 = vmatprep.mubr.bf16.mxu0 0
      %2791 = vmatmul.mubr.bf16.gmra.mxu0 %v1605
      %v2792 = vpop.f32.mrf.mxu0
      %v2793 = vadd.f32 %v2632, %v2792
      %v2794 = vpop.f32.mrf.mxu0
      %v2795 = vpop.f32.mrf.mxu0
      %v2796 = vadd.f32 %v2635, %v2795
      %v2797 = vpop.f32.mrf.mxu0
      %2798 = vmatprep.mubr.bf16.mxu0 0
      %2799 = vmatmul.mubr.bf16.gmra.mxu0 %v1648
      %v2800 = vpop.f32.mrf.mxu0
      %v2801 = vadd.f32 %v2640, %v2800
      %v2802 = vpop.f32.mrf.mxu0
      %v2803 = vpop.f32.mrf.mxu0
      %v2804 = vadd.f32 %v2643, %v2803
      %v2805 = vpop.f32.mrf.mxu0
      %2806 = vmatprep.mubr.bf16.mxu0 0
      %2807 = vmatmul.mubr.bf16.gmra.mxu0 %v1691
      %v2808 = vpop.f32.mrf.mxu0
      %v2809 = vadd.f32 %v2648, %v2808
      %v2810 = vpop.f32.mrf.mxu0
      %v2811 = vpop.f32.mrf.mxu0
      %v2812 = vadd.f32 %v2651, %v2811
      %v2813 = vpop.f32.mrf.mxu0
      %2814 = vdwg.mxu0
      %v2816 = vshrl.u32 %v730, 16
      %v2818 = vrot.slane %v2816, 3
      %v2819 = vshll.u32 %v730, 16
      %v2821 = vrot.slane %v2819, 4
      %v2822 = vor.u32 %v2818, %v2821
      %v2824 = vshrl.u32 %v731, 16
      %v2826 = vrot.slane %v2824, 3
      %v2827 = vshll.u32 %v731, 16
      %v2829 = vrot.slane %v2827, 4
      %v2830 = vor.u32 %v2826, %v2829
      %v2831 = vsel %vm1003, %v2822, %v2830
      %v2833 = vshrl.u32 %v893, 16
      %v2835 = vrot.slane %v2833, 3
      %v2836 = vshll.u32 %v893, 16
      %v2838 = vrot.slane %v2836, 4
      %v2839 = vor.u32 %v2835, %v2838
      %v2840 = vsel %vm1003, %v2839, %v2839
      %v2842 = vshrl.u32 %v1000, 16
      %v2844 = vrot.slane %v2842, 3
      %v2845 = vshll.u32 %v1000, 16
      %v2847 = vrot.slane %v2845, 4
      %v2848 = vor.u32 %v2844, %v2847
      %v2850 = vshrl.u32 %v1002, 16
      %v2852 = vrot.slane %v2850, 3
      %v2853 = vshll.u32 %v1002, 16
      %v2855 = vrot.slane %v2853, 4
      %v2856 = vor.u32 %v2852, %v2855
      %v2857 = vsel %vm1003, %v2848, %v2856
      %s2861 = scalar_lea.vmem %s1, 384
      %v2862 = vld [vmem:[%s2861] sm:$0xf]
      %v2863 = vld [vmem:[%s2861 + $0x4] sm:$0xf]
      %v2864 = vld [vmem:[%s2861 + $0x8] sm:$0xf]
      %v2865 = vld [vmem:[%s2861 + $0xc] sm:$0xf]
      %v2866 = vld [vmem:[%s2861 + $0x10] sm:$0xf]
      %v2867 = vld [vmem:[%s2861 + $0x14] sm:$0xf]
      %v2868 = vld [vmem:[%s2861 + $0x18] sm:$0xf]
      %v2869 = vld [vmem:[%s2861 + $0x1c] sm:$0xf]
      %v2870 = vld [vmem:[%s2861 + $0x20] sm:$0xf]
      %v2871 = vld [vmem:[%s2861 + $0x24] sm:$0xf]
      %v2872 = vld [vmem:[%s2861 + $0x28] sm:$0xf]
      %v2873 = vld [vmem:[%s2861 + $0x2c] sm:$0xf]
      %v2874 = vld [vmem:[%s2861 + $0x30] sm:$0xf]
      %v2875 = vld [vmem:[%s2861 + $0x34] sm:$0xf]
      %v2876 = vld [vmem:[%s2861 + $0x38] sm:$0xf]
      %v2877 = vld [vmem:[%s2861 + $0x3c] sm:$0xf]
      %v2878 = vld [vmem:[%s2861 + $0x40] sm:$0xf]
      %v2879 = vld [vmem:[%s2861 + $0x44] sm:$0xf]
      %v2880 = vld [vmem:[%s2861 + $0x48] sm:$0xf]
      %v2881 = vld [vmem:[%s2861 + $0x4c] sm:$0xf]
      %v2882 = vld [vmem:[%s2861 + $0x50] sm:$0xf]
      %v2883 = vld [vmem:[%s2861 + $0x54] sm:$0xf]
      %v2884 = vld [vmem:[%s2861 + $0x58] sm:$0xf]
      %v2885 = vld [vmem:[%s2861 + $0x5c] sm:$0xf]
      %v2886 = vld [vmem:[%s2861 + $0x60] sm:$0xf]
      %v2887 = vld [vmem:[%s2861 + $0x64] sm:$0xf]
      %v2888 = vld [vmem:[%s2861 + $0x68] sm:$0xf]
      %v2889 = vld [vmem:[%s2861 + $0x6c] sm:$0xf]
      %v2890 = vld [vmem:[%s2861 + $0x70] sm:$0xf]
      %v2891 = vld [vmem:[%s2861 + $0x74] sm:$0xf]
      %v2892 = vld [vmem:[%s2861 + $0x78] sm:$0xf]
      %v2893 = vld [vmem:[%s2861 + $0x7c] sm:$0xf]
      %v2894 = vld [vmem:[%s2861 + $0x80] sm:$0xf]
      %v2895 = vld [vmem:[%s2861 + $0x84] sm:$0xf]
      %v2896 = vld [vmem:[%s2861 + $0x88] sm:$0xf]
      %v2897 = vld [vmem:[%s2861 + $0x8c] sm:$0xf]
      %v2898 = vld [vmem:[%s2861 + $0x90] sm:$0xf]
      %v2899 = vld [vmem:[%s2861 + $0x94] sm:$0xf]
      %v2900 = vld [vmem:[%s2861 + $0x98] sm:$0xf]
      %v2901 = vld [vmem:[%s2861 + $0x9c] sm:$0xf]
      %v2902 = vld [vmem:[%s2861 + $0xa0] sm:$0xf]
      %v2903 = vld [vmem:[%s2861 + $0xa4] sm:$0xf]
      %v2904 = vld [vmem:[%s2861 + $0xa8] sm:$0xf]
      %v2905 = vld [vmem:[%s2861 + $0xac] sm:$0xf]
      %v2906 = vld [vmem:[%s2861 + $0xb0] sm:$0xf]
      %v2907 = vld [vmem:[%s2861 + $0xb4] sm:$0xf]
      %v2908 = vld [vmem:[%s2861 + $0xb8] sm:$0xf]
      %v2909 = vld [vmem:[%s2861 + $0xbc] sm:$0xf]
      %v2958 = vunpack.c.l.b16 %v2862
      %v2959 = vunpack.c.l.b16 %v2863
      %v2960 = vunpack.c.l.b16 %v2864
      %v2961 = vunpack.c.l.b16 %v2865
      %v2962 = vunpack.c.l.b16 %v2866
      %v2963 = vunpack.c.l.b16 %v2867
      %v2964 = vunpack.c.l.b16 %v2868
      %v2965 = vunpack.c.l.b16 %v2869
      %v2966 = vunpack.c.l.b16 %v2870
      %v2967 = vunpack.c.l.b16 %v2871
      %v2968 = vunpack.c.l.b16 %v2872
      %v2969 = vunpack.c.l.b16 %v2873
      %v2970 = vunpack.c.l.b16 %v2874
      %v2971 = vunpack.c.l.b16 %v2875
      %v2972 = vunpack.c.l.b16 %v2876
      %v2973 = vunpack.c.l.b16 %v2877
      %v2974 = vunpack.c.l.b16 %v2878
      %v2975 = vunpack.c.l.b16 %v2879
      %v2976 = vunpack.c.l.b16 %v2880
      %v2977 = vunpack.c.l.b16 %v2881
      %v2978 = vunpack.c.l.b16 %v2882
      %v2979 = vunpack.c.l.b16 %v2883
      %v2980 = vunpack.c.l.b16 %v2884
      %v2981 = vunpack.c.l.b16 %v2885
      %v2982 = vunpack.c.l.b16 %v2886
      %v2983 = vunpack.c.l.b16 %v2887
      %v2984 = vunpack.c.l.b16 %v2888
      %v2985 = vunpack.c.l.b16 %v2889
      %v2986 = vunpack.c.l.b16 %v2890
      %v2987 = vunpack.c.l.b16 %v2891
      %v2988 = vunpack.c.l.b16 %v2892
      %v2989 = vunpack.c.l.b16 %v2893
      %v2990 = vunpack.c.l.b16 %v2894
      %v2991 = vunpack.c.l.b16 %v2895
      %v2992 = vunpack.c.l.b16 %v2896
      %v2993 = vunpack.c.l.b16 %v2897
      %v2994 = vunpack.c.l.b16 %v2898
      %v2995 = vunpack.c.l.b16 %v2899
      %v2996 = vunpack.c.l.b16 %v2900
      %v2997 = vunpack.c.l.b16 %v2901
      %v2998 = vunpack.c.l.b16 %v2902
      %v2999 = vunpack.c.l.b16 %v2903
      %v3000 = vunpack.c.l.b16 %v2904
      %v3001 = vunpack.c.l.b16 %v2905
      %v3002 = vunpack.c.l.b16 %v2906
      %v3003 = vunpack.c.l.b16 %v2907
      %v3004 = vunpack.c.l.b16 %v2908
      %v3005 = vunpack.c.l.b16 %v2909
      %v3006 = vpack.c.b16 %v2959, %v2958
      %v3007 = vpack.c.b16 %v2961, %v2960
      %v3008 = vpack.c.b16 %v2963, %v2962
      %v3009 = vpack.c.b16 %v2965, %v2964
      %v3010 = vpack.c.b16 %v2967, %v2966
      %v3011 = vpack.c.b16 %v2969, %v2968
      %v3012 = vpack.c.b16 %v2971, %v2970
      %v3013 = vpack.c.b16 %v2973, %v2972
      %v3014 = vpack.c.b16 %v2975, %v2974
      %v3015 = vpack.c.b16 %v2977, %v2976
      %v3016 = vpack.c.b16 %v2979, %v2978
      %v3017 = vpack.c.b16 %v2981, %v2980
      %v3018 = vpack.c.b16 %v2983, %v2982
      %v3019 = vpack.c.b16 %v2985, %v2984
      %v3020 = vpack.c.b16 %v2987, %v2986
      %v3021 = vpack.c.b16 %v2989, %v2988
      %v3022 = vpack.c.b16 %v2991, %v2990
      %v3023 = vpack.c.b16 %v2993, %v2992
      %v3024 = vpack.c.b16 %v2995, %v2994
      %v3025 = vpack.c.b16 %v2997, %v2996
      %v3026 = vpack.c.b16 %v2999, %v2998
      %v3027 = vpack.c.b16 %v3001, %v3000
      %v3028 = vpack.c.b16 %v3003, %v3002
      %v3029 = vpack.c.b16 %v3005, %v3004
      %3054 = vmatprep.subr.bf16.mxu0 0
      %3055 = vmatpush1.bf16.msra.mxu0 %v3013
      %3056 = vmatprep.subr.bf16.mxu0 0
      %3057 = vmatpush1.bf16.msra.mxu0 %v3012
      %3058 = vmatprep.subr.bf16.mxu0 0
      %3059 = vmatpush1.bf16.msra.mxu0 %v3011
      %3060 = vmatprep.subr.bf16.mxu0 0
      %3061 = vmatpush1.bf16.msra.mxu0 %v3010
      %3062 = vmatprep.subr.bf16.mxu0 0
      %3063 = vmatpush1.bf16.msra.mxu0 %v3009
      %3064 = vmatprep.subr.bf16.mxu0 0
      %3065 = vmatpush1.bf16.msra.mxu0 %v3008
      %3066 = vmatprep.subr.bf16.mxu0 0
      %3067 = vmatpush1.bf16.msra.mxu0 %v3007
      %3068 = vmatprep.subr.bf16.mxu0 0
      %3069 = vmatpush1.bf16.msra.mxu0 %v3006
      %3070 = vmatprep.subr.bf16.mxu0 0
      %3071 = vmatpush2.bf16.msra.mxu0 %v3021
      %3072 = vmatprep.subr.bf16.mxu0 0
      %3073 = vmatpush2.bf16.msra.mxu0 %v3020
      %3074 = vmatprep.subr.bf16.mxu0 0
      %3075 = vmatpush2.bf16.msra.mxu0 %v3019
      %3076 = vmatprep.subr.bf16.mxu0 0
      %3077 = vmatpush2.bf16.msra.mxu0 %v3018
      %3078 = vmatprep.subr.bf16.mxu0 0
      %3079 = vmatpush2.bf16.msra.mxu0 %v3017
      %3080 = vmatprep.subr.bf16.mxu0 0
      %3081 = vmatpush2.bf16.msra.mxu0 %v3016
      %3082 = vmatprep.subr.bf16.mxu0 0
      %3083 = vmatpush2.bf16.msra.mxu0 %v3015
      %3084 = vmatprep.subr.bf16.mxu0 0
      %3085 = vmatpush2.bf16.msra.mxu0 %v3014
      %3086 = vmatprep.mubr.bf16.mxu0 %v1115
      %3087 = vmatmul.mubr.bf16.gmra.mxu0 %v1106
      %v3088 = vpop.f32.mrf.mxu0
      %v3089 = vadd.f32 0.0, %v3088
      %v3090 = vpop.f32.mrf.mxu0
      %v3091 = vpop.f32.mrf.mxu0
      %v3092 = vadd.f32 0.0, %v3091
      %v3093 = vpop.f32.mrf.mxu0
      %3094 = vmatprep.mubr.bf16.mxu0 %v1158
      %3095 = vmatmul.mubr.bf16.gmra.mxu0 %v1149
      %v3096 = vpop.f32.mrf.mxu0
      %v3097 = vadd.f32 0.0, %v3096
      %v3098 = vpop.f32.mrf.mxu0
      %v3099 = vpop.f32.mrf.mxu0
      %v3100 = vadd.f32 0.0, %v3099
      %v3101 = vpop.f32.mrf.mxu0
      %3102 = vmatprep.mubr.bf16.mxu0 %v1201
      %3103 = vmatmul.mubr.bf16.gmra.mxu0 %v1192
      %v3104 = vpop.f32.mrf.mxu0
      %v3105 = vadd.f32 0.0, %v3104
      %v3106 = vpop.f32.mrf.mxu0
      %v3107 = vpop.f32.mrf.mxu0
      %v3108 = vadd.f32 0.0, %v3107
      %v3109 = vpop.f32.mrf.mxu0
      %3110 = vmatprep.mubr.bf16.mxu0 %v1244
      %3111 = vmatmul.mubr.bf16.gmra.mxu0 %v1235
      %v3112 = vpop.f32.mrf.mxu0
      %v3113 = vadd.f32 0.0, %v3112
      %v3114 = vpop.f32.mrf.mxu0
      %v3115 = vpop.f32.mrf.mxu0
      %v3116 = vadd.f32 0.0, %v3115
      %v3117 = vpop.f32.mrf.mxu0
      %3118 = vmatprep.mubr.bf16.mxu0 %v1287
      %3119 = vmatmul.mubr.bf16.gmra.mxu0 %v1278
      %v3120 = vpop.f32.mrf.mxu0
      %v3121 = vadd.f32 0.0, %v3120
      %v3122 = vpop.f32.mrf.mxu0
      %v3123 = vpop.f32.mrf.mxu0
      %v3124 = vadd.f32 0.0, %v3123
      %v3125 = vpop.f32.mrf.mxu0
      %3126 = vmatprep.mubr.bf16.mxu0 %v1330
      %3127 = vmatmul.mubr.bf16.gmra.mxu0 %v1321
      %v3128 = vpop.f32.mrf.mxu0
      %v3129 = vadd.f32 0.0, %v3128
      %v3130 = vpop.f32.mrf.mxu0
      %v3131 = vpop.f32.mrf.mxu0
      %v3132 = vadd.f32 0.0, %v3131
      %v3133 = vpop.f32.mrf.mxu0
      %3134 = vmatprep.mubr.bf16.mxu0 %v1373
      %3135 = vmatmul.mubr.bf16.gmra.mxu0 %v1364
      %v3136 = vpop.f32.mrf.mxu0
      %v3137 = vadd.f32 0.0, %v3136
      %v3138 = vpop.f32.mrf.mxu0
      %v3139 = vpop.f32.mrf.mxu0
      %v3140 = vadd.f32 0.0, %v3139
      %v3141 = vpop.f32.mrf.mxu0
      %3142 = vmatprep.mubr.bf16.mxu0 %v1416
      %3143 = vmatmul.mubr.bf16.gmra.mxu0 %v1407
      %v3144 = vpop.f32.mrf.mxu0
      %v3145 = vadd.f32 0.0, %v3144
      %v3146 = vpop.f32.mrf.mxu0
      %v3147 = vpop.f32.mrf.mxu0
      %v3148 = vadd.f32 0.0, %v3147
      %v3149 = vpop.f32.mrf.mxu0
      %3150 = vmatprep.mubr.bf16.mxu0 %v1459
      %3151 = vmatmul.mubr.bf16.gmra.mxu0 %v1450
      %v3152 = vpop.f32.mrf.mxu0
      %v3153 = vadd.f32 0.0, %v3152
      %v3154 = vpop.f32.mrf.mxu0
      %v3155 = vpop.f32.mrf.mxu0
      %v3156 = vadd.f32 0.0, %v3155
      %v3157 = vpop.f32.mrf.mxu0
      %3158 = vmatprep.mubr.bf16.mxu0 %v1502
      %3159 = vmatmul.mubr.bf16.gmra.mxu0 %v1493
      %v3160 = vpop.f32.mrf.mxu0
      %v3161 = vadd.f32 0.0, %v3160
      %v3162 = vpop.f32.mrf.mxu0
      %v3163 = vpop.f32.mrf.mxu0
      %v3164 = vadd.f32 0.0, %v3163
      %v3165 = vpop.f32.mrf.mxu0
      %3166 = vmatprep.mubr.bf16.mxu0 %v1545
      %3167 = vmatmul.mubr.bf16.gmra.mxu0 %v1536
      %v3168 = vpop.f32.mrf.mxu0
      %v3169 = vadd.f32 0.0, %v3168
      %v3170 = vpop.f32.mrf.mxu0
      %v3171 = vpop.f32.mrf.mxu0
      %v3172 = vadd.f32 0.0, %v3171
      %v3173 = vpop.f32.mrf.mxu0
      %3174 = vmatprep.mubr.bf16.mxu0 %v1588
      %3175 = vmatmul.mubr.bf16.gmra.mxu0 %v1579
      %v3176 = vpop.f32.mrf.mxu0
      %v3177 = vadd.f32 0.0, %v3176
      %v3178 = vpop.f32.mrf.mxu0
      %v3179 = vpop.f32.mrf.mxu0
      %v3180 = vadd.f32 0.0, %v3179
      %v3181 = vpop.f32.mrf.mxu0
      %3182 = vmatprep.mubr.bf16.mxu0 %v1631
      %3183 = vmatmul.mubr.bf16.gmra.mxu0 %v1622
      %v3184 = vpop.f32.mrf.mxu0
      %v3185 = vadd.f32 0.0, %v3184
      %v3186 = vpop.f32.mrf.mxu0
      %v3187 = vpop.f32.mrf.mxu0
      %v3188 = vadd.f32 0.0, %v3187
      %v3189 = vpop.f32.mrf.mxu0
      %3190 = vmatprep.mubr.bf16.mxu0 %v1674
      %3191 = vmatmul.mubr.bf16.gmra.mxu0 %v1665
      %v3192 = vpop.f32.mrf.mxu0
      %v3193 = vadd.f32 0.0, %v3192
      %v3194 = vpop.f32.mrf.mxu0
      %v3195 = vpop.f32.mrf.mxu0
      %v3196 = vadd.f32 0.0, %v3195
      %v3197 = vpop.f32.mrf.mxu0
      %3198 = vmatprep.mubr.bf16.mxu0 %v1813
      %3199 = vmatmul.mubr.bf16.gmra.mxu0 %v1804
      %v3200 = vpop.f32.mrf.mxu0
      %v3201 = vadd.f32 0.0, %v3200
      %v3202 = vpop.f32.mrf.mxu0
      %v3203 = vpop.f32.mrf.mxu0
      %v3204 = vadd.f32 0.0, %v3203
      %v3205 = vpop.f32.mrf.mxu0
      %3206 = vmatprep.mubr.bf16.mxu0 %v2840
      %3207 = vmatmul.mubr.bf16.gmra.mxu0 %v2831
      %v3208 = vpop.f32.mrf.mxu0
      %v3209 = vadd.f32 0.0, %v3208
      %v3210 = vpop.f32.mrf.mxu0
      %v3211 = vpop.f32.mrf.mxu0
      %v3212 = vadd.f32 0.0, %v3211
      %v3213 = vpop.f32.mrf.mxu0
      %3214 = vdwg.mxu0
      %3215 = vmatprep.subr.bf16.mxu0 0
      %3216 = vmatpush1.bf16.msra.mxu0 %v3029
      %3217 = vmatprep.subr.bf16.mxu0 0
      %3218 = vmatpush1.bf16.msra.mxu0 %v3028
      %3219 = vmatprep.subr.bf16.mxu0 0
      %3220 = vmatpush1.bf16.msra.mxu0 %v3027
      %3221 = vmatprep.subr.bf16.mxu0 0
      %3222 = vmatpush1.bf16.msra.mxu0 %v3026
      %3223 = vmatprep.subr.bf16.mxu0 0
      %3224 = vmatpush1.bf16.msra.mxu0 %v3025
      %3225 = vmatprep.subr.bf16.mxu0 0
      %3226 = vmatpush1.bf16.msra.mxu0 %v3024
      %3227 = vmatprep.subr.bf16.mxu0 0
      %3228 = vmatpush1.bf16.msra.mxu0 %v3023
      %3229 = vmatprep.subr.bf16.mxu0 0
      %3230 = vmatpush1.bf16.msra.mxu0 %v3022
      %3231 = vmatprep.subr.bf16.mxu0 0
      %3232 = vmatpush2.bf16.msra.mxu0 0
      %3233 = vmatprep.subr.bf16.mxu0 0
      %3234 = vmatpush2.bf16.msra.mxu0 0
      %3235 = vmatprep.subr.bf16.mxu0 0
      %3236 = vmatpush2.bf16.msra.mxu0 0
      %3237 = vmatprep.subr.bf16.mxu0 0
      %3238 = vmatpush2.bf16.msra.mxu0 0
      %3239 = vmatprep.subr.bf16.mxu0 0
      %3240 = vmatpush2.bf16.msra.mxu0 0
      %3241 = vmatprep.subr.bf16.mxu0 0
      %3242 = vmatpush2.bf16.msra.mxu0 0
      %3243 = vmatprep.subr.bf16.mxu0 0
      %3244 = vmatpush2.bf16.msra.mxu0 0
      %3245 = vmatprep.subr.bf16.mxu0 0
      %3246 = vmatpush2.bf16.msra.mxu0 0
      %3247 = vmatprep.mubr.bf16.mxu0 0
      %3248 = vmatmul.mubr.bf16.gmra.mxu0 %v1132
      %v3249 = vpop.f32.mrf.mxu0
      %v3250 = vadd.f32 %v3089, %v3249
      %v3251 = vpop.f32.mrf.mxu0
      %v3252 = vpop.f32.mrf.mxu0
      %v3253 = vadd.f32 %v3092, %v3252
      %v3254 = vpop.f32.mrf.mxu0
      %3255 = vmatprep.mubr.bf16.mxu0 0
      %3256 = vmatmul.mubr.bf16.gmra.mxu0 %v1175
      %v3257 = vpop.f32.mrf.mxu0
      %v3258 = vadd.f32 %v3097, %v3257
      %v3259 = vpop.f32.mrf.mxu0
      %v3260 = vpop.f32.mrf.mxu0
      %v3261 = vadd.f32 %v3100, %v3260
      %v3262 = vpop.f32.mrf.mxu0
      %3263 = vmatprep.mubr.bf16.mxu0 0
      %3264 = vmatmul.mubr.bf16.gmra.mxu0 %v1218
      %v3265 = vpop.f32.mrf.mxu0
      %v3266 = vadd.f32 %v3105, %v3265
      %v3267 = vpop.f32.mrf.mxu0
      %v3268 = vpop.f32.mrf.mxu0
      %v3269 = vadd.f32 %v3108, %v3268
      %v3270 = vpop.f32.mrf.mxu0
      %3271 = vmatprep.mubr.bf16.mxu0 0
      %3272 = vmatmul.mubr.bf16.gmra.mxu0 %v1261
      %v3273 = vpop.f32.mrf.mxu0
      %v3274 = vadd.f32 %v3113, %v3273
      %v3275 = vpop.f32.mrf.mxu0
      %v3276 = vpop.f32.mrf.mxu0
      %v3277 = vadd.f32 %v3116, %v3276
      %v3278 = vpop.f32.mrf.mxu0
      %3279 = vmatprep.mubr.bf16.mxu0 0
      %3280 = vmatmul.mubr.bf16.gmra.mxu0 %v1304
      %v3281 = vpop.f32.mrf.mxu0
      %v3282 = vadd.f32 %v3121, %v3281
      %v3283 = vpop.f32.mrf.mxu0
      %v3284 = vpop.f32.mrf.mxu0
      %v3285 = vadd.f32 %v3124, %v3284
      %v3286 = vpop.f32.mrf.mxu0
      %3287 = vmatprep.mubr.bf16.mxu0 0
      %3288 = vmatmul.mubr.bf16.gmra.mxu0 %v1347
      %v3289 = vpop.f32.mrf.mxu0
      %v3290 = vadd.f32 %v3129, %v3289
      %v3291 = vpop.f32.mrf.mxu0
      %v3292 = vpop.f32.mrf.mxu0
      %v3293 = vadd.f32 %v3132, %v3292
      %v3294 = vpop.f32.mrf.mxu0
      %3295 = vmatprep.mubr.bf16.mxu0 0
      %3296 = vmatmul.mubr.bf16.gmra.mxu0 %v1390
      %v3297 = vpop.f32.mrf.mxu0
      %v3298 = vadd.f32 %v3137, %v3297
      %v3299 = vpop.f32.mrf.mxu0
      %v3300 = vpop.f32.mrf.mxu0
      %v3301 = vadd.f32 %v3140, %v3300
      %v3302 = vpop.f32.mrf.mxu0
      %3303 = vmatprep.mubr.bf16.mxu0 0
      %3304 = vmatmul.mubr.bf16.gmra.mxu0 %v1433
      %v3305 = vpop.f32.mrf.mxu0
      %v3306 = vadd.f32 %v3145, %v3305
      %v3307 = vpop.f32.mrf.mxu0
      %v3308 = vpop.f32.mrf.mxu0
      %v3309 = vadd.f32 %v3148, %v3308
      %v3310 = vpop.f32.mrf.mxu0
      %3311 = vmatprep.mubr.bf16.mxu0 0
      %3312 = vmatmul.mubr.bf16.gmra.mxu0 %v1476
      %v3313 = vpop.f32.mrf.mxu0
      %v3314 = vadd.f32 %v3153, %v3313
      %v3315 = vpop.f32.mrf.mxu0
      %v3316 = vpop.f32.mrf.mxu0
      %v3317 = vadd.f32 %v3156, %v3316
      %v3318 = vpop.f32.mrf.mxu0
      %3319 = vmatprep.mubr.bf16.mxu0 0
      %3320 = vmatmul.mubr.bf16.gmra.mxu0 %v1519
      %v3321 = vpop.f32.mrf.mxu0
      %v3322 = vadd.f32 %v3161, %v3321
      %v3323 = vpop.f32.mrf.mxu0
      %v3324 = vpop.f32.mrf.mxu0
      %v3325 = vadd.f32 %v3164, %v3324
      %v3326 = vpop.f32.mrf.mxu0
      %3327 = vmatprep.mubr.bf16.mxu0 0
      %3328 = vmatmul.mubr.bf16.gmra.mxu0 %v1562
      %v3329 = vpop.f32.mrf.mxu0
      %v3330 = vadd.f32 %v3169, %v3329
      %v3331 = vpop.f32.mrf.mxu0
      %v3332 = vpop.f32.mrf.mxu0
      %v3333 = vadd.f32 %v3172, %v3332
      %v3334 = vpop.f32.mrf.mxu0
      %3335 = vmatprep.mubr.bf16.mxu0 0
      %3336 = vmatmul.mubr.bf16.gmra.mxu0 %v1605
      %v3337 = vpop.f32.mrf.mxu0
      %v3338 = vadd.f32 %v3177, %v3337
      %v3339 = vpop.f32.mrf.mxu0
      %v3340 = vpop.f32.mrf.mxu0
      %v3341 = vadd.f32 %v3180, %v3340
      %v3342 = vpop.f32.mrf.mxu0
      %3343 = vmatprep.mubr.bf16.mxu0 0
      %3344 = vmatmul.mubr.bf16.gmra.mxu0 %v1648
      %v3345 = vpop.f32.mrf.mxu0
      %v3346 = vadd.f32 %v3185, %v3345
      %v3347 = vpop.f32.mrf.mxu0
      %v3348 = vpop.f32.mrf.mxu0
      %v3349 = vadd.f32 %v3188, %v3348
      %v3350 = vpop.f32.mrf.mxu0
      %3351 = vmatprep.mubr.bf16.mxu0 0
      %3352 = vmatmul.mubr.bf16.gmra.mxu0 %v1691
      %v3353 = vpop.f32.mrf.mxu0
      %v3354 = vadd.f32 %v3193, %v3353
      %v3355 = vpop.f32.mrf.mxu0
      %v3356 = vpop.f32.mrf.mxu0
      %v3357 = vadd.f32 %v3196, %v3356
      %v3358 = vpop.f32.mrf.mxu0
      %3359 = vmatprep.mubr.bf16.mxu0 0
      %3360 = vmatmul.mubr.bf16.gmra.mxu0 %v1830
      %v3361 = vpop.f32.mrf.mxu0
      %v3362 = vadd.f32 %v3201, %v3361
      %v3363 = vpop.f32.mrf.mxu0
      %v3364 = vpop.f32.mrf.mxu0
      %v3365 = vadd.f32 %v3204, %v3364
      %v3366 = vpop.f32.mrf.mxu0
      %3367 = vmatprep.mubr.bf16.mxu0 0
      %3368 = vmatmul.mubr.bf16.gmra.mxu0 %v2857
      %v3369 = vpop.f32.mrf.mxu0
      %v3370 = vadd.f32 %v3209, %v3369
      %v3371 = vpop.f32.mrf.mxu0
      %v3372 = vpop.f32.mrf.mxu0
      %v3373 = vadd.f32 %v3212, %v3372
      %v3374 = vpop.f32.mrf.mxu0
      %3375 = vdwg.mxu0
      %v3376 = vadd.f32 %v2689, %v3250
      %v3377 = vadd.f32 %v2692, %v3253
      %v3378 = vadd.f32 %v2697, %v3258
      %v3379 = vadd.f32 %v2700, %v3261
      %v3380 = vadd.f32 %v2705, %v3266
      %v3381 = vadd.f32 %v2708, %v3269
      %v3382 = vadd.f32 %v2713, %v3274
      %v3383 = vadd.f32 %v2716, %v3277
      %v3384 = vadd.f32 %v2721, %v3282
      %v3385 = vadd.f32 %v2724, %v3285
      %v3386 = vadd.f32 %v2729, %v3290
      %v3387 = vadd.f32 %v2732, %v3293
      %v3388 = vadd.f32 %v2737, %v3298
      %v3389 = vadd.f32 %v2740, %v3301
      %v3390 = vadd.f32 %v2745, %v3306
      %v3391 = vadd.f32 %v2748, %v3309
      %v3392 = vadd.f32 %v2753, %v3314
      %v3393 = vadd.f32 %v2756, %v3317
      %v3394 = vadd.f32 %v2761, %v3322
      %v3395 = vadd.f32 %v2764, %v3325
      %v3396 = vadd.f32 %v2769, %v3330
      %v3397 = vadd.f32 %v2772, %v3333
      %v3398 = vadd.f32 %v2777, %v3338
      %v3399 = vadd.f32 %v2780, %v3341
      %v3400 = vadd.f32 %v2785, %v3346
      %v3401 = vadd.f32 %v2788, %v3349
      %v3402 = vadd.f32 %v2793, %v3354
      %v3403 = vadd.f32 %v2796, %v3357
      %v3404 = vadd.f32 %v2801, %v3362
      %v3405 = vadd.f32 %v2804, %v3365
      %v3406 = vadd.f32 %v2809, %v3370
      %v3407 = vadd.f32 %v2812, %v3373
      %v3408 = vld [vmem:[%s2] sm:$0x1]
      %v3410 = vlaneseq
      %v3411 = vshrl.u32 %v3410, 7
      %v3412 = vsub.s32 0, %v3411
      %v3413 = vrot.slane %v3408, %v3412
      %v3415 = vmul.f32 %v3376, %v3413
      %v3416 = vmul.f32 %v3377, %v3413
      %v3417 = vmul.f32 %v3378, %v3413
      %v3418 = vmul.f32 %v3379, %v3413
      %v3419 = vmul.f32 %v3380, %v3413
      %v3420 = vmul.f32 %v3381, %v3413
      %v3421 = vmul.f32 %v3382, %v3413
      %v3422 = vmul.f32 %v3383, %v3413
      %v3423 = vmul.f32 %v3384, %v3413
      %v3424 = vmul.f32 %v3385, %v3413
      %v3425 = vmul.f32 %v3386, %v3413
      %v3426 = vmul.f32 %v3387, %v3413
      %v3427 = vmul.f32 %v3388, %v3413
      %v3428 = vmul.f32 %v3389, %v3413
      %v3429 = vmul.f32 %v3390, %v3413
      %v3430 = vmul.f32 %v3391, %v3413
      %v3431 = vmul.f32 %v3392, %v3413
      %v3432 = vmul.f32 %v3393, %v3413
      %v3433 = vmul.f32 %v3394, %v3413
      %v3434 = vmul.f32 %v3395, %v3413
      %v3435 = vmul.f32 %v3396, %v3413
      %v3436 = vmul.f32 %v3397, %v3413
      %v3437 = vmul.f32 %v3398, %v3413
      %v3438 = vmul.f32 %v3399, %v3413
      %v3439 = vmul.f32 %v3400, %v3413
      %v3440 = vmul.f32 %v3401, %v3413
      %v3441 = vmul.f32 %v3402, %v3413
      %v3442 = vmul.f32 %v3403, %v3413
      %v3443 = vmul.f32 %v3404, %v3413
      %v3444 = vmul.f32 %v3405, %v3413
      %v3445 = vmul.f32 %v3406, %v3413
      %v3446 = vmul.f32 %v3407, %v3413
      %v3447 = vld [vmem:[%s3] sm:$0x1]
      %v3449 = vlaneseq
      %v3450 = vshrl.u32 %v3449, 7
      %v3451 = vsub.s32 0, %v3450
      %v3452 = vrot.slane %v3447, %v3451
      %v3454 = vadd.f32 %v3415, %v3452
      %v3455 = vadd.f32 %v3416, %v3452
      %v3456 = vadd.f32 %v3417, %v3452
      %v3457 = vadd.f32 %v3418, %v3452
      %v3458 = vadd.f32 %v3419, %v3452
      %v3459 = vadd.f32 %v3420, %v3452
      %v3460 = vadd.f32 %v3421, %v3452
      %v3461 = vadd.f32 %v3422, %v3452
      %v3462 = vadd.f32 %v3423, %v3452
      %v3463 = vadd.f32 %v3424, %v3452
      %v3464 = vadd.f32 %v3425, %v3452
      %v3465 = vadd.f32 %v3426, %v3452
      %v3466 = vadd.f32 %v3427, %v3452
      %v3467 = vadd.f32 %v3428, %v3452
      %v3468 = vadd.f32 %v3429, %v3452
      %v3469 = vadd.f32 %v3430, %v3452
      %v3470 = vadd.f32 %v3431, %v3452
      %v3471 = vadd.f32 %v3432, %v3452
      %v3472 = vadd.f32 %v3433, %v3452
      %v3473 = vadd.f32 %v3434, %v3452
      %v3474 = vadd.f32 %v3435, %v3452
      %v3475 = vadd.f32 %v3436, %v3452
      %v3476 = vadd.f32 %v3437, %v3452
      %v3477 = vadd.f32 %v3438, %v3452
      %v3478 = vadd.f32 %v3439, %v3452
      %v3479 = vadd.f32 %v3440, %v3452
      %v3480 = vadd.f32 %v3441, %v3452
      %v3481 = vadd.f32 %v3442, %v3452
      %v3482 = vadd.f32 %v3443, %v3452
      %v3483 = vadd.f32 %v3444, %v3452
      %v3484 = vadd.f32 %v3445, %v3452
      %v3485 = vadd.f32 %v3446, %v3452
      %v3486 = vmax.f32 %v3454, 0.0
      %v3487 = vmax.f32 %v3455, 0.0
      %v3488 = vmax.f32 %v3456, 0.0
      %v3489 = vmax.f32 %v3457, 0.0
      %v3490 = vmax.f32 %v3458, 0.0
      %v3491 = vmax.f32 %v3459, 0.0
      %v3492 = vmax.f32 %v3460, 0.0
      %v3493 = vmax.f32 %v3461, 0.0
      %v3494 = vmax.f32 %v3462, 0.0
      %v3495 = vmax.f32 %v3463, 0.0
      %v3496 = vmax.f32 %v3464, 0.0
      %v3497 = vmax.f32 %v3465, 0.0
      %v3498 = vmax.f32 %v3466, 0.0
      %v3499 = vmax.f32 %v3467, 0.0
      %v3500 = vmax.f32 %v3468, 0.0
      %v3501 = vmax.f32 %v3469, 0.0
      %v3502 = vmax.f32 %v3470, 0.0
      %v3503 = vmax.f32 %v3471, 0.0
      %v3504 = vmax.f32 %v3472, 0.0
      %v3505 = vmax.f32 %v3473, 0.0
      %v3506 = vmax.f32 %v3474, 0.0
      %v3507 = vmax.f32 %v3475, 0.0
      %v3508 = vmax.f32 %v3476, 0.0
      %v3509 = vmax.f32 %v3477, 0.0
      %v3510 = vmax.f32 %v3478, 0.0
      %v3511 = vmax.f32 %v3479, 0.0
      %v3512 = vmax.f32 %v3480, 0.0
      %v3513 = vmax.f32 %v3481, 0.0
      %v3514 = vmax.f32 %v3482, 0.0
      %v3515 = vmax.f32 %v3483, 0.0
      %v3516 = vmax.f32 %v3484, 0.0
      %v3517 = vmax.f32 %v3485, 0.0
      %v3518 = vpack.c.bf16 %v3487, %v3486
      %v3519 = vpack.c.bf16 %v3489, %v3488
      %v3520 = vpack.c.bf16 %v3491, %v3490
      %v3521 = vpack.c.bf16 %v3493, %v3492
      %v3522 = vpack.c.bf16 %v3495, %v3494
      %v3523 = vpack.c.bf16 %v3497, %v3496
      %v3524 = vpack.c.bf16 %v3499, %v3498
      %v3525 = vpack.c.bf16 %v3501, %v3500
      %v3526 = vpack.c.bf16 %v3503, %v3502
      %v3527 = vpack.c.bf16 %v3505, %v3504
      %v3528 = vpack.c.bf16 %v3507, %v3506
      %v3529 = vpack.c.bf16 %v3509, %v3508
      %v3530 = vpack.c.bf16 %v3511, %v3510
      %v3531 = vpack.c.bf16 %v3513, %v3512
      %v3532 = vpack.c.bf16 %v3515, %v3514
      %v3533 = vpack.c.bf16 %v3517, %v3516
      %v3550 = vunpack.c.l.b16 %v3518
      %v3551 = vunpack.c.h.b16 %v3518
      %v3552 = vunpack.c.l.b16 %v3519
      %v3553 = vunpack.c.h.b16 %v3519
      %v3554 = vunpack.c.l.b16 %v3520
      %v3555 = vunpack.c.h.b16 %v3520
      %v3556 = vunpack.c.l.b16 %v3521
      %v3557 = vunpack.c.h.b16 %v3521
      %v3558 = vunpack.c.l.b16 %v3522
      %v3559 = vunpack.c.h.b16 %v3522
      %v3560 = vunpack.c.l.b16 %v3523
      %v3561 = vunpack.c.h.b16 %v3523
      %v3562 = vunpack.c.l.b16 %v3524
      %v3563 = vunpack.c.h.b16 %v3524
      %v3564 = vunpack.c.l.b16 %v3525
      %v3565 = vunpack.c.h.b16 %v3525
      %v3566 = vunpack.c.l.b16 %v3526
      %v3567 = vunpack.c.h.b16 %v3526
      %v3568 = vunpack.c.l.b16 %v3527
      %v3569 = vunpack.c.h.b16 %v3527
      %v3570 = vunpack.c.l.b16 %v3528
      %v3571 = vunpack.c.h.b16 %v3528
      %v3572 = vunpack.c.l.b16 %v3529
      %v3573 = vunpack.c.h.b16 %v3529
      %v3574 = vunpack.c.l.b16 %v3530
      %v3575 = vunpack.c.h.b16 %v3530
      %v3576 = vunpack.c.l.b16 %v3531
      %v3577 = vunpack.c.h.b16 %v3531
      %v3578 = vunpack.c.l.b16 %v3532
      %v3579 = vunpack.c.h.b16 %v3532
      %v3580 = vunpack.c.l.b16 %v3533
      %v3581 = vunpack.c.h.b16 %v3533
      %v3582 = vpack.c.b16 %v3550, %v3550
      %v3583 = vpack.c.b16 %v3551, %v3551
      %v3584 = vpack.c.b16 %v3552, %v3552
      %v3585 = vpack.c.b16 %v3553, %v3553
      %v3586 = vpack.c.b16 %v3554, %v3554
      %v3587 = vpack.c.b16 %v3555, %v3555
      %v3588 = vpack.c.b16 %v3556, %v3556
      %v3589 = vpack.c.b16 %v3557, %v3557
      %v3590 = vpack.c.b16 %v3558, %v3558
      %v3591 = vpack.c.b16 %v3559, %v3559
      %v3592 = vpack.c.b16 %v3560, %v3560
      %v3593 = vpack.c.b16 %v3561, %v3561
      %v3594 = vpack.c.b16 %v3562, %v3562
      %v3595 = vpack.c.b16 %v3563, %v3563
      %v3596 = vpack.c.b16 %v3564, %v3564
      %v3597 = vpack.c.b16 %v3565, %v3565
      %v3598 = vpack.c.b16 %v3566, %v3566
      %v3599 = vpack.c.b16 %v3567, %v3567
      %v3600 = vpack.c.b16 %v3568, %v3568
      %v3601 = vpack.c.b16 %v3569, %v3569
      %v3602 = vpack.c.b16 %v3570, %v3570
      %v3603 = vpack.c.b16 %v3571, %v3571
      %v3604 = vpack.c.b16 %v3572, %v3572
      %v3605 = vpack.c.b16 %v3573, %v3573
      %v3606 = vpack.c.b16 %v3574, %v3574
      %v3607 = vpack.c.b16 %v3575, %v3575
      %v3608 = vpack.c.b16 %v3576, %v3576
      %v3609 = vpack.c.b16 %v3577, %v3577
      %v3610 = vpack.c.b16 %v3578, %v3578
      %v3611 = vpack.c.b16 %v3579, %v3579
      %v3612 = vpack.c.b16 %v3580, %v3580
      %v3613 = vpack.c.b16 %v3581, %v3581
      %s3646 = scalar_lea.vmem [#allocation3], 16
      %3647 = vst [vmem:[%s3646 + $0x4] sm:$0xf] %v3582
      %3648 = vst [vmem:[%s3646 + $0x8] sm:$0xf] %v3583
      %3649 = vst [vmem:[%s3646 + $0x14] sm:$0xf] %v3584
      %3650 = vst [vmem:[%s3646 + $0x18] sm:$0xf] %v3585
      %3651 = vst [vmem:[%s3646 + $0x24] sm:$0xf] %v3586
      %3652 = vst [vmem:[%s3646 + $0x28] sm:$0xf] %v3587
      %3653 = vst [vmem:[%s3646 + $0x34] sm:$0xf] %v3588
      %3654 = vst [vmem:[%s3646 + $0x38] sm:$0xf] %v3589
      %3655 = vst [vmem:[%s3646 + $0x44] sm:$0xf] %v3590
      %3656 = vst [vmem:[%s3646 + $0x48] sm:$0xf] %v3591
      %3657 = vst [vmem:[%s3646 + $0x54] sm:$0xf] %v3592
      %3658 = vst [vmem:[%s3646 + $0x58] sm:$0xf] %v3593
      %3659 = vst [vmem:[%s3646 + $0x64] sm:$0xf] %v3594
      %3660 = vst [vmem:[%s3646 + $0x68] sm:$0xf] %v3595
      %3661 = vst [vmem:[%s3646 + $0x74] sm:$0xf] %v3596
      %3662 = vst [vmem:[%s3646 + $0x78] sm:$0xf] %v3597
      %3663 = vst [vmem:[%s3646 + $0x84] sm:$0xf] %v3598
      %3664 = vst [vmem:[%s3646 + $0x88] sm:$0xf] %v3599
      %3665 = vst [vmem:[%s3646 + $0x94] sm:$0xf] %v3600
      %3666 = vst [vmem:[%s3646 + $0x98] sm:$0xf] %v3601
      %3667 = vst [vmem:[%s3646 + $0xa4] sm:$0xf] %v3602
      %3668 = vst [vmem:[%s3646 + $0xa8] sm:$0xf] %v3603
      %3669 = vst [vmem:[%s3646 + $0xb4] sm:$0xf] %v3604
      %3670 = vst [vmem:[%s3646 + $0xb8] sm:$0xf] %v3605
      %3671 = vst [vmem:[%s3646 + $0xc4] sm:$0xf] %v3606
      %3672 = vst [vmem:[%s3646 + $0xc8] sm:$0xf] %v3607
      %3673 = vst [vmem:[%s3646 + $0xd4] sm:$0xf] %v3608
      %3674 = vst [vmem:[%s3646 + $0xd8] sm:$0xf] %v3609
      %3675 = vst [vmem:[%s3646 + $0xe4] sm:$0xf] %v3610
      %3676 = vst [vmem:[%s3646 + $0xe8] sm:$0xf] %v3611
      %3677 = vst [vmem:[%s3646 + $0xf4] sm:$0xf] %v3612
      %3678 = vst [vmem:[%s3646 + $0xf8] sm:$0xf] %v3613
      %v3679 = vld [vmem:[#allocation3] sm:$0xf]
      %v3680 = vld [vmem:[#allocation3 + $0x4] sm:$0xf]
      %v3681 = vld [vmem:[#allocation3 + $0x8] sm:$0xf]
      %v3682 = vld [vmem:[#allocation3 + $0xc] sm:$0xf]
      %v3683 = vld [vmem:[#allocation3 + $0x10] sm:$0xf]
      %v3684 = vld [vmem:[#allocation3 + $0x14] sm:$0xf]
      %v3685 = vld [vmem:[#allocation3 + $0x18] sm:$0xf]
      %v3686 = vld [vmem:[#allocation3 + $0x1c] sm:$0xf]
      %v3687 = vld [vmem:[#allocation3 + $0x20] sm:$0xf]
      %v3688 = vld [vmem:[#allocation3 + $0x24] sm:$0xf]
      %v3689 = vld [vmem:[#allocation3 + $0x28] sm:$0xf]
      %v3690 = vld [vmem:[#allocation3 + $0x2c] sm:$0xf]
      %v3691 = vld [vmem:[#allocation3 + $0x30] sm:$0xf]
      %v3692 = vld [vmem:[#allocation3 + $0x34] sm:$0xf]
      %v3693 = vld [vmem:[#allocation3 + $0x38] sm:$0xf]
      %v3694 = vld [vmem:[#allocation3 + $0x3c] sm:$0xf]
      %v3695 = vld [vmem:[#allocation3 + $0x40] sm:$0xf]
      %v3696 = vld [vmem:[#allocation3 + $0x44] sm:$0xf]
      %v3697 = vld [vmem:[#allocation3 + $0x48] sm:$0xf]
      %v3698 = vld [vmem:[#allocation3 + $0x4c] sm:$0xf]
      %v3699 = vld [vmem:[#allocation3 + $0x50] sm:$0xf]
      %v3700 = vld [vmem:[#allocation3 + $0x54] sm:$0xf]
      %v3701 = vld [vmem:[#allocation3 + $0x58] sm:$0xf]
      %v3702 = vld [vmem:[#allocation3 + $0x5c] sm:$0xf]
      %v3703 = vld [vmem:[#allocation3 + $0x60] sm:$0xf]
      %v3704 = vld [vmem:[#allocation3 + $0x64] sm:$0xf]
      %v3705 = vld [vmem:[#allocation3 + $0x68] sm:$0xf]
      %v3706 = vld [vmem:[#allocation3 + $0x6c] sm:$0xf]
      %v3707 = vld [vmem:[#allocation3 + $0x70] sm:$0xf]
      %v3708 = vld [vmem:[#allocation3 + $0x74] sm:$0xf]
      %v3709 = vld [vmem:[#allocation3 + $0x78] sm:$0xf]
      %v3710 = vld [vmem:[#allocation3 + $0x7c] sm:$0xf]
      %v3711 = vld [vmem:[#allocation3 + $0x80] sm:$0xf]
      %v3712 = vld [vmem:[#allocation3 + $0x84] sm:$0xf]
      %v3713 = vld [vmem:[#allocation3 + $0x88] sm:$0xf]
      %v3714 = vld [vmem:[#allocation3 + $0x8c] sm:$0xf]
      %v3715 = vld [vmem:[#allocation3 + $0x90] sm:$0xf]
      %v3716 = vld [vmem:[#allocation3 + $0x94] sm:$0xf]
      %v3717 = vld [vmem:[#allocation3 + $0x98] sm:$0xf]
      %v3718 = vld [vmem:[#allocation3 + $0x9c] sm:$0xf]
      %v3719 = vld [vmem:[#allocation3 + $0xa0] sm:$0xf]
      %v3720 = vld [vmem:[#allocation3 + $0xa4] sm:$0xf]
      %v3721 = vld [vmem:[#allocation3 + $0xa8] sm:$0xf]
      %v3722 = vld [vmem:[#allocation3 + $0xac] sm:$0xf]
      %v3723 = vld [vmem:[#allocation3 + $0xb0] sm:$0xf]
      %v3724 = vld [vmem:[#allocation3 + $0xb4] sm:$0xf]
      %v3725 = vld [vmem:[#allocation3 + $0xb8] sm:$0xf]
      %v3726 = vld [vmem:[#allocation3 + $0xbc] sm:$0xf]
      %v3727 = vld [vmem:[#allocation3 + $0xc0] sm:$0xf]
      %v3728 = vld [vmem:[#allocation3 + $0xc4] sm:$0xf]
      %v3729 = vld [vmem:[#allocation3 + $0xc8] sm:$0xf]
      %v3730 = vld [vmem:[#allocation3 + $0xcc] sm:$0xf]
      %v3731 = vld [vmem:[#allocation3 + $0xd0] sm:$0xf]
      %v3732 = vld [vmem:[#allocation3 + $0xd4] sm:$0xf]
      %v3733 = vld [vmem:[#allocation3 + $0xd8] sm:$0xf]
      %v3734 = vld [vmem:[#allocation3 + $0xdc] sm:$0xf]
      %v3735 = vld [vmem:[#allocation3 + $0xe0] sm:$0xf]
      %v3736 = vld [vmem:[#allocation3 + $0xe4] sm:$0xf]
      %v3737 = vld [vmem:[#allocation3 + $0xe8] sm:$0xf]
      %v3738 = vld [vmem:[#allocation3 + $0xec] sm:$0xf]
      %v3739 = vld [vmem:[#allocation3 + $0xf0] sm:$0xf]
      %v3740 = vld [vmem:[#allocation3 + $0xf4] sm:$0xf]
      %v3741 = vld [vmem:[#allocation3 + $0xf8] sm:$0xf]
      %v3742 = vld [vmem:[#allocation3 + $0xfc] sm:$0xf]
      %v3743 = vld [vmem:[#allocation3 + $0x100] sm:$0xf]
      %v3744 = vld [vmem:[#allocation3 + $0x104] sm:$0xf]
      %v3745 = vld [vmem:[#allocation3 + $0x108] sm:$0xf]
      %v3746 = vld [vmem:[#allocation3 + $0x10c] sm:$0xf]
      %v3747 = vld [vmem:[#allocation3 + $0x110] sm:$0xf]
      %v3748 = vld [vmem:[#allocation3 + $0x114] sm:$0xf]
      %v3749 = vld [vmem:[#allocation3 + $0x118] sm:$0xf]
      %v3750 = vld [vmem:[#allocation3 + $0x11c] sm:$0xf]
      %v3805 = vunpack.c.l.b16 %v3679
      %v3806 = vunpack.c.l.b16 %v3680
      %v3807 = vunpack.c.l.b16 %v3681
      %v3808 = vunpack.c.l.b16 %v3683
      %v3809 = vunpack.c.l.b16 %v3684
      %v3810 = vunpack.c.l.b16 %v3685
      %v3811 = vunpack.c.l.b16 %v3687
      %v3812 = vunpack.c.l.b16 %v3688
      %v3813 = vunpack.c.l.b16 %v3689
      %v3814 = vunpack.c.l.b16 %v3691
      %v3815 = vunpack.c.l.b16 %v3692
      %v3816 = vunpack.c.l.b16 %v3693
      %v3817 = vunpack.c.l.b16 %v3695
      %v3818 = vunpack.c.l.b16 %v3696
      %v3819 = vunpack.c.l.b16 %v3697
      %v3820 = vunpack.c.l.b16 %v3699
      %v3821 = vunpack.c.l.b16 %v3700
      %v3822 = vunpack.c.l.b16 %v3701
      %v3823 = vunpack.c.l.b16 %v3703
      %v3824 = vunpack.c.l.b16 %v3704
      %v3825 = vunpack.c.l.b16 %v3705
      %v3826 = vunpack.c.l.b16 %v3707
      %v3827 = vunpack.c.l.b16 %v3708
      %v3828 = vunpack.c.l.b16 %v3709
      %v3829 = vunpack.c.l.b16 %v3711
      %v3830 = vunpack.c.l.b16 %v3712
      %v3831 = vunpack.c.l.b16 %v3713
      %v3832 = vunpack.c.l.b16 %v3715
      %v3833 = vunpack.c.l.b16 %v3716
      %v3834 = vunpack.c.l.b16 %v3717
      %v3835 = vunpack.c.l.b16 %v3719
      %v3836 = vunpack.c.l.b16 %v3720
      %v3837 = vunpack.c.l.b16 %v3721
      %v3838 = vunpack.c.l.b16 %v3723
      %v3839 = vunpack.c.l.b16 %v3724
      %v3840 = vunpack.c.l.b16 %v3725
      %v3841 = vunpack.c.l.b16 %v3727
      %v3842 = vunpack.c.l.b16 %v3728
      %v3843 = vunpack.c.l.b16 %v3729
      %v3844 = vunpack.c.l.b16 %v3731
      %v3845 = vunpack.c.l.b16 %v3732
      %v3846 = vunpack.c.l.b16 %v3733
      %v3847 = vunpack.c.l.b16 %v3735
      %v3848 = vunpack.c.l.b16 %v3736
      %v3849 = vunpack.c.l.b16 %v3737
      %v3850 = vunpack.c.l.b16 %v3739
      %v3851 = vunpack.c.l.b16 %v3740
      %v3852 = vunpack.c.l.b16 %v3741
      %v3853 = vunpack.c.l.b16 %v3743
      %v3854 = vunpack.c.l.b16 %v3744
      %v3855 = vunpack.c.l.b16 %v3745
      %v3856 = vunpack.c.l.b16 %v3747
      %v3857 = vunpack.c.l.b16 %v3748
      %v3858 = vunpack.c.l.b16 %v3749
      %v3859 = vpack.c.b16 %v3806, %v3805
      %v3860 = vpack.c.b16 %v3807, %v3807
      %v3861 = vpack.c.b16 %v3809, %v3808
      %v3862 = vpack.c.b16 %v3810, %v3810
      %v3863 = vpack.c.b16 %v3812, %v3811
      %v3864 = vpack.c.b16 %v3813, %v3813
      %v3865 = vpack.c.b16 %v3815, %v3814
      %v3866 = vpack.c.b16 %v3816, %v3816
      %v3867 = vpack.c.b16 %v3818, %v3817
      %v3868 = vpack.c.b16 %v3819, %v3819
      %v3869 = vpack.c.b16 %v3821, %v3820
      %v3870 = vpack.c.b16 %v3822, %v3822
      %v3871 = vpack.c.b16 %v3824, %v3823
      %v3872 = vpack.c.b16 %v3825, %v3825
      %v3873 = vpack.c.b16 %v3827, %v3826
      %v3874 = vpack.c.b16 %v3828, %v3828
      %v3875 = vpack.c.b16 %v3830, %v3829
      %v3876 = vpack.c.b16 %v3831, %v3831
      %v3877 = vpack.c.b16 %v3833, %v3832
      %v3878 = vpack.c.b16 %v3834, %v3834
      %v3879 = vpack.c.b16 %v3836, %v3835
      %v3880 = vpack.c.b16 %v3837, %v3837
      %v3881 = vpack.c.b16 %v3839, %v3838
      %v3882 = vpack.c.b16 %v3840, %v3840
      %v3883 = vpack.c.b16 %v3842, %v3841
      %v3884 = vpack.c.b16 %v3843, %v3843
      %v3885 = vpack.c.b16 %v3845, %v3844
      %v3886 = vpack.c.b16 %v3846, %v3846
      %v3887 = vpack.c.b16 %v3848, %v3847
      %v3888 = vpack.c.b16 %v3849, %v3849
      %v3889 = vpack.c.b16 %v3851, %v3850
      %v3890 = vpack.c.b16 %v3852, %v3852
      %v3891 = vpack.c.b16 %v3854, %v3853
      %v3892 = vpack.c.b16 %v3855, %v3855
      %v3893 = vpack.c.b16 %v3857, %v3856
      %v3894 = vpack.c.b16 %v3858, %v3858
      %v3895 = vpack.c.b16 %v3807, %v3806
      %v3896 = vpack.c.b16 %v3810, %v3809
      %v3897 = vpack.c.b16 %v3813, %v3812
      %v3898 = vpack.c.b16 %v3816, %v3815
      %v3899 = vpack.c.b16 %v3819, %v3818
      %v3900 = vpack.c.b16 %v3822, %v3821
      %v3901 = vpack.c.b16 %v3825, %v3824
      %v3902 = vpack.c.b16 %v3828, %v3827
      %v3903 = vpack.c.b16 %v3831, %v3830
      %v3904 = vpack.c.b16 %v3834, %v3833
      %v3905 = vpack.c.b16 %v3837, %v3836
      %v3906 = vpack.c.b16 %v3840, %v3839
      %v3907 = vpack.c.b16 %v3843, %v3842
      %v3908 = vpack.c.b16 %v3846, %v3845
      %v3909 = vpack.c.b16 %v3849, %v3848
      %v3910 = vpack.c.b16 %v3852, %v3851
      %v3911 = vpack.c.b16 %v3855, %v3854
      %v3912 = vpack.c.b16 %v3858, %v3857
      %v3914 = vshrl.u32 %v3895, 16
      %v3916 = vrot.slane %v3914, 4
      %v3917 = vshll.u32 %v3895, 16
      %v3919 = vrot.slane %v3917, 5
      %v3920 = vor.u32 %v3916, %v3919
      %v3922 = vshrl.u32 %v3896, 16
      %v3924 = vrot.slane %v3922, 4
      %v3925 = vshll.u32 %v3896, 16
      %v3927 = vrot.slane %v3925, 5
      %v3928 = vor.u32 %v3924, %v3927
      %v3930 = vshrl.u32 %v3897, 16
      %v3932 = vrot.slane %v3930, 4
      %v3933 = vshll.u32 %v3897, 16
      %v3935 = vrot.slane %v3933, 5
      %v3936 = vor.u32 %v3932, %v3935
      %v3938 = vshrl.u32 %v3898, 16
      %v3940 = vrot.slane %v3938, 4
      %v3941 = vshll.u32 %v3898, 16
      %v3943 = vrot.slane %v3941, 5
      %v3944 = vor.u32 %v3940, %v3943
      %v3946 = vshrl.u32 %v3899, 16
      %v3948 = vrot.slane %v3946, 4
      %v3949 = vshll.u32 %v3899, 16
      %v3951 = vrot.slane %v3949, 5
      %v3952 = vor.u32 %v3948, %v3951
      %v3954 = vshrl.u32 %v3900, 16
      %v3956 = vrot.slane %v3954, 4
      %v3957 = vshll.u32 %v3900, 16
      %v3959 = vrot.slane %v3957, 5
      %v3960 = vor.u32 %v3956, %v3959
      %v3962 = vshrl.u32 %v3901, 16
      %v3964 = vrot.slane %v3962, 4
      %v3965 = vshll.u32 %v3901, 16
      %v3967 = vrot.slane %v3965, 5
      %v3968 = vor.u32 %v3964, %v3967
      %v3970 = vshrl.u32 %v3902, 16
      %v3972 = vrot.slane %v3970, 4
      %v3973 = vshll.u32 %v3902, 16
      %v3975 = vrot.slane %v3973, 5
      %v3976 = vor.u32 %v3972, %v3975
      %v3978 = vshrl.u32 %v3903, 16
      %v3980 = vrot.slane %v3978, 4
      %v3981 = vshll.u32 %v3903, 16
      %v3983 = vrot.slane %v3981, 5
      %v3984 = vor.u32 %v3980, %v3983
      %v3986 = vshrl.u32 %v3904, 16
      %v3988 = vrot.slane %v3986, 4
      %v3989 = vshll.u32 %v3904, 16
      %v3991 = vrot.slane %v3989, 5
      %v3992 = vor.u32 %v3988, %v3991
      %v3994 = vshrl.u32 %v3905, 16
      %v3996 = vrot.slane %v3994, 4
      %v3997 = vshll.u32 %v3905, 16
      %v3999 = vrot.slane %v3997, 5
      %v4000 = vor.u32 %v3996, %v3999
      %v4002 = vshrl.u32 %v3906, 16
      %v4004 = vrot.slane %v4002, 4
      %v4005 = vshll.u32 %v3906, 16
      %v4007 = vrot.slane %v4005, 5
      %v4008 = vor.u32 %v4004, %v4007
      %v4010 = vshrl.u32 %v3907, 16
      %v4012 = vrot.slane %v4010, 4
      %v4013 = vshll.u32 %v3907, 16
      %v4015 = vrot.slane %v4013, 5
      %v4016 = vor.u32 %v4012, %v4015
      %v4018 = vshrl.u32 %v3908, 16
      %v4020 = vrot.slane %v4018, 4
      %v4021 = vshll.u32 %v3908, 16
      %v4023 = vrot.slane %v4021, 5
      %v4024 = vor.u32 %v4020, %v4023
      %v4026 = vshrl.u32 %v3909, 16
      %v4028 = vrot.slane %v4026, 4
      %v4029 = vshll.u32 %v3909, 16
      %v4031 = vrot.slane %v4029, 5
      %v4032 = vor.u32 %v4028, %v4031
      %v4034 = vshrl.u32 %v3910, 16
      %v4036 = vrot.slane %v4034, 4
      %v4037 = vshll.u32 %v3910, 16
      %v4039 = vrot.slane %v4037, 5
      %v4040 = vor.u32 %v4036, %v4039
      %v4042 = vshrl.u32 %v3911, 16
      %v4044 = vrot.slane %v4042, 4
      %v4045 = vshll.u32 %v3911, 16
      %v4047 = vrot.slane %v4045, 5
      %v4048 = vor.u32 %v4044, %v4047
      %v4050 = vshrl.u32 %v3912, 16
      %v4052 = vrot.slane %v4050, 4
      %v4053 = vshll.u32 %v3912, 16
      %v4055 = vrot.slane %v4053, 5
      %v4056 = vor.u32 %v4052, %v4055
      %v4075 = vunpack.c.l.b16 %v3682
      %v4076 = vunpack.c.l.b16 %v3686
      %v4077 = vunpack.c.l.b16 %v3690
      %v4078 = vunpack.c.l.b16 %v3694
      %v4079 = vunpack.c.l.b16 %v3698
      %v4080 = vunpack.c.l.b16 %v3702
      %v4081 = vunpack.c.l.b16 %v3706
      %v4082 = vunpack.c.l.b16 %v3710
      %v4083 = vunpack.c.l.b16 %v3714
      %v4084 = vunpack.c.l.b16 %v3718
      %v4085 = vunpack.c.l.b16 %v3722
      %v4086 = vunpack.c.l.b16 %v3726
      %v4087 = vunpack.c.l.b16 %v3730
      %v4088 = vunpack.c.l.b16 %v3734
      %v4089 = vunpack.c.l.b16 %v3738
      %v4090 = vunpack.c.l.b16 %v3742
      %v4091 = vunpack.c.l.b16 %v3746
      %v4092 = vunpack.c.l.b16 %v3750
      %v4093 = vpack.c.b16 %v4075, %v4075
      %v4094 = vpack.c.b16 %v4076, %v4076
      %v4095 = vpack.c.b16 %v4077, %v4077
      %v4096 = vpack.c.b16 %v4078, %v4078
      %v4097 = vpack.c.b16 %v4079, %v4079
      %v4098 = vpack.c.b16 %v4080, %v4080
      %v4099 = vpack.c.b16 %v4081, %v4081
      %v4100 = vpack.c.b16 %v4082, %v4082
      %v4101 = vpack.c.b16 %v4083, %v4083
      %v4102 = vpack.c.b16 %v4084, %v4084
      %v4103 = vpack.c.b16 %v4085, %v4085
      %v4104 = vpack.c.b16 %v4086, %v4086
      %v4105 = vpack.c.b16 %v4087, %v4087
      %v4106 = vpack.c.b16 %v4088, %v4088
      %v4107 = vpack.c.b16 %v4089, %v4089
      %v4108 = vpack.c.b16 %v4090, %v4090
      %v4109 = vpack.c.b16 %v4091, %v4091
      %v4110 = vpack.c.b16 %v4092, %v4092
      %v4111 = vrot.slane %v3895, 5
      %v4112 = vrot.slane %v4093, 5
      %v4113 = vsel %vm948, %v4111, %v4112
      %v4114 = vrot.slane %v3896, 5
      %v4115 = vrot.slane %v4094, 5
      %v4116 = vsel %vm948, %v4114, %v4115
      %v4117 = vrot.slane %v3897, 5
      %v4118 = vrot.slane %v4095, 5
      %v4119 = vsel %vm948, %v4117, %v4118
      %v4120 = vrot.slane %v3898, 5
      %v4121 = vrot.slane %v4096, 5
      %v4122 = vsel %vm948, %v4120, %v4121
      %v4123 = vrot.slane %v3899, 5
      %v4124 = vrot.slane %v4097, 5
      %v4125 = vsel %vm948, %v4123, %v4124
      %v4126 = vrot.slane %v3900, 5
      %v4127 = vrot.slane %v4098, 5
      %v4128 = vsel %vm948, %v4126, %v4127
      %v4129 = vrot.slane %v3901, 5
      %v4130 = vrot.slane %v4099, 5
      %v4131 = vsel %vm948, %v4129, %v4130
      %v4132 = vrot.slane %v3902, 5
      %v4133 = vrot.slane %v4100, 5
      %v4134 = vsel %vm948, %v4132, %v4133
      %v4135 = vrot.slane %v3903, 5
      %v4136 = vrot.slane %v4101, 5
      %v4137 = vsel %vm948, %v4135, %v4136
      %v4138 = vrot.slane %v3904, 5
      %v4139 = vrot.slane %v4102, 5
      %v4140 = vsel %vm948, %v4138, %v4139
      %v4141 = vrot.slane %v3905, 5
      %v4142 = vrot.slane %v4103, 5
      %v4143 = vsel %vm948, %v4141, %v4142
      %v4144 = vrot.slane %v3906, 5
      %v4145 = vrot.slane %v4104, 5
      %v4146 = vsel %vm948, %v4144, %v4145
      %v4147 = vrot.slane %v3907, 5
      %v4148 = vrot.slane %v4105, 5
      %v4149 = vsel %vm948, %v4147, %v4148
      %v4150 = vrot.slane %v3908, 5
      %v4151 = vrot.slane %v4106, 5
      %v4152 = vsel %vm948, %v4150, %v4151
      %v4153 = vrot.slane %v3909, 5
      %v4154 = vrot.slane %v4107, 5
      %v4155 = vsel %vm948, %v4153, %v4154
      %v4156 = vrot.slane %v3910, 5
      %v4157 = vrot.slane %v4108, 5
      %v4158 = vsel %vm948, %v4156, %v4157
      %v4159 = vrot.slane %v3911, 5
      %v4160 = vrot.slane %v4109, 5
      %v4161 = vsel %vm948, %v4159, %v4160
      %v4162 = vrot.slane %v3912, 5
      %v4163 = vrot.slane %v4110, 5
      %v4164 = vsel %vm948, %v4162, %v4163
      %v4166 = vshrl.u32 %v3859, 16
      %v4168 = vrot.slane %v4166, 3
      %v4169 = vshll.u32 %v3859, 16
      %v4171 = vrot.slane %v4169, 4
      %v4172 = vor.u32 %v4168, %v4171
      %v4174 = vshrl.u32 %v3860, 16
      %v4176 = vrot.slane %v4174, 3
      %v4177 = vshll.u32 %v3860, 16
      %v4179 = vrot.slane %v4177, 4
      %v4180 = vor.u32 %v4176, %v4179
      %v4181 = vsel %vm1003, %v4172, %v4180
      %v4183 = vshrl.u32 %v3920, 16
      %v4185 = vrot.slane %v4183, 3
      %v4186 = vshll.u32 %v3920, 16
      %v4188 = vrot.slane %v4186, 4
      %v4189 = vor.u32 %v4185, %v4188
      %v4190 = vsel %vm1003, %v4189, %v4189
      %v4192 = vshrl.u32 %v4111, 16
      %v4194 = vrot.slane %v4192, 3
      %v4195 = vshll.u32 %v4111, 16
      %v4197 = vrot.slane %v4195, 4
      %v4198 = vor.u32 %v4194, %v4197
      %v4200 = vshrl.u32 %v4113, 16
      %v4202 = vrot.slane %v4200, 3
      %v4203 = vshll.u32 %v4113, 16
      %v4205 = vrot.slane %v4203, 4
      %v4206 = vor.u32 %v4202, %v4205
      %v4207 = vsel %vm1003, %v4198, %v4206
      %v4209 = vshrl.u32 %v3861, 16
      %v4211 = vrot.slane %v4209, 3
      %v4212 = vshll.u32 %v3861, 16
      %v4214 = vrot.slane %v4212, 4
      %v4215 = vor.u32 %v4211, %v4214
      %v4217 = vshrl.u32 %v3862, 16
      %v4219 = vrot.slane %v4217, 3
      %v4220 = vshll.u32 %v3862, 16
      %v4222 = vrot.slane %v4220, 4
      %v4223 = vor.u32 %v4219, %v4222
      %v4224 = vsel %vm1003, %v4215, %v4223
      %v4226 = vshrl.u32 %v3928, 16
      %v4228 = vrot.slane %v4226, 3
      %v4229 = vshll.u32 %v3928, 16
      %v4231 = vrot.slane %v4229, 4
      %v4232 = vor.u32 %v4228, %v4231
      %v4233 = vsel %vm1003, %v4232, %v4232
      %v4235 = vshrl.u32 %v4114, 16
      %v4237 = vrot.slane %v4235, 3
      %v4238 = vshll.u32 %v4114, 16
      %v4240 = vrot.slane %v4238, 4
      %v4241 = vor.u32 %v4237, %v4240
      %v4243 = vshrl.u32 %v4116, 16
      %v4245 = vrot.slane %v4243, 3
      %v4246 = vshll.u32 %v4116, 16
      %v4248 = vrot.slane %v4246, 4
      %v4249 = vor.u32 %v4245, %v4248
      %v4250 = vsel %vm1003, %v4241, %v4249
      %v4252 = vshrl.u32 %v3863, 16
      %v4254 = vrot.slane %v4252, 3
      %v4255 = vshll.u32 %v3863, 16
      %v4257 = vrot.slane %v4255, 4
      %v4258 = vor.u32 %v4254, %v4257
      %v4260 = vshrl.u32 %v3864, 16
      %v4262 = vrot.slane %v4260, 3
      %v4263 = vshll.u32 %v3864, 16
      %v4265 = vrot.slane %v4263, 4
      %v4266 = vor.u32 %v4262, %v4265
      %v4267 = vsel %vm1003, %v4258, %v4266
      %v4269 = vshrl.u32 %v3936, 16
      %v4271 = vrot.slane %v4269, 3
      %v4272 = vshll.u32 %v3936, 16
      %v4274 = vrot.slane %v4272, 4
      %v4275 = vor.u32 %v4271, %v4274
      %v4276 = vsel %vm1003, %v4275, %v4275
      %v4278 = vshrl.u32 %v4117, 16
      %v4280 = vrot.slane %v4278, 3
      %v4281 = vshll.u32 %v4117, 16
      %v4283 = vrot.slane %v4281, 4
      %v4284 = vor.u32 %v4280, %v4283
      %v4286 = vshrl.u32 %v4119, 16
      %v4288 = vrot.slane %v4286, 3
      %v4289 = vshll.u32 %v4119, 16
      %v4291 = vrot.slane %v4289, 4
      %v4292 = vor.u32 %v4288, %v4291
      %v4293 = vsel %vm1003, %v4284, %v4292
      %v4295 = vshrl.u32 %v3865, 16
      %v4297 = vrot.slane %v4295, 3
      %v4298 = vshll.u32 %v3865, 16
      %v4300 = vrot.slane %v4298, 4
      %v4301 = vor.u32 %v4297, %v4300
      %v4303 = vshrl.u32 %v3866, 16
      %v4305 = vrot.slane %v4303, 3
      %v4306 = vshll.u32 %v3866, 16
      %v4308 = vrot.slane %v4306, 4
      %v4309 = vor.u32 %v4305, %v4308
      %v4310 = vsel %vm1003, %v4301, %v4309
      %v4312 = vshrl.u32 %v3944, 16
      %v4314 = vrot.slane %v4312, 3
      %v4315 = vshll.u32 %v3944, 16
      %v4317 = vrot.slane %v4315, 4
      %v4318 = vor.u32 %v4314, %v4317
      %v4319 = vsel %vm1003, %v4318, %v4318
      %v4321 = vshrl.u32 %v4120, 16
      %v4323 = vrot.slane %v4321, 3
      %v4324 = vshll.u32 %v4120, 16
      %v4326 = vrot.slane %v4324, 4
      %v4327 = vor.u32 %v4323, %v4326
      %v4329 = vshrl.u32 %v4122, 16
      %v4331 = vrot.slane %v4329, 3
      %v4332 = vshll.u32 %v4122, 16
      %v4334 = vrot.slane %v4332, 4
      %v4335 = vor.u32 %v4331, %v4334
      %v4336 = vsel %vm1003, %v4327, %v4335
      %v4338 = vshrl.u32 %v3867, 16
      %v4340 = vrot.slane %v4338, 3
      %v4341 = vshll.u32 %v3867, 16
      %v4343 = vrot.slane %v4341, 4
      %v4344 = vor.u32 %v4340, %v4343
      %v4346 = vshrl.u32 %v3868, 16
      %v4348 = vrot.slane %v4346, 3
      %v4349 = vshll.u32 %v3868, 16
      %v4351 = vrot.slane %v4349, 4
      %v4352 = vor.u32 %v4348, %v4351
      %v4353 = vsel %vm1003, %v4344, %v4352
      %v4355 = vshrl.u32 %v3952, 16
      %v4357 = vrot.slane %v4355, 3
      %v4358 = vshll.u32 %v3952, 16
      %v4360 = vrot.slane %v4358, 4
      %v4361 = vor.u32 %v4357, %v4360
      %v4362 = vsel %vm1003, %v4361, %v4361
      %v4364 = vshrl.u32 %v4123, 16
      %v4366 = vrot.slane %v4364, 3
      %v4367 = vshll.u32 %v4123, 16
      %v4369 = vrot.slane %v4367, 4
      %v4370 = vor.u32 %v4366, %v4369
      %v4372 = vshrl.u32 %v4125, 16
      %v4374 = vrot.slane %v4372, 3
      %v4375 = vshll.u32 %v4125, 16
      %v4377 = vrot.slane %v4375, 4
      %v4378 = vor.u32 %v4374, %v4377
      %v4379 = vsel %vm1003, %v4370, %v4378
      %v4381 = vshrl.u32 %v3869, 16
      %v4383 = vrot.slane %v4381, 3
      %v4384 = vshll.u32 %v3869, 16
      %v4386 = vrot.slane %v4384, 4
      %v4387 = vor.u32 %v4383, %v4386
      %v4389 = vshrl.u32 %v3870, 16
      %v4391 = vrot.slane %v4389, 3
      %v4392 = vshll.u32 %v3870, 16
      %v4394 = vrot.slane %v4392, 4
      %v4395 = vor.u32 %v4391, %v4394
      %v4396 = vsel %vm1003, %v4387, %v4395
      %v4398 = vshrl.u32 %v3960, 16
      %v4400 = vrot.slane %v4398, 3
      %v4401 = vshll.u32 %v3960, 16
      %v4403 = vrot.slane %v4401, 4
      %v4404 = vor.u32 %v4400, %v4403
      %v4405 = vsel %vm1003, %v4404, %v4404
      %v4407 = vshrl.u32 %v4126, 16
      %v4409 = vrot.slane %v4407, 3
      %v4410 = vshll.u32 %v4126, 16
      %v4412 = vrot.slane %v4410, 4
      %v4413 = vor.u32 %v4409, %v4412
      %v4415 = vshrl.u32 %v4128, 16
      %v4417 = vrot.slane %v4415, 3
      %v4418 = vshll.u32 %v4128, 16
      %v4420 = vrot.slane %v4418, 4
      %v4421 = vor.u32 %v4417, %v4420
      %v4422 = vsel %vm1003, %v4413, %v4421
      %v4424 = vshrl.u32 %v3871, 16
      %v4426 = vrot.slane %v4424, 3
      %v4427 = vshll.u32 %v3871, 16
      %v4429 = vrot.slane %v4427, 4
      %v4430 = vor.u32 %v4426, %v4429
      %v4432 = vshrl.u32 %v3872, 16
      %v4434 = vrot.slane %v4432, 3
      %v4435 = vshll.u32 %v3872, 16
      %v4437 = vrot.slane %v4435, 4
      %v4438 = vor.u32 %v4434, %v4437
      %v4439 = vsel %vm1003, %v4430, %v4438
      %v4441 = vshrl.u32 %v3968, 16
      %v4443 = vrot.slane %v4441, 3
      %v4444 = vshll.u32 %v3968, 16
      %v4446 = vrot.slane %v4444, 4
      %v4447 = vor.u32 %v4443, %v4446
      %v4448 = vsel %vm1003, %v4447, %v4447
      %v4450 = vshrl.u32 %v4129, 16
      %v4452 = vrot.slane %v4450, 3
      %v4453 = vshll.u32 %v4129, 16
      %v4455 = vrot.slane %v4453, 4
      %v4456 = vor.u32 %v4452, %v4455
      %v4458 = vshrl.u32 %v4131, 16
      %v4460 = vrot.slane %v4458, 3
      %v4461 = vshll.u32 %v4131, 16
      %v4463 = vrot.slane %v4461, 4
      %v4464 = vor.u32 %v4460, %v4463
      %v4465 = vsel %vm1003, %v4456, %v4464
      %v4467 = vshrl.u32 %v3873, 16
      %v4469 = vrot.slane %v4467, 3
      %v4470 = vshll.u32 %v3873, 16
      %v4472 = vrot.slane %v4470, 4
      %v4473 = vor.u32 %v4469, %v4472
      %v4475 = vshrl.u32 %v3874, 16
      %v4477 = vrot.slane %v4475, 3
      %v4478 = vshll.u32 %v3874, 16
      %v4480 = vrot.slane %v4478, 4
      %v4481 = vor.u32 %v4477, %v4480
      %v4482 = vsel %vm1003, %v4473, %v4481
      %v4484 = vshrl.u32 %v3976, 16
      %v4486 = vrot.slane %v4484, 3
      %v4487 = vshll.u32 %v3976, 16
      %v4489 = vrot.slane %v4487, 4
      %v4490 = vor.u32 %v4486, %v4489
      %v4491 = vsel %vm1003, %v4490, %v4490
      %v4493 = vshrl.u32 %v4132, 16
      %v4495 = vrot.slane %v4493, 3
      %v4496 = vshll.u32 %v4132, 16
      %v4498 = vrot.slane %v4496, 4
      %v4499 = vor.u32 %v4495, %v4498
      %v4501 = vshrl.u32 %v4134, 16
      %v4503 = vrot.slane %v4501, 3
      %v4504 = vshll.u32 %v4134, 16
      %v4506 = vrot.slane %v4504, 4
      %v4507 = vor.u32 %v4503, %v4506
      %v4508 = vsel %vm1003, %v4499, %v4507
      %v4510 = vshrl.u32 %v3875, 16
      %v4512 = vrot.slane %v4510, 3
      %v4513 = vshll.u32 %v3875, 16
      %v4515 = vrot.slane %v4513, 4
      %v4516 = vor.u32 %v4512, %v4515
      %v4518 = vshrl.u32 %v3876, 16
      %v4520 = vrot.slane %v4518, 3
      %v4521 = vshll.u32 %v3876, 16
      %v4523 = vrot.slane %v4521, 4
      %v4524 = vor.u32 %v4520, %v4523
      %v4525 = vsel %vm1003, %v4516, %v4524
      %v4527 = vshrl.u32 %v3984, 16
      %v4529 = vrot.slane %v4527, 3
      %v4530 = vshll.u32 %v3984, 16
      %v4532 = vrot.slane %v4530, 4
      %v4533 = vor.u32 %v4529, %v4532
      %v4534 = vsel %vm1003, %v4533, %v4533
      %v4536 = vshrl.u32 %v4135, 16
      %v4538 = vrot.slane %v4536, 3
      %v4539 = vshll.u32 %v4135, 16
      %v4541 = vrot.slane %v4539, 4
      %v4542 = vor.u32 %v4538, %v4541
      %v4544 = vshrl.u32 %v4137, 16
      %v4546 = vrot.slane %v4544, 3
      %v4547 = vshll.u32 %v4137, 16
      %v4549 = vrot.slane %v4547, 4
      %v4550 = vor.u32 %v4546, %v4549
      %v4551 = vsel %vm1003, %v4542, %v4550
      %v4553 = vshrl.u32 %v3877, 16
      %v4555 = vrot.slane %v4553, 3
      %v4556 = vshll.u32 %v3877, 16
      %v4558 = vrot.slane %v4556, 4
      %v4559 = vor.u32 %v4555, %v4558
      %v4561 = vshrl.u32 %v3878, 16
      %v4563 = vrot.slane %v4561, 3
      %v4564 = vshll.u32 %v3878, 16
      %v4566 = vrot.slane %v4564, 4
      %v4567 = vor.u32 %v4563, %v4566
      %v4568 = vsel %vm1003, %v4559, %v4567
      %v4570 = vshrl.u32 %v3992, 16
      %v4572 = vrot.slane %v4570, 3
      %v4573 = vshll.u32 %v3992, 16
      %v4575 = vrot.slane %v4573, 4
      %v4576 = vor.u32 %v4572, %v4575
      %v4577 = vsel %vm1003, %v4576, %v4576
      %v4579 = vshrl.u32 %v4138, 16
      %v4581 = vrot.slane %v4579, 3
      %v4582 = vshll.u32 %v4138, 16
      %v4584 = vrot.slane %v4582, 4
      %v4585 = vor.u32 %v4581, %v4584
      %v4587 = vshrl.u32 %v4140, 16
      %v4589 = vrot.slane %v4587, 3
      %v4590 = vshll.u32 %v4140, 16
      %v4592 = vrot.slane %v4590, 4
      %v4593 = vor.u32 %v4589, %v4592
      %v4594 = vsel %vm1003, %v4585, %v4593
      %v4596 = vshrl.u32 %v3879, 16
      %v4598 = vrot.slane %v4596, 3
      %v4599 = vshll.u32 %v3879, 16
      %v4601 = vrot.slane %v4599, 4
      %v4602 = vor.u32 %v4598, %v4601
      %v4604 = vshrl.u32 %v3880, 16
      %v4606 = vrot.slane %v4604, 3
      %v4607 = vshll.u32 %v3880, 16
      %v4609 = vrot.slane %v4607, 4
      %v4610 = vor.u32 %v4606, %v4609
      %v4611 = vsel %vm1003, %v4602, %v4610
      %v4613 = vshrl.u32 %v4000, 16
      %v4615 = vrot.slane %v4613, 3
      %v4616 = vshll.u32 %v4000, 16
      %v4618 = vrot.slane %v4616, 4
      %v4619 = vor.u32 %v4615, %v4618
      %v4620 = vsel %vm1003, %v4619, %v4619
      %v4622 = vshrl.u32 %v4141, 16
      %v4624 = vrot.slane %v4622, 3
      %v4625 = vshll.u32 %v4141, 16
      %v4627 = vrot.slane %v4625, 4
      %v4628 = vor.u32 %v4624, %v4627
      %v4630 = vshrl.u32 %v4143, 16
      %v4632 = vrot.slane %v4630, 3
      %v4633 = vshll.u32 %v4143, 16
      %v4635 = vrot.slane %v4633, 4
      %v4636 = vor.u32 %v4632, %v4635
      %v4637 = vsel %vm1003, %v4628, %v4636
      %v4639 = vshrl.u32 %v3881, 16
      %v4641 = vrot.slane %v4639, 3
      %v4642 = vshll.u32 %v3881, 16
      %v4644 = vrot.slane %v4642, 4
      %v4645 = vor.u32 %v4641, %v4644
      %v4647 = vshrl.u32 %v3882, 16
      %v4649 = vrot.slane %v4647, 3
      %v4650 = vshll.u32 %v3882, 16
      %v4652 = vrot.slane %v4650, 4
      %v4653 = vor.u32 %v4649, %v4652
      %v4654 = vsel %vm1003, %v4645, %v4653
      %v4656 = vshrl.u32 %v4008, 16
      %v4658 = vrot.slane %v4656, 3
      %v4659 = vshll.u32 %v4008, 16
      %v4661 = vrot.slane %v4659, 4
      %v4662 = vor.u32 %v4658, %v4661
      %v4663 = vsel %vm1003, %v4662, %v4662
      %v4665 = vshrl.u32 %v4144, 16
      %v4667 = vrot.slane %v4665, 3
      %v4668 = vshll.u32 %v4144, 16
      %v4670 = vrot.slane %v4668, 4
      %v4671 = vor.u32 %v4667, %v4670
      %v4673 = vshrl.u32 %v4146, 16
      %v4675 = vrot.slane %v4673, 3
      %v4676 = vshll.u32 %v4146, 16
      %v4678 = vrot.slane %v4676, 4
      %v4679 = vor.u32 %v4675, %v4678
      %v4680 = vsel %vm1003, %v4671, %v4679
      %v4682 = vshrl.u32 %v3883, 16
      %v4684 = vrot.slane %v4682, 3
      %v4685 = vshll.u32 %v3883, 16
      %v4687 = vrot.slane %v4685, 4
      %v4688 = vor.u32 %v4684, %v4687
      %v4690 = vshrl.u32 %v3884, 16
      %v4692 = vrot.slane %v4690, 3
      %v4693 = vshll.u32 %v3884, 16
      %v4695 = vrot.slane %v4693, 4
      %v4696 = vor.u32 %v4692, %v4695
      %v4697 = vsel %vm1003, %v4688, %v4696
      %v4699 = vshrl.u32 %v4016, 16
      %v4701 = vrot.slane %v4699, 3
      %v4702 = vshll.u32 %v4016, 16
      %v4704 = vrot.slane %v4702, 4
      %v4705 = vor.u32 %v4701, %v4704
      %v4706 = vsel %vm1003, %v4705, %v4705
      %v4708 = vshrl.u32 %v4147, 16
      %v4710 = vrot.slane %v4708, 3
      %v4711 = vshll.u32 %v4147, 16
      %v4713 = vrot.slane %v4711, 4
      %v4714 = vor.u32 %v4710, %v4713
      %v4716 = vshrl.u32 %v4149, 16
      %v4718 = vrot.slane %v4716, 3
      %v4719 = vshll.u32 %v4149, 16
      %v4721 = vrot.slane %v4719, 4
      %v4722 = vor.u32 %v4718, %v4721
      %v4723 = vsel %vm1003, %v4714, %v4722
      %v4725 = vshrl.u32 %v3885, 16
      %v4727 = vrot.slane %v4725, 3
      %v4728 = vshll.u32 %v3885, 16
      %v4730 = vrot.slane %v4728, 4
      %v4731 = vor.u32 %v4727, %v4730
      %v4733 = vshrl.u32 %v3886, 16
      %v4735 = vrot.slane %v4733, 3
      %v4736 = vshll.u32 %v3886, 16
      %v4738 = vrot.slane %v4736, 4
      %v4739 = vor.u32 %v4735, %v4738
      %v4740 = vsel %vm1003, %v4731, %v4739
      %v4742 = vshrl.u32 %v4024, 16
      %v4744 = vrot.slane %v4742, 3
      %v4745 = vshll.u32 %v4024, 16
      %v4747 = vrot.slane %v4745, 4
      %v4748 = vor.u32 %v4744, %v4747
      %v4749 = vsel %vm1003, %v4748, %v4748
      %v4751 = vshrl.u32 %v4150, 16
      %v4753 = vrot.slane %v4751, 3
      %v4754 = vshll.u32 %v4150, 16
      %v4756 = vrot.slane %v4754, 4
      %v4757 = vor.u32 %v4753, %v4756
      %v4759 = vshrl.u32 %v4152, 16
      %v4761 = vrot.slane %v4759, 3
      %v4762 = vshll.u32 %v4152, 16
      %v4764 = vrot.slane %v4762, 4
      %v4765 = vor.u32 %v4761, %v4764
      %v4766 = vsel %vm1003, %v4757, %v4765
      %v4768 = vshrl.u32 %v3887, 16
      %v4770 = vrot.slane %v4768, 3
      %v4771 = vshll.u32 %v3887, 16
      %v4773 = vrot.slane %v4771, 4
      %v4774 = vor.u32 %v4770, %v4773
      %v4776 = vshrl.u32 %v3888, 16
      %v4778 = vrot.slane %v4776, 3
      %v4779 = vshll.u32 %v3888, 16
      %v4781 = vrot.slane %v4779, 4
      %v4782 = vor.u32 %v4778, %v4781
      %v4783 = vsel %vm1003, %v4774, %v4782
      %v4785 = vshrl.u32 %v4032, 16
      %v4787 = vrot.slane %v4785, 3
      %v4788 = vshll.u32 %v4032, 16
      %v4790 = vrot.slane %v4788, 4
      %v4791 = vor.u32 %v4787, %v4790
      %v4792 = vsel %vm1003, %v4791, %v4791
      %v4794 = vshrl.u32 %v4153, 16
      %v4796 = vrot.slane %v4794, 3
      %v4797 = vshll.u32 %v4153, 16
      %v4799 = vrot.slane %v4797, 4
      %v4800 = vor.u32 %v4796, %v4799
      %v4802 = vshrl.u32 %v4155, 16
      %v4804 = vrot.slane %v4802, 3
      %v4805 = vshll.u32 %v4155, 16
      %v4807 = vrot.slane %v4805, 4
      %v4808 = vor.u32 %v4804, %v4807
      %v4809 = vsel %vm1003, %v4800, %v4808
      %v4811 = vshrl.u32 %v3889, 16
      %v4813 = vrot.slane %v4811, 3
      %v4814 = vshll.u32 %v3889, 16
      %v4816 = vrot.slane %v4814, 4
      %v4817 = vor.u32 %v4813, %v4816
      %v4819 = vshrl.u32 %v3890, 16
      %v4821 = vrot.slane %v4819, 3
      %v4822 = vshll.u32 %v3890, 16
      %v4824 = vrot.slane %v4822, 4
      %v4825 = vor.u32 %v4821, %v4824
      %v4826 = vsel %vm1003, %v4817, %v4825
      %v4828 = vshrl.u32 %v4040, 16
      %v4830 = vrot.slane %v4828, 3
      %v4831 = vshll.u32 %v4040, 16
      %v4833 = vrot.slane %v4831, 4
      %v4834 = vor.u32 %v4830, %v4833
      %v4835 = vsel %vm1003, %v4834, %v4834
      %v4837 = vshrl.u32 %v4156, 16
      %v4839 = vrot.slane %v4837, 3
      %v4840 = vshll.u32 %v4156, 16
      %v4842 = vrot.slane %v4840, 4
      %v4843 = vor.u32 %v4839, %v4842
      %v4845 = vshrl.u32 %v4158, 16
      %v4847 = vrot.slane %v4845, 3
      %v4848 = vshll.u32 %v4158, 16
      %v4850 = vrot.slane %v4848, 4
      %v4851 = vor.u32 %v4847, %v4850
      %v4852 = vsel %vm1003, %v4843, %v4851
      %v4901 = vld [vmem:[%s4] sm:$0xf]
      %v4902 = vld [vmem:[%s4 + $0x4] sm:$0xf]
      %v4903 = vld [vmem:[%s4 + $0x8] sm:$0xf]
      %v4904 = vld [vmem:[%s4 + $0xc] sm:$0xf]
      %v4905 = vld [vmem:[%s4 + $0x10] sm:$0xf]
      %v4906 = vld [vmem:[%s4 + $0x14] sm:$0xf]
      %v4907 = vld [vmem:[%s4 + $0x18] sm:$0xf]
      %v4908 = vld [vmem:[%s4 + $0x1c] sm:$0xf]
      %v4909 = vld [vmem:[%s4 + $0x20] sm:$0xf]
      %v4910 = vld [vmem:[%s4 + $0x24] sm:$0xf]
      %v4911 = vld [vmem:[%s4 + $0x28] sm:$0xf]
      %v4912 = vld [vmem:[%s4 + $0x2c] sm:$0xf]
      %v4913 = vld [vmem:[%s4 + $0x30] sm:$0xf]
      %v4914 = vld [vmem:[%s4 + $0x34] sm:$0xf]
      %v4915 = vld [vmem:[%s4 + $0x38] sm:$0xf]
      %v4916 = vld [vmem:[%s4 + $0x3c] sm:$0xf]
      %v4917 = vld [vmem:[%s4 + $0x40] sm:$0xf]
      %v4918 = vld [vmem:[%s4 + $0x44] sm:$0xf]
      %v4919 = vld [vmem:[%s4 + $0x48] sm:$0xf]
      %v4920 = vld [vmem:[%s4 + $0x4c] sm:$0xf]
      %v4921 = vld [vmem:[%s4 + $0x50] sm:$0xf]
      %v4922 = vld [vmem:[%s4 + $0x54] sm:$0xf]
      %v4923 = vld [vmem:[%s4 + $0x58] sm:$0xf]
      %v4924 = vld [vmem:[%s4 + $0x5c] sm:$0xf]
      %v4925 = vld [vmem:[%s4 + $0x60] sm:$0xf]
      %v4926 = vld [vmem:[%s4 + $0x64] sm:$0xf]
      %v4927 = vld [vmem:[%s4 + $0x68] sm:$0xf]
      %v4928 = vld [vmem:[%s4 + $0x6c] sm:$0xf]
      %v4929 = vld [vmem:[%s4 + $0x70] sm:$0xf]
      %v4930 = vld [vmem:[%s4 + $0x74] sm:$0xf]
      %v4931 = vld [vmem:[%s4 + $0x78] sm:$0xf]
      %v4932 = vld [vmem:[%s4 + $0x7c] sm:$0xf]
      %v4933 = vld [vmem:[%s4 + $0x80] sm:$0xf]
      %v4934 = vld [vmem:[%s4 + $0x84] sm:$0xf]
      %v4935 = vld [vmem:[%s4 + $0x88] sm:$0xf]
      %v4936 = vld [vmem:[%s4 + $0x8c] sm:$0xf]
      %v4937 = vld [vmem:[%s4 + $0x90] sm:$0xf]
      %v4938 = vld [vmem:[%s4 + $0x94] sm:$0xf]
      %v4939 = vld [vmem:[%s4 + $0x98] sm:$0xf]
      %v4940 = vld [vmem:[%s4 + $0x9c] sm:$0xf]
      %v4941 = vld [vmem:[%s4 + $0xa0] sm:$0xf]
      %v4942 = vld [vmem:[%s4 + $0xa4] sm:$0xf]
      %v4943 = vld [vmem:[%s4 + $0xa8] sm:$0xf]
      %v4944 = vld [vmem:[%s4 + $0xac] sm:$0xf]
      %v4945 = vld [vmem:[%s4 + $0xb0] sm:$0xf]
      %v4946 = vld [vmem:[%s4 + $0xb4] sm:$0xf]
      %v4947 = vld [vmem:[%s4 + $0xb8] sm:$0xf]
      %v4948 = vld [vmem:[%s4 + $0xbc] sm:$0xf]
      %v4950 = vshrl.u32 %v3891, 16
      %v4952 = vrot.slane %v4950, 3
      %v4953 = vshll.u32 %v3891, 16
      %v4955 = vrot.slane %v4953, 4
      %v4956 = vor.u32 %v4952, %v4955
      %v4958 = vshrl.u32 %v3892, 16
      %v4960 = vrot.slane %v4958, 3
      %v4961 = vshll.u32 %v3892, 16
      %v4963 = vrot.slane %v4961, 4
      %v4964 = vor.u32 %v4960, %v4963
      %v4965 = vsel %vm1003, %v4956, %v4964
      %v4967 = vshrl.u32 %v4048, 16
      %v4969 = vrot.slane %v4967, 3
      %v4970 = vshll.u32 %v4048, 16
      %v4972 = vrot.slane %v4970, 4
      %v4973 = vor.u32 %v4969, %v4972
      %v4974 = vsel %vm1003, %v4973, %v4973
      %v4976 = vshrl.u32 %v4159, 16
      %v4978 = vrot.slane %v4976, 3
      %v4979 = vshll.u32 %v4159, 16
      %v4981 = vrot.slane %v4979, 4
      %v4982 = vor.u32 %v4978, %v4981
      %v4984 = vshrl.u32 %v4161, 16
      %v4986 = vrot.slane %v4984, 3
      %v4987 = vshll.u32 %v4161, 16
      %v4989 = vrot.slane %v4987, 4
      %v4990 = vor.u32 %v4986, %v4989
      %v4991 = vsel %vm1003, %v4982, %v4990
      %s4995 = scalar_lea.vmem %s4, 192
      %v4996 = vld [vmem:[%s4995] sm:$0xf]
      %v4997 = vld [vmem:[%s4995 + $0x4] sm:$0xf]
      %v4998 = vld [vmem:[%s4995 + $0x8] sm:$0xf]
      %v4999 = vld [vmem:[%s4995 + $0xc] sm:$0xf]
      %v5000 = vld [vmem:[%s4995 + $0x10] sm:$0xf]
      %v5001 = vld [vmem:[%s4995 + $0x14] sm:$0xf]
      %v5002 = vld [vmem:[%s4995 + $0x18] sm:$0xf]
      %v5003 = vld [vmem:[%s4995 + $0x1c] sm:$0xf]
      %v5004 = vld [vmem:[%s4995 + $0x20] sm:$0xf]
      %v5005 = vld [vmem:[%s4995 + $0x24] sm:$0xf]
      %v5006 = vld [vmem:[%s4995 + $0x28] sm:$0xf]
      %v5007 = vld [vmem:[%s4995 + $0x2c] sm:$0xf]
      %v5008 = vld [vmem:[%s4995 + $0x30] sm:$0xf]
      %v5009 = vld [vmem:[%s4995 + $0x34] sm:$0xf]
      %v5010 = vld [vmem:[%s4995 + $0x38] sm:$0xf]
      %v5011 = vld [vmem:[%s4995 + $0x3c] sm:$0xf]
      %v5012 = vld [vmem:[%s4995 + $0x40] sm:$0xf]
      %v5013 = vld [vmem:[%s4995 + $0x44] sm:$0xf]
      %v5014 = vld [vmem:[%s4995 + $0x48] sm:$0xf]
      %v5015 = vld [vmem:[%s4995 + $0x4c] sm:$0xf]
      %v5016 = vld [vmem:[%s4995 + $0x50] sm:$0xf]
      %v5017 = vld [vmem:[%s4995 + $0x54] sm:$0xf]
      %v5018 = vld [vmem:[%s4995 + $0x58] sm:$0xf]
      %v5019 = vld [vmem:[%s4995 + $0x5c] sm:$0xf]
      %v5020 = vld [vmem:[%s4995 + $0x60] sm:$0xf]
      %v5021 = vld [vmem:[%s4995 + $0x64] sm:$0xf]
      %v5022 = vld [vmem:[%s4995 + $0x68] sm:$0xf]
      %v5023 = vld [vmem:[%s4995 + $0x6c] sm:$0xf]
      %v5024 = vld [vmem:[%s4995 + $0x70] sm:$0xf]
      %v5025 = vld [vmem:[%s4995 + $0x74] sm:$0xf]
      %v5026 = vld [vmem:[%s4995 + $0x78] sm:$0xf]
      %v5027 = vld [vmem:[%s4995 + $0x7c] sm:$0xf]
      %v5028 = vld [vmem:[%s4995 + $0x80] sm:$0xf]
      %v5029 = vld [vmem:[%s4995 + $0x84] sm:$0xf]
      %v5030 = vld [vmem:[%s4995 + $0x88] sm:$0xf]
      %v5031 = vld [vmem:[%s4995 + $0x8c] sm:$0xf]
      %v5032 = vld [vmem:[%s4995 + $0x90] sm:$0xf]
      %v5033 = vld [vmem:[%s4995 + $0x94] sm:$0xf]
      %v5034 = vld [vmem:[%s4995 + $0x98] sm:$0xf]
      %v5035 = vld [vmem:[%s4995 + $0x9c] sm:$0xf]
      %v5036 = vld [vmem:[%s4995 + $0xa0] sm:$0xf]
      %v5037 = vld [vmem:[%s4995 + $0xa4] sm:$0xf]
      %v5038 = vld [vmem:[%s4995 + $0xa8] sm:$0xf]
      %v5039 = vld [vmem:[%s4995 + $0xac] sm:$0xf]
      %v5040 = vld [vmem:[%s4995 + $0xb0] sm:$0xf]
      %v5041 = vld [vmem:[%s4995 + $0xb4] sm:$0xf]
      %v5042 = vld [vmem:[%s4995 + $0xb8] sm:$0xf]
      %v5043 = vld [vmem:[%s4995 + $0xbc] sm:$0xf]
      %v5092 = vunpack.c.l.b16 %v4996
      %v5093 = vunpack.c.l.b16 %v4997
      %v5094 = vunpack.c.l.b16 %v4998
      %v5095 = vunpack.c.l.b16 %v4999
      %v5096 = vunpack.c.l.b16 %v5000
      %v5097 = vunpack.c.l.b16 %v5001
      %v5098 = vunpack.c.l.b16 %v5002
      %v5099 = vunpack.c.l.b16 %v5003
      %v5100 = vunpack.c.l.b16 %v5004
      %v5101 = vunpack.c.l.b16 %v5005
      %v5102 = vunpack.c.l.b16 %v5006
      %v5103 = vunpack.c.l.b16 %v5007
      %v5104 = vunpack.c.l.b16 %v5008
      %v5105 = vunpack.c.l.b16 %v5009
      %v5106 = vunpack.c.l.b16 %v5010
      %v5107 = vunpack.c.l.b16 %v5011
      %v5108 = vunpack.c.l.b16 %v5012
      %v5109 = vunpack.c.l.b16 %v5013
      %v5110 = vunpack.c.l.b16 %v5014
      %v5111 = vunpack.c.l.b16 %v5015
      %v5112 = vunpack.c.l.b16 %v5016
      %v5113 = vunpack.c.l.b16 %v5017
      %v5114 = vunpack.c.l.b16 %v5018
      %v5115 = vunpack.c.l.b16 %v5019
      %v5116 = vunpack.c.l.b16 %v5020
      %v5117 = vunpack.c.l.b16 %v5021
      %v5118 = vunpack.c.l.b16 %v5022
      %v5119 = vunpack.c.l.b16 %v5023
      %v5120 = vunpack.c.l.b16 %v5024
      %v5121 = vunpack.c.l.b16 %v5025
      %v5122 = vunpack.c.l.b16 %v5026
      %v5123 = vunpack.c.l.b16 %v5027
      %v5124 = vunpack.c.l.b16 %v5028
      %v5125 = vunpack.c.l.b16 %v5029
      %v5126 = vunpack.c.l.b16 %v5030
      %v5127 = vunpack.c.l.b16 %v5031
      %v5128 = vunpack.c.l.b16 %v5032
      %v5129 = vunpack.c.l.b16 %v5033
      %v5130 = vunpack.c.l.b16 %v5034
      %v5131 = vunpack.c.l.b16 %v5035
      %v5132 = vunpack.c.l.b16 %v5036
      %v5133 = vunpack.c.l.b16 %v5037
      %v5134 = vunpack.c.l.b16 %v5038
      %v5135 = vunpack.c.l.b16 %v5039
      %v5136 = vunpack.c.l.b16 %v5040
      %v5137 = vunpack.c.l.b16 %v5041
      %v5138 = vunpack.c.l.b16 %v5042
      %v5139 = vunpack.c.l.b16 %v5043
      %v5140 = vpack.c.b16 %v5093, %v5092
      %v5141 = vpack.c.b16 %v5095, %v5094
      %v5142 = vpack.c.b16 %v5097, %v5096
      %v5143 = vpack.c.b16 %v5099, %v5098
      %v5144 = vpack.c.b16 %v5101, %v5100
      %v5145 = vpack.c.b16 %v5103, %v5102
      %v5146 = vpack.c.b16 %v5105, %v5104
      %v5147 = vpack.c.b16 %v5107, %v5106
      %v5148 = vpack.c.b16 %v5109, %v5108
      %v5149 = vpack.c.b16 %v5111, %v5110
      %v5150 = vpack.c.b16 %v5113, %v5112
      %v5151 = vpack.c.b16 %v5115, %v5114
      %v5152 = vpack.c.b16 %v5117, %v5116
      %v5153 = vpack.c.b16 %v5119, %v5118
      %v5154 = vpack.c.b16 %v5121, %v5120
      %v5155 = vpack.c.b16 %v5123, %v5122
      %v5156 = vpack.c.b16 %v5125, %v5124
      %v5157 = vpack.c.b16 %v5127, %v5126
      %v5158 = vpack.c.b16 %v5129, %v5128
      %v5159 = vpack.c.b16 %v5131, %v5130
      %v5160 = vpack.c.b16 %v5133, %v5132
      %v5161 = vpack.c.b16 %v5135, %v5134
      %v5162 = vpack.c.b16 %v5137, %v5136
      %v5163 = vpack.c.b16 %v5139, %v5138
      %5188 = vmatprep.subr.bf16.mxu0 0
      %5189 = vmatpush1.bf16.msra.mxu0 %v5147
      %5190 = vmatprep.subr.bf16.mxu0 0
      %5191 = vmatpush1.bf16.msra.mxu0 %v5146
      %5192 = vmatprep.subr.bf16.mxu0 0
      %5193 = vmatpush1.bf16.msra.mxu0 %v5145
      %5194 = vmatprep.subr.bf16.mxu0 0
      %5195 = vmatpush1.bf16.msra.mxu0 %v5144
      %5196 = vmatprep.subr.bf16.mxu0 0
      %5197 = vmatpush1.bf16.msra.mxu0 %v5143
      %5198 = vmatprep.subr.bf16.mxu0 0
      %5199 = vmatpush1.bf16.msra.mxu0 %v5142
      %5200 = vmatprep.subr.bf16.mxu0 0
      %5201 = vmatpush1.bf16.msra.mxu0 %v5141
      %5202 = vmatprep.subr.bf16.mxu0 0
      %5203 = vmatpush1.bf16.msra.mxu0 %v5140
      %5204 = vmatprep.subr.bf16.mxu0 0
      %5205 = vmatpush2.bf16.msra.mxu0 %v5155
      %5206 = vmatprep.subr.bf16.mxu0 0
      %5207 = vmatpush2.bf16.msra.mxu0 %v5154
      %5208 = vmatprep.subr.bf16.mxu0 0
      %5209 = vmatpush2.bf16.msra.mxu0 %v5153
      %5210 = vmatprep.subr.bf16.mxu0 0
      %5211 = vmatpush2.bf16.msra.mxu0 %v5152
      %5212 = vmatprep.subr.bf16.mxu0 0
      %5213 = vmatpush2.bf16.msra.mxu0 %v5151
      %5214 = vmatprep.subr.bf16.mxu0 0
      %5215 = vmatpush2.bf16.msra.mxu0 %v5150
      %5216 = vmatprep.subr.bf16.mxu0 0
      %5217 = vmatpush2.bf16.msra.mxu0 %v5149
      %5218 = vmatprep.subr.bf16.mxu0 0
      %5219 = vmatpush2.bf16.msra.mxu0 %v5148
      %5220 = vmatprep.mubr.bf16.mxu0 %v4233
      %5221 = vmatmul.mubr.bf16.gmra.mxu0 %v4224
      %v5222 = vpop.f32.mrf.mxu0
      %v5223 = vadd.f32 0.0, %v5222
      %v5224 = vpop.f32.mrf.mxu0
      %v5225 = vpop.f32.mrf.mxu0
      %v5226 = vadd.f32 0.0, %v5225
      %v5227 = vpop.f32.mrf.mxu0
      %5228 = vmatprep.mubr.bf16.mxu0 %v4276
      %5229 = vmatmul.mubr.bf16.gmra.mxu0 %v4267
      %v5230 = vpop.f32.mrf.mxu0
      %v5231 = vadd.f32 0.0, %v5230
      %v5232 = vpop.f32.mrf.mxu0
      %v5233 = vpop.f32.mrf.mxu0
      %v5234 = vadd.f32 0.0, %v5233
      %v5235 = vpop.f32.mrf.mxu0
      %5236 = vmatprep.mubr.bf16.mxu0 %v4319
      %5237 = vmatmul.mubr.bf16.gmra.mxu0 %v4310
      %v5238 = vpop.f32.mrf.mxu0
      %v5239 = vadd.f32 0.0, %v5238
      %v5240 = vpop.f32.mrf.mxu0
      %v5241 = vpop.f32.mrf.mxu0
      %v5242 = vadd.f32 0.0, %v5241
      %v5243 = vpop.f32.mrf.mxu0
      %5244 = vmatprep.mubr.bf16.mxu0 %v4362
      %5245 = vmatmul.mubr.bf16.gmra.mxu0 %v4353
      %v5246 = vpop.f32.mrf.mxu0
      %v5247 = vadd.f32 0.0, %v5246
      %v5248 = vpop.f32.mrf.mxu0
      %v5249 = vpop.f32.mrf.mxu0
      %v5250 = vadd.f32 0.0, %v5249
      %v5251 = vpop.f32.mrf.mxu0
      %5252 = vmatprep.mubr.bf16.mxu0 %v4405
      %5253 = vmatmul.mubr.bf16.gmra.mxu0 %v4396
      %v5254 = vpop.f32.mrf.mxu0
      %v5255 = vadd.f32 0.0, %v5254
      %v5256 = vpop.f32.mrf.mxu0
      %v5257 = vpop.f32.mrf.mxu0
      %v5258 = vadd.f32 0.0, %v5257
      %v5259 = vpop.f32.mrf.mxu0
      %5260 = vmatprep.mubr.bf16.mxu0 %v4448
      %5261 = vmatmul.mubr.bf16.gmra.mxu0 %v4439
      %v5262 = vpop.f32.mrf.mxu0
      %v5263 = vadd.f32 0.0, %v5262
      %v5264 = vpop.f32.mrf.mxu0
      %v5265 = vpop.f32.mrf.mxu0
      %v5266 = vadd.f32 0.0, %v5265
      %v5267 = vpop.f32.mrf.mxu0
      %5268 = vmatprep.mubr.bf16.mxu0 %v4491
      %5269 = vmatmul.mubr.bf16.gmra.mxu0 %v4482
      %v5270 = vpop.f32.mrf.mxu0
      %v5271 = vadd.f32 0.0, %v5270
      %v5272 = vpop.f32.mrf.mxu0
      %v5273 = vpop.f32.mrf.mxu0
      %v5274 = vadd.f32 0.0, %v5273
      %v5275 = vpop.f32.mrf.mxu0
      %5276 = vmatprep.mubr.bf16.mxu0 %v4534
      %5277 = vmatmul.mubr.bf16.gmra.mxu0 %v4525
      %v5278 = vpop.f32.mrf.mxu0
      %v5279 = vadd.f32 0.0, %v5278
      %v5280 = vpop.f32.mrf.mxu0
      %v5281 = vpop.f32.mrf.mxu0
      %v5282 = vadd.f32 0.0, %v5281
      %v5283 = vpop.f32.mrf.mxu0
      %5284 = vmatprep.mubr.bf16.mxu0 %v4577
      %5285 = vmatmul.mubr.bf16.gmra.mxu0 %v4568
      %v5286 = vpop.f32.mrf.mxu0
      %v5287 = vadd.f32 0.0, %v5286
      %v5288 = vpop.f32.mrf.mxu0
      %v5289 = vpop.f32.mrf.mxu0
      %v5290 = vadd.f32 0.0, %v5289
      %v5291 = vpop.f32.mrf.mxu0
      %5292 = vmatprep.mubr.bf16.mxu0 %v4620
      %5293 = vmatmul.mubr.bf16.gmra.mxu0 %v4611
      %v5294 = vpop.f32.mrf.mxu0
      %v5295 = vadd.f32 0.0, %v5294
      %v5296 = vpop.f32.mrf.mxu0
      %v5297 = vpop.f32.mrf.mxu0
      %v5298 = vadd.f32 0.0, %v5297
      %v5299 = vpop.f32.mrf.mxu0
      %5300 = vmatprep.mubr.bf16.mxu0 %v4663
      %5301 = vmatmul.mubr.bf16.gmra.mxu0 %v4654
      %v5302 = vpop.f32.mrf.mxu0
      %v5303 = vadd.f32 0.0, %v5302
      %v5304 = vpop.f32.mrf.mxu0
      %v5305 = vpop.f32.mrf.mxu0
      %v5306 = vadd.f32 0.0, %v5305
      %v5307 = vpop.f32.mrf.mxu0
      %5308 = vmatprep.mubr.bf16.mxu0 %v4706
      %5309 = vmatmul.mubr.bf16.gmra.mxu0 %v4697
      %v5310 = vpop.f32.mrf.mxu0
      %v5311 = vadd.f32 0.0, %v5310
      %v5312 = vpop.f32.mrf.mxu0
      %v5313 = vpop.f32.mrf.mxu0
      %v5314 = vadd.f32 0.0, %v5313
      %v5315 = vpop.f32.mrf.mxu0
      %5316 = vmatprep.mubr.bf16.mxu0 %v4749
      %5317 = vmatmul.mubr.bf16.gmra.mxu0 %v4740
      %v5318 = vpop.f32.mrf.mxu0
      %v5319 = vadd.f32 0.0, %v5318
      %v5320 = vpop.f32.mrf.mxu0
      %v5321 = vpop.f32.mrf.mxu0
      %v5322 = vadd.f32 0.0, %v5321
      %v5323 = vpop.f32.mrf.mxu0
      %5324 = vmatprep.mubr.bf16.mxu0 %v4792
      %5325 = vmatmul.mubr.bf16.gmra.mxu0 %v4783
      %v5326 = vpop.f32.mrf.mxu0
      %v5327 = vadd.f32 0.0, %v5326
      %v5328 = vpop.f32.mrf.mxu0
      %v5329 = vpop.f32.mrf.mxu0
      %v5330 = vadd.f32 0.0, %v5329
      %v5331 = vpop.f32.mrf.mxu0
      %5332 = vmatprep.mubr.bf16.mxu0 %v4835
      %5333 = vmatmul.mubr.bf16.gmra.mxu0 %v4826
      %v5334 = vpop.f32.mrf.mxu0
      %v5335 = vadd.f32 0.0, %v5334
      %v5336 = vpop.f32.mrf.mxu0
      %v5337 = vpop.f32.mrf.mxu0
      %v5338 = vadd.f32 0.0, %v5337
      %v5339 = vpop.f32.mrf.mxu0
      %5340 = vmatprep.mubr.bf16.mxu0 %v4974
      %5341 = vmatmul.mubr.bf16.gmra.mxu0 %v4965
      %v5342 = vpop.f32.mrf.mxu0
      %v5343 = vadd.f32 0.0, %v5342
      %v5344 = vpop.f32.mrf.mxu0
      %v5345 = vpop.f32.mrf.mxu0
      %v5346 = vadd.f32 0.0, %v5345
      %v5347 = vpop.f32.mrf.mxu0
      %5348 = vdwg.mxu0
      %5349 = vmatprep.subr.bf16.mxu0 0
      %5350 = vmatpush1.bf16.msra.mxu0 %v5163
      %5351 = vmatprep.subr.bf16.mxu0 0
      %5352 = vmatpush1.bf16.msra.mxu0 %v5162
      %5353 = vmatprep.subr.bf16.mxu0 0
      %5354 = vmatpush1.bf16.msra.mxu0 %v5161
      %5355 = vmatprep.subr.bf16.mxu0 0
      %5356 = vmatpush1.bf16.msra.mxu0 %v5160
      %5357 = vmatprep.subr.bf16.mxu0 0
      %5358 = vmatpush1.bf16.msra.mxu0 %v5159
      %5359 = vmatprep.subr.bf16.mxu0 0
      %5360 = vmatpush1.bf16.msra.mxu0 %v5158
      %5361 = vmatprep.subr.bf16.mxu0 0
      %5362 = vmatpush1.bf16.msra.mxu0 %v5157
      %5363 = vmatprep.subr.bf16.mxu0 0
      %5364 = vmatpush1.bf16.msra.mxu0 %v5156
      %5365 = vmatprep.subr.bf16.mxu0 0
      %5366 = vmatpush2.bf16.msra.mxu0 0
      %5367 = vmatprep.subr.bf16.mxu0 0
      %5368 = vmatpush2.bf16.msra.mxu0 0
      %5369 = vmatprep.subr.bf16.mxu0 0
      %5370 = vmatpush2.bf16.msra.mxu0 0
      %5371 = vmatprep.subr.bf16.mxu0 0
      %5372 = vmatpush2.bf16.msra.mxu0 0
      %5373 = vmatprep.subr.bf16.mxu0 0
      %5374 = vmatpush2.bf16.msra.mxu0 0
      %5375 = vmatprep.subr.bf16.mxu0 0
      %5376 = vmatpush2.bf16.msra.mxu0 0
      %5377 = vmatprep.subr.bf16.mxu0 0
      %5378 = vmatpush2.bf16.msra.mxu0 0
      %5379 = vmatprep.subr.bf16.mxu0 0
      %5380 = vmatpush2.bf16.msra.mxu0 0
      %5381 = vmatprep.mubr.bf16.mxu0 0
      %5382 = vmatmul.mubr.bf16.gmra.mxu0 %v4250
      %v5383 = vpop.f32.mrf.mxu0
      %v5384 = vadd.f32 %v5223, %v5383
      %v5385 = vpop.f32.mrf.mxu0
      %v5386 = vpop.f32.mrf.mxu0
      %v5387 = vadd.f32 %v5226, %v5386
      %v5388 = vpop.f32.mrf.mxu0
      %5389 = vmatprep.mubr.bf16.mxu0 0
      %5390 = vmatmul.mubr.bf16.gmra.mxu0 %v4293
      %v5391 = vpop.f32.mrf.mxu0
      %v5392 = vadd.f32 %v5231, %v5391
      %v5393 = vpop.f32.mrf.mxu0
      %v5394 = vpop.f32.mrf.mxu0
      %v5395 = vadd.f32 %v5234, %v5394
      %v5396 = vpop.f32.mrf.mxu0
      %5397 = vmatprep.mubr.bf16.mxu0 0
      %5398 = vmatmul.mubr.bf16.gmra.mxu0 %v4336
      %v5399 = vpop.f32.mrf.mxu0
      %v5400 = vadd.f32 %v5239, %v5399
      %v5401 = vpop.f32.mrf.mxu0
      %v5402 = vpop.f32.mrf.mxu0
      %v5403 = vadd.f32 %v5242, %v5402
      %v5404 = vpop.f32.mrf.mxu0
      %5405 = vmatprep.mubr.bf16.mxu0 0
      %5406 = vmatmul.mubr.bf16.gmra.mxu0 %v4379
      %v5407 = vpop.f32.mrf.mxu0
      %v5408 = vadd.f32 %v5247, %v5407
      %v5409 = vpop.f32.mrf.mxu0
      %v5410 = vpop.f32.mrf.mxu0
      %v5411 = vadd.f32 %v5250, %v5410
      %v5412 = vpop.f32.mrf.mxu0
      %5413 = vmatprep.mubr.bf16.mxu0 0
      %5414 = vmatmul.mubr.bf16.gmra.mxu0 %v4422
      %v5415 = vpop.f32.mrf.mxu0
      %v5416 = vadd.f32 %v5255, %v5415
      %v5417 = vpop.f32.mrf.mxu0
      %v5418 = vpop.f32.mrf.mxu0
      %v5419 = vadd.f32 %v5258, %v5418
      %v5420 = vpop.f32.mrf.mxu0
      %5421 = vmatprep.mubr.bf16.mxu0 0
      %5422 = vmatmul.mubr.bf16.gmra.mxu0 %v4465
      %v5423 = vpop.f32.mrf.mxu0
      %v5424 = vadd.f32 %v5263, %v5423
      %v5425 = vpop.f32.mrf.mxu0
      %v5426 = vpop.f32.mrf.mxu0
      %v5427 = vadd.f32 %v5266, %v5426
      %v5428 = vpop.f32.mrf.mxu0
      %5429 = vmatprep.mubr.bf16.mxu0 0
      %5430 = vmatmul.mubr.bf16.gmra.mxu0 %v4508
      %v5431 = vpop.f32.mrf.mxu0
      %v5432 = vadd.f32 %v5271, %v5431
      %v5433 = vpop.f32.mrf.mxu0
      %v5434 = vpop.f32.mrf.mxu0
      %v5435 = vadd.f32 %v5274, %v5434
      %v5436 = vpop.f32.mrf.mxu0
      %5437 = vmatprep.mubr.bf16.mxu0 0
      %5438 = vmatmul.mubr.bf16.gmra.mxu0 %v4551
      %v5439 = vpop.f32.mrf.mxu0
      %v5440 = vadd.f32 %v5279, %v5439
      %v5441 = vpop.f32.mrf.mxu0
      %v5442 = vpop.f32.mrf.mxu0
      %v5443 = vadd.f32 %v5282, %v5442
      %v5444 = vpop.f32.mrf.mxu0
      %5445 = vmatprep.mubr.bf16.mxu0 0
      %5446 = vmatmul.mubr.bf16.gmra.mxu0 %v4594
      %v5447 = vpop.f32.mrf.mxu0
      %v5448 = vadd.f32 %v5287, %v5447
      %v5449 = vpop.f32.mrf.mxu0
      %v5450 = vpop.f32.mrf.mxu0
      %v5451 = vadd.f32 %v5290, %v5450
      %v5452 = vpop.f32.mrf.mxu0
      %5453 = vmatprep.mubr.bf16.mxu0 0
      %5454 = vmatmul.mubr.bf16.gmra.mxu0 %v4637
      %v5455 = vpop.f32.mrf.mxu0
      %v5456 = vadd.f32 %v5295, %v5455
      %v5457 = vpop.f32.mrf.mxu0
      %v5458 = vpop.f32.mrf.mxu0
      %v5459 = vadd.f32 %v5298, %v5458
      %v5460 = vpop.f32.mrf.mxu0
      %5461 = vmatprep.mubr.bf16.mxu0 0
      %5462 = vmatmul.mubr.bf16.gmra.mxu0 %v4680
      %v5463 = vpop.f32.mrf.mxu0
      %v5464 = vadd.f32 %v5303, %v5463
      %v5465 = vpop.f32.mrf.mxu0
      %v5466 = vpop.f32.mrf.mxu0
      %v5467 = vadd.f32 %v5306, %v5466
      %v5468 = vpop.f32.mrf.mxu0
      %5469 = vmatprep.mubr.bf16.mxu0 0
      %5470 = vmatmul.mubr.bf16.gmra.mxu0 %v4723
      %v5471 = vpop.f32.mrf.mxu0
      %v5472 = vadd.f32 %v5311, %v5471
      %v5473 = vpop.f32.mrf.mxu0
      %v5474 = vpop.f32.mrf.mxu0
      %v5475 = vadd.f32 %v5314, %v5474
      %v5476 = vpop.f32.mrf.mxu0
      %5477 = vmatprep.mubr.bf16.mxu0 0
      %5478 = vmatmul.mubr.bf16.gmra.mxu0 %v4766
      %v5479 = vpop.f32.mrf.mxu0
      %v5480 = vadd.f32 %v5319, %v5479
      %v5481 = vpop.f32.mrf.mxu0
      %v5482 = vpop.f32.mrf.mxu0
      %v5483 = vadd.f32 %v5322, %v5482
      %v5484 = vpop.f32.mrf.mxu0
      %5485 = vmatprep.mubr.bf16.mxu0 0
      %5486 = vmatmul.mubr.bf16.gmra.mxu0 %v4809
      %v5487 = vpop.f32.mrf.mxu0
      %v5488 = vadd.f32 %v5327, %v5487
      %v5489 = vpop.f32.mrf.mxu0
      %v5490 = vpop.f32.mrf.mxu0
      %v5491 = vadd.f32 %v5330, %v5490
      %v5492 = vpop.f32.mrf.mxu0
      %5493 = vmatprep.mubr.bf16.mxu0 0
      %5494 = vmatmul.mubr.bf16.gmra.mxu0 %v4852
      %v5495 = vpop.f32.mrf.mxu0
      %v5496 = vadd.f32 %v5335, %v5495
      %v5497 = vpop.f32.mrf.mxu0
      %v5498 = vpop.f32.mrf.mxu0
      %v5499 = vadd.f32 %v5338, %v5498
      %v5500 = vpop.f32.mrf.mxu0
      %5501 = vmatprep.mubr.bf16.mxu0 0
      %5502 = vmatmul.mubr.bf16.gmra.mxu0 %v4991
      %v5503 = vpop.f32.mrf.mxu0
      %v5504 = vadd.f32 %v5343, %v5503
      %v5505 = vpop.f32.mrf.mxu0
      %v5506 = vpop.f32.mrf.mxu0
      %v5507 = vadd.f32 %v5346, %v5506
      %v5508 = vpop.f32.mrf.mxu0
      %5509 = vdwg.mxu0
      %v5558 = vunpack.c.l.b16 %v4901
      %v5559 = vunpack.c.l.b16 %v4902
      %v5560 = vunpack.c.l.b16 %v4903
      %v5561 = vunpack.c.l.b16 %v4904
      %v5562 = vunpack.c.l.b16 %v4905
      %v5563 = vunpack.c.l.b16 %v4906
      %v5564 = vunpack.c.l.b16 %v4907
      %v5565 = vunpack.c.l.b16 %v4908
      %v5566 = vunpack.c.l.b16 %v4909
      %v5567 = vunpack.c.l.b16 %v4910
      %v5568 = vunpack.c.l.b16 %v4911
      %v5569 = vunpack.c.l.b16 %v4912
      %v5570 = vunpack.c.l.b16 %v4913
      %v5571 = vunpack.c.l.b16 %v4914
      %v5572 = vunpack.c.l.b16 %v4915
      %v5573 = vunpack.c.l.b16 %v4916
      %v5574 = vunpack.c.l.b16 %v4917
      %v5575 = vunpack.c.l.b16 %v4918
      %v5576 = vunpack.c.l.b16 %v4919
      %v5577 = vunpack.c.l.b16 %v4920
      %v5578 = vunpack.c.l.b16 %v4921
      %v5579 = vunpack.c.l.b16 %v4922
      %v5580 = vunpack.c.l.b16 %v4923
      %v5581 = vunpack.c.l.b16 %v4924
      %v5582 = vunpack.c.l.b16 %v4925
      %v5583 = vunpack.c.l.b16 %v4926
      %v5584 = vunpack.c.l.b16 %v4927
      %v5585 = vunpack.c.l.b16 %v4928
      %v5586 = vunpack.c.l.b16 %v4929
      %v5587 = vunpack.c.l.b16 %v4930
      %v5588 = vunpack.c.l.b16 %v4931
      %v5589 = vunpack.c.l.b16 %v4932
      %v5590 = vunpack.c.l.b16 %v4933
      %v5591 = vunpack.c.l.b16 %v4934
      %v5592 = vunpack.c.l.b16 %v4935
      %v5593 = vunpack.c.l.b16 %v4936
      %v5594 = vunpack.c.l.b16 %v4937
      %v5595 = vunpack.c.l.b16 %v4938
      %v5596 = vunpack.c.l.b16 %v4939
      %v5597 = vunpack.c.l.b16 %v4940
      %v5598 = vunpack.c.l.b16 %v4941
      %v5599 = vunpack.c.l.b16 %v4942
      %v5600 = vunpack.c.l.b16 %v4943
      %v5601 = vunpack.c.l.b16 %v4944
      %v5602 = vunpack.c.l.b16 %v4945
      %v5603 = vunpack.c.l.b16 %v4946
      %v5604 = vunpack.c.l.b16 %v4947
      %v5605 = vunpack.c.l.b16 %v4948
      %v5606 = vpack.c.b16 %v5559, %v5558
      %v5607 = vpack.c.b16 %v5561, %v5560
      %v5608 = vpack.c.b16 %v5563, %v5562
      %v5609 = vpack.c.b16 %v5565, %v5564
      %v5610 = vpack.c.b16 %v5567, %v5566
      %v5611 = vpack.c.b16 %v5569, %v5568
      %v5612 = vpack.c.b16 %v5571, %v5570
      %v5613 = vpack.c.b16 %v5573, %v5572
      %v5614 = vpack.c.b16 %v5575, %v5574
      %v5615 = vpack.c.b16 %v5577, %v5576
      %v5616 = vpack.c.b16 %v5579, %v5578
      %v5617 = vpack.c.b16 %v5581, %v5580
      %v5618 = vpack.c.b16 %v5583, %v5582
      %v5619 = vpack.c.b16 %v5585, %v5584
      %v5620 = vpack.c.b16 %v5587, %v5586
      %v5621 = vpack.c.b16 %v5589, %v5588
      %v5622 = vpack.c.b16 %v5591, %v5590
      %v5623 = vpack.c.b16 %v5593, %v5592
      %v5624 = vpack.c.b16 %v5595, %v5594
      %v5625 = vpack.c.b16 %v5597, %v5596
      %v5626 = vpack.c.b16 %v5599, %v5598
      %v5627 = vpack.c.b16 %v5601, %v5600
      %v5628 = vpack.c.b16 %v5603, %v5602
      %v5629 = vpack.c.b16 %v5605, %v5604
      %5654 = vmatprep.subr.bf16.mxu0 0
      %5655 = vmatpush1.bf16.msra.mxu0 %v5613
      %5656 = vmatprep.subr.bf16.mxu0 0
      %5657 = vmatpush1.bf16.msra.mxu0 %v5612
      %5658 = vmatprep.subr.bf16.mxu0 0
      %5659 = vmatpush1.bf16.msra.mxu0 %v5611
      %5660 = vmatprep.subr.bf16.mxu0 0
      %5661 = vmatpush1.bf16.msra.mxu0 %v5610
      %5662 = vmatprep.subr.bf16.mxu0 0
      %5663 = vmatpush1.bf16.msra.mxu0 %v5609
      %5664 = vmatprep.subr.bf16.mxu0 0
      %5665 = vmatpush1.bf16.msra.mxu0 %v5608
      %5666 = vmatprep.subr.bf16.mxu0 0
      %5667 = vmatpush1.bf16.msra.mxu0 %v5607
      %5668 = vmatprep.subr.bf16.mxu0 0
      %5669 = vmatpush1.bf16.msra.mxu0 %v5606
      %5670 = vmatprep.subr.bf16.mxu0 0
      %5671 = vmatpush2.bf16.msra.mxu0 %v5621
      %5672 = vmatprep.subr.bf16.mxu0 0
      %5673 = vmatpush2.bf16.msra.mxu0 %v5620
      %5674 = vmatprep.subr.bf16.mxu0 0
      %5675 = vmatpush2.bf16.msra.mxu0 %v5619
      %5676 = vmatprep.subr.bf16.mxu0 0
      %5677 = vmatpush2.bf16.msra.mxu0 %v5618
      %5678 = vmatprep.subr.bf16.mxu0 0
      %5679 = vmatpush2.bf16.msra.mxu0 %v5617
      %5680 = vmatprep.subr.bf16.mxu0 0
      %5681 = vmatpush2.bf16.msra.mxu0 %v5616
      %5682 = vmatprep.subr.bf16.mxu0 0
      %5683 = vmatpush2.bf16.msra.mxu0 %v5615
      %5684 = vmatprep.subr.bf16.mxu0 0
      %5685 = vmatpush2.bf16.msra.mxu0 %v5614
      %5686 = vmatprep.mubr.bf16.mxu0 %v4190
      %5687 = vmatmul.mubr.bf16.gmra.mxu0 %v4181
      %v5688 = vpop.f32.mrf.mxu0
      %v5689 = vadd.f32 %v5384, %v5688
      %v5690 = vpop.f32.mrf.mxu0
      %v5691 = vpop.f32.mrf.mxu0
      %v5692 = vadd.f32 %v5387, %v5691
      %v5693 = vpop.f32.mrf.mxu0
      %5694 = vmatprep.mubr.bf16.mxu0 %v4233
      %5695 = vmatmul.mubr.bf16.gmra.mxu0 %v4224
      %v5696 = vpop.f32.mrf.mxu0
      %v5697 = vadd.f32 %v5392, %v5696
      %v5698 = vpop.f32.mrf.mxu0
      %v5699 = vpop.f32.mrf.mxu0
      %v5700 = vadd.f32 %v5395, %v5699
      %v5701 = vpop.f32.mrf.mxu0
      %5702 = vmatprep.mubr.bf16.mxu0 %v4276
      %5703 = vmatmul.mubr.bf16.gmra.mxu0 %v4267
      %v5704 = vpop.f32.mrf.mxu0
      %v5705 = vadd.f32 %v5400, %v5704
      %v5706 = vpop.f32.mrf.mxu0
      %v5707 = vpop.f32.mrf.mxu0
      %v5708 = vadd.f32 %v5403, %v5707
      %v5709 = vpop.f32.mrf.mxu0
      %5710 = vmatprep.mubr.bf16.mxu0 %v4319
      %5711 = vmatmul.mubr.bf16.gmra.mxu0 %v4310
      %v5712 = vpop.f32.mrf.mxu0
      %v5713 = vadd.f32 %v5408, %v5712
      %v5714 = vpop.f32.mrf.mxu0
      %v5715 = vpop.f32.mrf.mxu0
      %v5716 = vadd.f32 %v5411, %v5715
      %v5717 = vpop.f32.mrf.mxu0
      %5718 = vmatprep.mubr.bf16.mxu0 %v4362
      %5719 = vmatmul.mubr.bf16.gmra.mxu0 %v4353
      %v5720 = vpop.f32.mrf.mxu0
      %v5721 = vadd.f32 %v5416, %v5720
      %v5722 = vpop.f32.mrf.mxu0
      %v5723 = vpop.f32.mrf.mxu0
      %v5724 = vadd.f32 %v5419, %v5723
      %v5725 = vpop.f32.mrf.mxu0
      %5726 = vmatprep.mubr.bf16.mxu0 %v4405
      %5727 = vmatmul.mubr.bf16.gmra.mxu0 %v4396
      %v5728 = vpop.f32.mrf.mxu0
      %v5729 = vadd.f32 %v5424, %v5728
      %v5730 = vpop.f32.mrf.mxu0
      %v5731 = vpop.f32.mrf.mxu0
      %v5732 = vadd.f32 %v5427, %v5731
      %v5733 = vpop.f32.mrf.mxu0
      %5734 = vmatprep.mubr.bf16.mxu0 %v4448
      %5735 = vmatmul.mubr.bf16.gmra.mxu0 %v4439
      %v5736 = vpop.f32.mrf.mxu0
      %v5737 = vadd.f32 %v5432, %v5736
      %v5738 = vpop.f32.mrf.mxu0
      %v5739 = vpop.f32.mrf.mxu0
      %v5740 = vadd.f32 %v5435, %v5739
      %v5741 = vpop.f32.mrf.mxu0
      %5742 = vmatprep.mubr.bf16.mxu0 %v4491
      %5743 = vmatmul.mubr.bf16.gmra.mxu0 %v4482
      %v5744 = vpop.f32.mrf.mxu0
      %v5745 = vadd.f32 %v5440, %v5744
      %v5746 = vpop.f32.mrf.mxu0
      %v5747 = vpop.f32.mrf.mxu0
      %v5748 = vadd.f32 %v5443, %v5747
      %v5749 = vpop.f32.mrf.mxu0
      %5750 = vmatprep.mubr.bf16.mxu0 %v4534
      %5751 = vmatmul.mubr.bf16.gmra.mxu0 %v4525
      %v5752 = vpop.f32.mrf.mxu0
      %v5753 = vadd.f32 %v5448, %v5752
      %v5754 = vpop.f32.mrf.mxu0
      %v5755 = vpop.f32.mrf.mxu0
      %v5756 = vadd.f32 %v5451, %v5755
      %v5757 = vpop.f32.mrf.mxu0
      %5758 = vmatprep.mubr.bf16.mxu0 %v4577
      %5759 = vmatmul.mubr.bf16.gmra.mxu0 %v4568
      %v5760 = vpop.f32.mrf.mxu0
      %v5761 = vadd.f32 %v5456, %v5760
      %v5762 = vpop.f32.mrf.mxu0
      %v5763 = vpop.f32.mrf.mxu0
      %v5764 = vadd.f32 %v5459, %v5763
      %v5765 = vpop.f32.mrf.mxu0
      %5766 = vmatprep.mubr.bf16.mxu0 %v4620
      %5767 = vmatmul.mubr.bf16.gmra.mxu0 %v4611
      %v5768 = vpop.f32.mrf.mxu0
      %v5769 = vadd.f32 %v5464, %v5768
      %v5770 = vpop.f32.mrf.mxu0
      %v5771 = vpop.f32.mrf.mxu0
      %v5772 = vadd.f32 %v5467, %v5771
      %v5773 = vpop.f32.mrf.mxu0
      %5774 = vmatprep.mubr.bf16.mxu0 %v4663
      %5775 = vmatmul.mubr.bf16.gmra.mxu0 %v4654
      %v5776 = vpop.f32.mrf.mxu0
      %v5777 = vadd.f32 %v5472, %v5776
      %v5778 = vpop.f32.mrf.mxu0
      %v5779 = vpop.f32.mrf.mxu0
      %v5780 = vadd.f32 %v5475, %v5779
      %v5781 = vpop.f32.mrf.mxu0
      %5782 = vmatprep.mubr.bf16.mxu0 %v4706
      %5783 = vmatmul.mubr.bf16.gmra.mxu0 %v4697
      %v5784 = vpop.f32.mrf.mxu0
      %v5785 = vadd.f32 %v5480, %v5784
      %v5786 = vpop.f32.mrf.mxu0
      %v5787 = vpop.f32.mrf.mxu0
      %v5788 = vadd.f32 %v5483, %v5787
      %v5789 = vpop.f32.mrf.mxu0
      %5790 = vmatprep.mubr.bf16.mxu0 %v4749
      %5791 = vmatmul.mubr.bf16.gmra.mxu0 %v4740
      %v5792 = vpop.f32.mrf.mxu0
      %v5793 = vadd.f32 %v5488, %v5792
      %v5794 = vpop.f32.mrf.mxu0
      %v5795 = vpop.f32.mrf.mxu0
      %v5796 = vadd.f32 %v5491, %v5795
      %v5797 = vpop.f32.mrf.mxu0
      %5798 = vmatprep.mubr.bf16.mxu0 %v4792
      %5799 = vmatmul.mubr.bf16.gmra.mxu0 %v4783
      %v5800 = vpop.f32.mrf.mxu0
      %v5801 = vadd.f32 %v5496, %v5800
      %v5802 = vpop.f32.mrf.mxu0
      %v5803 = vpop.f32.mrf.mxu0
      %v5804 = vadd.f32 %v5499, %v5803
      %v5805 = vpop.f32.mrf.mxu0
      %5806 = vmatprep.mubr.bf16.mxu0 %v4835
      %5807 = vmatmul.mubr.bf16.gmra.mxu0 %v4826
      %v5808 = vpop.f32.mrf.mxu0
      %v5809 = vadd.f32 %v5504, %v5808
      %v5810 = vpop.f32.mrf.mxu0
      %v5811 = vpop.f32.mrf.mxu0
      %v5812 = vadd.f32 %v5507, %v5811
      %v5813 = vpop.f32.mrf.mxu0
      %5814 = vdwg.mxu0
      %5815 = vmatprep.subr.bf16.mxu0 0
      %5816 = vmatpush1.bf16.msra.mxu0 %v5629
      %5817 = vmatprep.subr.bf16.mxu0 0
      %5818 = vmatpush1.bf16.msra.mxu0 %v5628
      %5819 = vmatprep.subr.bf16.mxu0 0
      %5820 = vmatpush1.bf16.msra.mxu0 %v5627
      %5821 = vmatprep.subr.bf16.mxu0 0
      %5822 = vmatpush1.bf16.msra.mxu0 %v5626
      %5823 = vmatprep.subr.bf16.mxu0 0
      %5824 = vmatpush1.bf16.msra.mxu0 %v5625
      %5825 = vmatprep.subr.bf16.mxu0 0
      %5826 = vmatpush1.bf16.msra.mxu0 %v5624
      %5827 = vmatprep.subr.bf16.mxu0 0
      %5828 = vmatpush1.bf16.msra.mxu0 %v5623
      %5829 = vmatprep.subr.bf16.mxu0 0
      %5830 = vmatpush1.bf16.msra.mxu0 %v5622
      %5831 = vmatprep.subr.bf16.mxu0 0
      %5832 = vmatpush2.bf16.msra.mxu0 0
      %5833 = vmatprep.subr.bf16.mxu0 0
      %5834 = vmatpush2.bf16.msra.mxu0 0
      %5835 = vmatprep.subr.bf16.mxu0 0
      %5836 = vmatpush2.bf16.msra.mxu0 0
      %5837 = vmatprep.subr.bf16.mxu0 0
      %5838 = vmatpush2.bf16.msra.mxu0 0
      %5839 = vmatprep.subr.bf16.mxu0 0
      %5840 = vmatpush2.bf16.msra.mxu0 0
      %5841 = vmatprep.subr.bf16.mxu0 0
      %5842 = vmatpush2.bf16.msra.mxu0 0
      %5843 = vmatprep.subr.bf16.mxu0 0
      %5844 = vmatpush2.bf16.msra.mxu0 0
      %5845 = vmatprep.subr.bf16.mxu0 0
      %5846 = vmatpush2.bf16.msra.mxu0 0
      %5847 = vmatprep.mubr.bf16.mxu0 0
      %5848 = vmatmul.mubr.bf16.gmra.mxu0 %v4207
      %v5849 = vpop.f32.mrf.mxu0
      %v5850 = vadd.f32 %v5689, %v5849
      %v5851 = vpop.f32.mrf.mxu0
      %v5852 = vpop.f32.mrf.mxu0
      %v5853 = vadd.f32 %v5692, %v5852
      %v5854 = vpop.f32.mrf.mxu0
      %5855 = vmatprep.mubr.bf16.mxu0 0
      %5856 = vmatmul.mubr.bf16.gmra.mxu0 %v4250
      %v5857 = vpop.f32.mrf.mxu0
      %v5858 = vadd.f32 %v5697, %v5857
      %v5859 = vpop.f32.mrf.mxu0
      %v5860 = vpop.f32.mrf.mxu0
      %v5861 = vadd.f32 %v5700, %v5860
      %v5862 = vpop.f32.mrf.mxu0
      %5863 = vmatprep.mubr.bf16.mxu0 0
      %5864 = vmatmul.mubr.bf16.gmra.mxu0 %v4293
      %v5865 = vpop.f32.mrf.mxu0
      %v5866 = vadd.f32 %v5705, %v5865
      %v5867 = vpop.f32.mrf.mxu0
      %v5868 = vpop.f32.mrf.mxu0
      %v5869 = vadd.f32 %v5708, %v5868
      %v5870 = vpop.f32.mrf.mxu0
      %5871 = vmatprep.mubr.bf16.mxu0 0
      %5872 = vmatmul.mubr.bf16.gmra.mxu0 %v4336
      %v5873 = vpop.f32.mrf.mxu0
      %v5874 = vadd.f32 %v5713, %v5873
      %v5875 = vpop.f32.mrf.mxu0
      %v5876 = vpop.f32.mrf.mxu0
      %v5877 = vadd.f32 %v5716, %v5876
      %v5878 = vpop.f32.mrf.mxu0
      %5879 = vmatprep.mubr.bf16.mxu0 0
      %5880 = vmatmul.mubr.bf16.gmra.mxu0 %v4379
      %v5881 = vpop.f32.mrf.mxu0
      %v5882 = vadd.f32 %v5721, %v5881
      %v5883 = vpop.f32.mrf.mxu0
      %v5884 = vpop.f32.mrf.mxu0
      %v5885 = vadd.f32 %v5724, %v5884
      %v5886 = vpop.f32.mrf.mxu0
      %5887 = vmatprep.mubr.bf16.mxu0 0
      %5888 = vmatmul.mubr.bf16.gmra.mxu0 %v4422
      %v5889 = vpop.f32.mrf.mxu0
      %v5890 = vadd.f32 %v5729, %v5889
      %v5891 = vpop.f32.mrf.mxu0
      %v5892 = vpop.f32.mrf.mxu0
      %v5893 = vadd.f32 %v5732, %v5892
      %v5894 = vpop.f32.mrf.mxu0
      %5895 = vmatprep.mubr.bf16.mxu0 0
      %5896 = vmatmul.mubr.bf16.gmra.mxu0 %v4465
      %v5897 = vpop.f32.mrf.mxu0
      %v5898 = vadd.f32 %v5737, %v5897
      %v5899 = vpop.f32.mrf.mxu0
      %v5900 = vpop.f32.mrf.mxu0
      %v5901 = vadd.f32 %v5740, %v5900
      %v5902 = vpop.f32.mrf.mxu0
      %5903 = vmatprep.mubr.bf16.mxu0 0
      %5904 = vmatmul.mubr.bf16.gmra.mxu0 %v4508
      %v5905 = vpop.f32.mrf.mxu0
      %v5906 = vadd.f32 %v5745, %v5905
      %v5907 = vpop.f32.mrf.mxu0
      %v5908 = vpop.f32.mrf.mxu0
      %v5909 = vadd.f32 %v5748, %v5908
      %v5910 = vpop.f32.mrf.mxu0
      %5911 = vmatprep.mubr.bf16.mxu0 0
      %5912 = vmatmul.mubr.bf16.gmra.mxu0 %v4551
      %v5913 = vpop.f32.mrf.mxu0
      %v5914 = vadd.f32 %v5753, %v5913
      %v5915 = vpop.f32.mrf.mxu0
      %v5916 = vpop.f32.mrf.mxu0
      %v5917 = vadd.f32 %v5756, %v5916
      %v5918 = vpop.f32.mrf.mxu0
      %5919 = vmatprep.mubr.bf16.mxu0 0
      %5920 = vmatmul.mubr.bf16.gmra.mxu0 %v4594
      %v5921 = vpop.f32.mrf.mxu0
      %v5922 = vadd.f32 %v5761, %v5921
      %v5923 = vpop.f32.mrf.mxu0
      %v5924 = vpop.f32.mrf.mxu0
      %v5925 = vadd.f32 %v5764, %v5924
      %v5926 = vpop.f32.mrf.mxu0
      %5927 = vmatprep.mubr.bf16.mxu0 0
      %5928 = vmatmul.mubr.bf16.gmra.mxu0 %v4637
      %v5929 = vpop.f32.mrf.mxu0
      %v5930 = vadd.f32 %v5769, %v5929
      %v5931 = vpop.f32.mrf.mxu0
      %v5932 = vpop.f32.mrf.mxu0
      %v5933 = vadd.f32 %v5772, %v5932
      %v5934 = vpop.f32.mrf.mxu0
      %5935 = vmatprep.mubr.bf16.mxu0 0
      %5936 = vmatmul.mubr.bf16.gmra.mxu0 %v4680
      %v5937 = vpop.f32.mrf.mxu0
      %v5938 = vadd.f32 %v5777, %v5937
      %v5939 = vpop.f32.mrf.mxu0
      %v5940 = vpop.f32.mrf.mxu0
      %v5941 = vadd.f32 %v5780, %v5940
      %v5942 = vpop.f32.mrf.mxu0
      %5943 = vmatprep.mubr.bf16.mxu0 0
      %5944 = vmatmul.mubr.bf16.gmra.mxu0 %v4723
      %v5945 = vpop.f32.mrf.mxu0
      %v5946 = vadd.f32 %v5785, %v5945
      %v5947 = vpop.f32.mrf.mxu0
      %v5948 = vpop.f32.mrf.mxu0
      %v5949 = vadd.f32 %v5788, %v5948
      %v5950 = vpop.f32.mrf.mxu0
      %5951 = vmatprep.mubr.bf16.mxu0 0
      %5952 = vmatmul.mubr.bf16.gmra.mxu0 %v4766
      %v5953 = vpop.f32.mrf.mxu0
      %v5954 = vadd.f32 %v5793, %v5953
      %v5955 = vpop.f32.mrf.mxu0
      %v5956 = vpop.f32.mrf.mxu0
      %v5957 = vadd.f32 %v5796, %v5956
      %v5958 = vpop.f32.mrf.mxu0
      %5959 = vmatprep.mubr.bf16.mxu0 0
      %5960 = vmatmul.mubr.bf16.gmra.mxu0 %v4809
      %v5961 = vpop.f32.mrf.mxu0
      %v5962 = vadd.f32 %v5801, %v5961
      %v5963 = vpop.f32.mrf.mxu0
      %v5964 = vpop.f32.mrf.mxu0
      %v5965 = vadd.f32 %v5804, %v5964
      %v5966 = vpop.f32.mrf.mxu0
      %5967 = vmatprep.mubr.bf16.mxu0 0
      %5968 = vmatmul.mubr.bf16.gmra.mxu0 %v4852
      %v5969 = vpop.f32.mrf.mxu0
      %v5970 = vadd.f32 %v5809, %v5969
      %v5971 = vpop.f32.mrf.mxu0
      %v5972 = vpop.f32.mrf.mxu0
      %v5973 = vadd.f32 %v5812, %v5972
      %v5974 = vpop.f32.mrf.mxu0
      %5975 = vdwg.mxu0
      %v5977 = vshrl.u32 %v3893, 16
      %v5979 = vrot.slane %v5977, 3
      %v5980 = vshll.u32 %v3893, 16
      %v5982 = vrot.slane %v5980, 4
      %v5983 = vor.u32 %v5979, %v5982
      %v5985 = vshrl.u32 %v3894, 16
      %v5987 = vrot.slane %v5985, 3
      %v5988 = vshll.u32 %v3894, 16
      %v5990 = vrot.slane %v5988, 4
      %v5991 = vor.u32 %v5987, %v5990
      %v5992 = vsel %vm1003, %v5983, %v5991
      %v5994 = vshrl.u32 %v4056, 16
      %v5996 = vrot.slane %v5994, 3
      %v5997 = vshll.u32 %v4056, 16
      %v5999 = vrot.slane %v5997, 4
      %v6000 = vor.u32 %v5996, %v5999
      %v6001 = vsel %vm1003, %v6000, %v6000
      %v6003 = vshrl.u32 %v4162, 16
      %v6005 = vrot.slane %v6003, 3
      %v6006 = vshll.u32 %v4162, 16
      %v6008 = vrot.slane %v6006, 4
      %v6009 = vor.u32 %v6005, %v6008
      %v6011 = vshrl.u32 %v4164, 16
      %v6013 = vrot.slane %v6011, 3
      %v6014 = vshll.u32 %v4164, 16
      %v6016 = vrot.slane %v6014, 4
      %v6017 = vor.u32 %v6013, %v6016
      %v6018 = vsel %vm1003, %v6009, %v6017
      %s6022 = scalar_lea.vmem %s4, 384
      %v6023 = vld [vmem:[%s6022] sm:$0xf]
      %v6024 = vld [vmem:[%s6022 + $0x4] sm:$0xf]
      %v6025 = vld [vmem:[%s6022 + $0x8] sm:$0xf]
      %v6026 = vld [vmem:[%s6022 + $0xc] sm:$0xf]
      %v6027 = vld [vmem:[%s6022 + $0x10] sm:$0xf]
      %v6028 = vld [vmem:[%s6022 + $0x14] sm:$0xf]
      %v6029 = vld [vmem:[%s6022 + $0x18] sm:$0xf]
      %v6030 = vld [vmem:[%s6022 + $0x1c] sm:$0xf]
      %v6031 = vld [vmem:[%s6022 + $0x20] sm:$0xf]
      %v6032 = vld [vmem:[%s6022 + $0x24] sm:$0xf]
      %v6033 = vld [vmem:[%s6022 + $0x28] sm:$0xf]
      %v6034 = vld [vmem:[%s6022 + $0x2c] sm:$0xf]
      %v6035 = vld [vmem:[%s6022 + $0x30] sm:$0xf]
      %v6036 = vld [vmem:[%s6022 + $0x34] sm:$0xf]
      %v6037 = vld [vmem:[%s6022 + $0x38] sm:$0xf]
      %v6038 = vld [vmem:[%s6022 + $0x3c] sm:$0xf]
      %v6039 = vld [vmem:[%s6022 + $0x40] sm:$0xf]
      %v6040 = vld [vmem:[%s6022 + $0x44] sm:$0xf]
      %v6041 = vld [vmem:[%s6022 + $0x48] sm:$0xf]
      %v6042 = vld [vmem:[%s6022 + $0x4c] sm:$0xf]
      %v6043 = vld [vmem:[%s6022 + $0x50] sm:$0xf]
      %v6044 = vld [vmem:[%s6022 + $0x54] sm:$0xf]
      %v6045 = vld [vmem:[%s6022 + $0x58] sm:$0xf]
      %v6046 = vld [vmem:[%s6022 + $0x5c] sm:$0xf]
      %v6047 = vld [vmem:[%s6022 + $0x60] sm:$0xf]
      %v6048 = vld [vmem:[%s6022 + $0x64] sm:$0xf]
      %v6049 = vld [vmem:[%s6022 + $0x68] sm:$0xf]
      %v6050 = vld [vmem:[%s6022 + $0x6c] sm:$0xf]
      %v6051 = vld [vmem:[%s6022 + $0x70] sm:$0xf]
      %v6052 = vld [vmem:[%s6022 + $0x74] sm:$0xf]
      %v6053 = vld [vmem:[%s6022 + $0x78] sm:$0xf]
      %v6054 = vld [vmem:[%s6022 + $0x7c] sm:$0xf]
      %v6055 = vld [vmem:[%s6022 + $0x80] sm:$0xf]
      %v6056 = vld [vmem:[%s6022 + $0x84] sm:$0xf]
      %v6057 = vld [vmem:[%s6022 + $0x88] sm:$0xf]
      %v6058 = vld [vmem:[%s6022 + $0x8c] sm:$0xf]
      %v6059 = vld [vmem:[%s6022 + $0x90] sm:$0xf]
      %v6060 = vld [vmem:[%s6022 + $0x94] sm:$0xf]
      %v6061 = vld [vmem:[%s6022 + $0x98] sm:$0xf]
      %v6062 = vld [vmem:[%s6022 + $0x9c] sm:$0xf]
      %v6063 = vld [vmem:[%s6022 + $0xa0] sm:$0xf]
      %v6064 = vld [vmem:[%s6022 + $0xa4] sm:$0xf]
      %v6065 = vld [vmem:[%s6022 + $0xa8] sm:$0xf]
      %v6066 = vld [vmem:[%s6022 + $0xac] sm:$0xf]
      %v6067 = vld [vmem:[%s6022 + $0xb0] sm:$0xf]
      %v6068 = vld [vmem:[%s6022 + $0xb4] sm:$0xf]
      %v6069 = vld [vmem:[%s6022 + $0xb8] sm:$0xf]
      %v6070 = vld [vmem:[%s6022 + $0xbc] sm:$0xf]
      %v6119 = vunpack.c.l.b16 %v6023
      %v6120 = vunpack.c.l.b16 %v6024
      %v6121 = vunpack.c.l.b16 %v6025
      %v6122 = vunpack.c.l.b16 %v6026
      %v6123 = vunpack.c.l.b16 %v6027
      %v6124 = vunpack.c.l.b16 %v6028
      %v6125 = vunpack.c.l.b16 %v6029
      %v6126 = vunpack.c.l.b16 %v6030
      %v6127 = vunpack.c.l.b16 %v6031
      %v6128 = vunpack.c.l.b16 %v6032
      %v6129 = vunpack.c.l.b16 %v6033
      %v6130 = vunpack.c.l.b16 %v6034
      %v6131 = vunpack.c.l.b16 %v6035
      %v6132 = vunpack.c.l.b16 %v6036
      %v6133 = vunpack.c.l.b16 %v6037
      %v6134 = vunpack.c.l.b16 %v6038
      %v6135 = vunpack.c.l.b16 %v6039
      %v6136 = vunpack.c.l.b16 %v6040
      %v6137 = vunpack.c.l.b16 %v6041
      %v6138 = vunpack.c.l.b16 %v6042
      %v6139 = vunpack.c.l.b16 %v6043
      %v6140 = vunpack.c.l.b16 %v6044
      %v6141 = vunpack.c.l.b16 %v6045
      %v6142 = vunpack.c.l.b16 %v6046
      %v6143 = vunpack.c.l.b16 %v6047
      %v6144 = vunpack.c.l.b16 %v6048
      %v6145 = vunpack.c.l.b16 %v6049
      %v6146 = vunpack.c.l.b16 %v6050
      %v6147 = vunpack.c.l.b16 %v6051
      %v6148 = vunpack.c.l.b16 %v6052
      %v6149 = vunpack.c.l.b16 %v6053
      %v6150 = vunpack.c.l.b16 %v6054
      %v6151 = vunpack.c.l.b16 %v6055
      %v6152 = vunpack.c.l.b16 %v6056
      %v6153 = vunpack.c.l.b16 %v6057
      %v6154 = vunpack.c.l.b16 %v6058
      %v6155 = vunpack.c.l.b16 %v6059
      %v6156 = vunpack.c.l.b16 %v6060
      %v6157 = vunpack.c.l.b16 %v6061
      %v6158 = vunpack.c.l.b16 %v6062
      %v6159 = vunpack.c.l.b16 %v6063
      %v6160 = vunpack.c.l.b16 %v6064
      %v6161 = vunpack.c.l.b16 %v6065
      %v6162 = vunpack.c.l.b16 %v6066
      %v6163 = vunpack.c.l.b16 %v6067
      %v6164 = vunpack.c.l.b16 %v6068
      %v6165 = vunpack.c.l.b16 %v6069
      %v6166 = vunpack.c.l.b16 %v6070
      %v6167 = vpack.c.b16 %v6120, %v6119
      %v6168 = vpack.c.b16 %v6122, %v6121
      %v6169 = vpack.c.b16 %v6124, %v6123
      %v6170 = vpack.c.b16 %v6126, %v6125
      %v6171 = vpack.c.b16 %v6128, %v6127
      %v6172 = vpack.c.b16 %v6130, %v6129
      %v6173 = vpack.c.b16 %v6132, %v6131
      %v6174 = vpack.c.b16 %v6134, %v6133
      %v6175 = vpack.c.b16 %v6136, %v6135
      %v6176 = vpack.c.b16 %v6138, %v6137
      %v6177 = vpack.c.b16 %v6140, %v6139
      %v6178 = vpack.c.b16 %v6142, %v6141
      %v6179 = vpack.c.b16 %v6144, %v6143
      %v6180 = vpack.c.b16 %v6146, %v6145
      %v6181 = vpack.c.b16 %v6148, %v6147
      %v6182 = vpack.c.b16 %v6150, %v6149
      %v6183 = vpack.c.b16 %v6152, %v6151
      %v6184 = vpack.c.b16 %v6154, %v6153
      %v6185 = vpack.c.b16 %v6156, %v6155
      %v6186 = vpack.c.b16 %v6158, %v6157
      %v6187 = vpack.c.b16 %v6160, %v6159
      %v6188 = vpack.c.b16 %v6162, %v6161
      %v6189 = vpack.c.b16 %v6164, %v6163
      %v6190 = vpack.c.b16 %v6166, %v6165
      %6215 = vmatprep.subr.bf16.mxu0 0
      %6216 = vmatpush1.bf16.msra.mxu0 %v6174
      %6217 = vmatprep.subr.bf16.mxu0 0
      %6218 = vmatpush1.bf16.msra.mxu0 %v6173
      %6219 = vmatprep.subr.bf16.mxu0 0
      %6220 = vmatpush1.bf16.msra.mxu0 %v6172
      %6221 = vmatprep.subr.bf16.mxu0 0
      %6222 = vmatpush1.bf16.msra.mxu0 %v6171
      %6223 = vmatprep.subr.bf16.mxu0 0
      %6224 = vmatpush1.bf16.msra.mxu0 %v6170
      %6225 = vmatprep.subr.bf16.mxu0 0
      %6226 = vmatpush1.bf16.msra.mxu0 %v6169
      %6227 = vmatprep.subr.bf16.mxu0 0
      %6228 = vmatpush1.bf16.msra.mxu0 %v6168
      %6229 = vmatprep.subr.bf16.mxu0 0
      %6230 = vmatpush1.bf16.msra.mxu0 %v6167
      %6231 = vmatprep.subr.bf16.mxu0 0
      %6232 = vmatpush2.bf16.msra.mxu0 %v6182
      %6233 = vmatprep.subr.bf16.mxu0 0
      %6234 = vmatpush2.bf16.msra.mxu0 %v6181
      %6235 = vmatprep.subr.bf16.mxu0 0
      %6236 = vmatpush2.bf16.msra.mxu0 %v6180
      %6237 = vmatprep.subr.bf16.mxu0 0
      %6238 = vmatpush2.bf16.msra.mxu0 %v6179
      %6239 = vmatprep.subr.bf16.mxu0 0
      %6240 = vmatpush2.bf16.msra.mxu0 %v6178
      %6241 = vmatprep.subr.bf16.mxu0 0
      %6242 = vmatpush2.bf16.msra.mxu0 %v6177
      %6243 = vmatprep.subr.bf16.mxu0 0
      %6244 = vmatpush2.bf16.msra.mxu0 %v6176
      %6245 = vmatprep.subr.bf16.mxu0 0
      %6246 = vmatpush2.bf16.msra.mxu0 %v6175
      %6247 = vmatprep.mubr.bf16.mxu0 %v4276
      %6248 = vmatmul.mubr.bf16.gmra.mxu0 %v4267
      %v6249 = vpop.f32.mrf.mxu0
      %v6250 = vadd.f32 0.0, %v6249
      %v6251 = vpop.f32.mrf.mxu0
      %v6252 = vpop.f32.mrf.mxu0
      %v6253 = vadd.f32 0.0, %v6252
      %v6254 = vpop.f32.mrf.mxu0
      %6255 = vmatprep.mubr.bf16.mxu0 %v4319
      %6256 = vmatmul.mubr.bf16.gmra.mxu0 %v4310
      %v6257 = vpop.f32.mrf.mxu0
      %v6258 = vadd.f32 0.0, %v6257
      %v6259 = vpop.f32.mrf.mxu0
      %v6260 = vpop.f32.mrf.mxu0
      %v6261 = vadd.f32 0.0, %v6260
      %v6262 = vpop.f32.mrf.mxu0
      %6263 = vmatprep.mubr.bf16.mxu0 %v4362
      %6264 = vmatmul.mubr.bf16.gmra.mxu0 %v4353
      %v6265 = vpop.f32.mrf.mxu0
      %v6266 = vadd.f32 0.0, %v6265
      %v6267 = vpop.f32.mrf.mxu0
      %v6268 = vpop.f32.mrf.mxu0
      %v6269 = vadd.f32 0.0, %v6268
      %v6270 = vpop.f32.mrf.mxu0
      %6271 = vmatprep.mubr.bf16.mxu0 %v4405
      %6272 = vmatmul.mubr.bf16.gmra.mxu0 %v4396
      %v6273 = vpop.f32.mrf.mxu0
      %v6274 = vadd.f32 0.0, %v6273
      %v6275 = vpop.f32.mrf.mxu0
      %v6276 = vpop.f32.mrf.mxu0
      %v6277 = vadd.f32 0.0, %v6276
      %v6278 = vpop.f32.mrf.mxu0
      %6279 = vmatprep.mubr.bf16.mxu0 %v4448
      %6280 = vmatmul.mubr.bf16.gmra.mxu0 %v4439
      %v6281 = vpop.f32.mrf.mxu0
      %v6282 = vadd.f32 0.0, %v6281
      %v6283 = vpop.f32.mrf.mxu0
      %v6284 = vpop.f32.mrf.mxu0
      %v6285 = vadd.f32 0.0, %v6284
      %v6286 = vpop.f32.mrf.mxu0
      %6287 = vmatprep.mubr.bf16.mxu0 %v4491
      %6288 = vmatmul.mubr.bf16.gmra.mxu0 %v4482
      %v6289 = vpop.f32.mrf.mxu0
      %v6290 = vadd.f32 0.0, %v6289
      %v6291 = vpop.f32.mrf.mxu0
      %v6292 = vpop.f32.mrf.mxu0
      %v6293 = vadd.f32 0.0, %v6292
      %v6294 = vpop.f32.mrf.mxu0
      %6295 = vmatprep.mubr.bf16.mxu0 %v4534
      %6296 = vmatmul.mubr.bf16.gmra.mxu0 %v4525
      %v6297 = vpop.f32.mrf.mxu0
      %v6298 = vadd.f32 0.0, %v6297
      %v6299 = vpop.f32.mrf.mxu0
      %v6300 = vpop.f32.mrf.mxu0
      %v6301 = vadd.f32 0.0, %v6300
      %v6302 = vpop.f32.mrf.mxu0
      %6303 = vmatprep.mubr.bf16.mxu0 %v4577
      %6304 = vmatmul.mubr.bf16.gmra.mxu0 %v4568
      %v6305 = vpop.f32.mrf.mxu0
      %v6306 = vadd.f32 0.0, %v6305
      %v6307 = vpop.f32.mrf.mxu0
      %v6308 = vpop.f32.mrf.mxu0
      %v6309 = vadd.f32 0.0, %v6308
      %v6310 = vpop.f32.mrf.mxu0
      %6311 = vmatprep.mubr.bf16.mxu0 %v4620
      %6312 = vmatmul.mubr.bf16.gmra.mxu0 %v4611
      %v6313 = vpop.f32.mrf.mxu0
      %v6314 = vadd.f32 0.0, %v6313
      %v6315 = vpop.f32.mrf.mxu0
      %v6316 = vpop.f32.mrf.mxu0
      %v6317 = vadd.f32 0.0, %v6316
      %v6318 = vpop.f32.mrf.mxu0
      %6319 = vmatprep.mubr.bf16.mxu0 %v4663
      %6320 = vmatmul.mubr.bf16.gmra.mxu0 %v4654
      %v6321 = vpop.f32.mrf.mxu0
      %v6322 = vadd.f32 0.0, %v6321
      %v6323 = vpop.f32.mrf.mxu0
      %v6324 = vpop.f32.mrf.mxu0
      %v6325 = vadd.f32 0.0, %v6324
      %v6326 = vpop.f32.mrf.mxu0
      %6327 = vmatprep.mubr.bf16.mxu0 %v4706
      %6328 = vmatmul.mubr.bf16.gmra.mxu0 %v4697
      %v6329 = vpop.f32.mrf.mxu0
      %v6330 = vadd.f32 0.0, %v6329
      %v6331 = vpop.f32.mrf.mxu0
      %v6332 = vpop.f32.mrf.mxu0
      %v6333 = vadd.f32 0.0, %v6332
      %v6334 = vpop.f32.mrf.mxu0
      %6335 = vmatprep.mubr.bf16.mxu0 %v4749
      %6336 = vmatmul.mubr.bf16.gmra.mxu0 %v4740
      %v6337 = vpop.f32.mrf.mxu0
      %v6338 = vadd.f32 0.0, %v6337
      %v6339 = vpop.f32.mrf.mxu0
      %v6340 = vpop.f32.mrf.mxu0
      %v6341 = vadd.f32 0.0, %v6340
      %v6342 = vpop.f32.mrf.mxu0
      %6343 = vmatprep.mubr.bf16.mxu0 %v4792
      %6344 = vmatmul.mubr.bf16.gmra.mxu0 %v4783
      %v6345 = vpop.f32.mrf.mxu0
      %v6346 = vadd.f32 0.0, %v6345
      %v6347 = vpop.f32.mrf.mxu0
      %v6348 = vpop.f32.mrf.mxu0
      %v6349 = vadd.f32 0.0, %v6348
      %v6350 = vpop.f32.mrf.mxu0
      %6351 = vmatprep.mubr.bf16.mxu0 %v4835
      %6352 = vmatmul.mubr.bf16.gmra.mxu0 %v4826
      %v6353 = vpop.f32.mrf.mxu0
      %v6354 = vadd.f32 0.0, %v6353
      %v6355 = vpop.f32.mrf.mxu0
      %v6356 = vpop.f32.mrf.mxu0
      %v6357 = vadd.f32 0.0, %v6356
      %v6358 = vpop.f32.mrf.mxu0
      %6359 = vmatprep.mubr.bf16.mxu0 %v4974
      %6360 = vmatmul.mubr.bf16.gmra.mxu0 %v4965
      %v6361 = vpop.f32.mrf.mxu0
      %v6362 = vadd.f32 0.0, %v6361
      %v6363 = vpop.f32.mrf.mxu0
      %v6364 = vpop.f32.mrf.mxu0
      %v6365 = vadd.f32 0.0, %v6364
      %v6366 = vpop.f32.mrf.mxu0
      %6367 = vmatprep.mubr.bf16.mxu0 %v6001
      %6368 = vmatmul.mubr.bf16.gmra.mxu0 %v5992
      %v6369 = vpop.f32.mrf.mxu0
      %v6370 = vadd.f32 0.0, %v6369
      %v6371 = vpop.f32.mrf.mxu0
      %v6372 = vpop.f32.mrf.mxu0
      %v6373 = vadd.f32 0.0, %v6372
      %v6374 = vpop.f32.mrf.mxu0
      %6375 = vdwg.mxu0
      %6376 = vmatprep.subr.bf16.mxu0 0
      %6377 = vmatpush1.bf16.msra.mxu0 %v6190
      %6378 = vmatprep.subr.bf16.mxu0 0
      %6379 = vmatpush1.bf16.msra.mxu0 %v6189
      %6380 = vmatprep.subr.bf16.mxu0 0
      %6381 = vmatpush1.bf16.msra.mxu0 %v6188
      %6382 = vmatprep.subr.bf16.mxu0 0
      %6383 = vmatpush1.bf16.msra.mxu0 %v6187
      %6384 = vmatprep.subr.bf16.mxu0 0
      %6385 = vmatpush1.bf16.msra.mxu0 %v6186
      %6386 = vmatprep.subr.bf16.mxu0 0
      %6387 = vmatpush1.bf16.msra.mxu0 %v6185
      %6388 = vmatprep.subr.bf16.mxu0 0
      %6389 = vmatpush1.bf16.msra.mxu0 %v6184
      %6390 = vmatprep.subr.bf16.mxu0 0
      %6391 = vmatpush1.bf16.msra.mxu0 %v6183
      %6392 = vmatprep.subr.bf16.mxu0 0
      %6393 = vmatpush2.bf16.msra.mxu0 0
      %6394 = vmatprep.subr.bf16.mxu0 0
      %6395 = vmatpush2.bf16.msra.mxu0 0
      %6396 = vmatprep.subr.bf16.mxu0 0
      %6397 = vmatpush2.bf16.msra.mxu0 0
      %6398 = vmatprep.subr.bf16.mxu0 0
      %6399 = vmatpush2.bf16.msra.mxu0 0
      %6400 = vmatprep.subr.bf16.mxu0 0
      %6401 = vmatpush2.bf16.msra.mxu0 0
      %6402 = vmatprep.subr.bf16.mxu0 0
      %6403 = vmatpush2.bf16.msra.mxu0 0
      %6404 = vmatprep.subr.bf16.mxu0 0
      %6405 = vmatpush2.bf16.msra.mxu0 0
      %6406 = vmatprep.subr.bf16.mxu0 0
      %6407 = vmatpush2.bf16.msra.mxu0 0
      %6408 = vmatprep.mubr.bf16.mxu0 0
      %6409 = vmatmul.mubr.bf16.gmra.mxu0 %v4293
      %v6410 = vpop.f32.mrf.mxu0
      %v6411 = vadd.f32 %v6250, %v6410
      %v6412 = vpop.f32.mrf.mxu0
      %v6413 = vpop.f32.mrf.mxu0
      %v6414 = vadd.f32 %v6253, %v6413
      %v6415 = vpop.f32.mrf.mxu0
      %6416 = vmatprep.mubr.bf16.mxu0 0
      %6417 = vmatmul.mubr.bf16.gmra.mxu0 %v4336
      %v6418 = vpop.f32.mrf.mxu0
      %v6419 = vadd.f32 %v6258, %v6418
      %v6420 = vpop.f32.mrf.mxu0
      %v6421 = vpop.f32.mrf.mxu0
      %v6422 = vadd.f32 %v6261, %v6421
      %v6423 = vpop.f32.mrf.mxu0
      %6424 = vmatprep.mubr.bf16.mxu0 0
      %6425 = vmatmul.mubr.bf16.gmra.mxu0 %v4379
      %v6426 = vpop.f32.mrf.mxu0
      %v6427 = vadd.f32 %v6266, %v6426
      %v6428 = vpop.f32.mrf.mxu0
      %v6429 = vpop.f32.mrf.mxu0
      %v6430 = vadd.f32 %v6269, %v6429
      %v6431 = vpop.f32.mrf.mxu0
      %6432 = vmatprep.mubr.bf16.mxu0 0
      %6433 = vmatmul.mubr.bf16.gmra.mxu0 %v4422
      %v6434 = vpop.f32.mrf.mxu0
      %v6435 = vadd.f32 %v6274, %v6434
      %v6436 = vpop.f32.mrf.mxu0
      %v6437 = vpop.f32.mrf.mxu0
      %v6438 = vadd.f32 %v6277, %v6437
      %v6439 = vpop.f32.mrf.mxu0
      %6440 = vmatprep.mubr.bf16.mxu0 0
      %6441 = vmatmul.mubr.bf16.gmra.mxu0 %v4465
      %v6442 = vpop.f32.mrf.mxu0
      %v6443 = vadd.f32 %v6282, %v6442
      %v6444 = vpop.f32.mrf.mxu0
      %v6445 = vpop.f32.mrf.mxu0
      %v6446 = vadd.f32 %v6285, %v6445
      %v6447 = vpop.f32.mrf.mxu0
      %6448 = vmatprep.mubr.bf16.mxu0 0
      %6449 = vmatmul.mubr.bf16.gmra.mxu0 %v4508
      %v6450 = vpop.f32.mrf.mxu0
      %v6451 = vadd.f32 %v6290, %v6450
      %v6452 = vpop.f32.mrf.mxu0
      %v6453 = vpop.f32.mrf.mxu0
      %v6454 = vadd.f32 %v6293, %v6453
      %v6455 = vpop.f32.mrf.mxu0
      %6456 = vmatprep.mubr.bf16.mxu0 0
      %6457 = vmatmul.mubr.bf16.gmra.mxu0 %v4551
      %v6458 = vpop.f32.mrf.mxu0
      %v6459 = vadd.f32 %v6298, %v6458
      %v6460 = vpop.f32.mrf.mxu0
      %v6461 = vpop.f32.mrf.mxu0
      %v6462 = vadd.f32 %v6301, %v6461
      %v6463 = vpop.f32.mrf.mxu0
      %6464 = vmatprep.mubr.bf16.mxu0 0
      %6465 = vmatmul.mubr.bf16.gmra.mxu0 %v4594
      %v6466 = vpop.f32.mrf.mxu0
      %v6467 = vadd.f32 %v6306, %v6466
      %v6468 = vpop.f32.mrf.mxu0
      %v6469 = vpop.f32.mrf.mxu0
      %v6470 = vadd.f32 %v6309, %v6469
      %v6471 = vpop.f32.mrf.mxu0
      %6472 = vmatprep.mubr.bf16.mxu0 0
      %6473 = vmatmul.mubr.bf16.gmra.mxu0 %v4637
      %v6474 = vpop.f32.mrf.mxu0
      %v6475 = vadd.f32 %v6314, %v6474
      %v6476 = vpop.f32.mrf.mxu0
      %v6477 = vpop.f32.mrf.mxu0
      %v6478 = vadd.f32 %v6317, %v6477
      %v6479 = vpop.f32.mrf.mxu0
      %6480 = vmatprep.mubr.bf16.mxu0 0
      %6481 = vmatmul.mubr.bf16.gmra.mxu0 %v4680
      %v6482 = vpop.f32.mrf.mxu0
      %v6483 = vadd.f32 %v6322, %v6482
      %v6484 = vpop.f32.mrf.mxu0
      %v6485 = vpop.f32.mrf.mxu0
      %v6486 = vadd.f32 %v6325, %v6485
      %v6487 = vpop.f32.mrf.mxu0
      %6488 = vmatprep.mubr.bf16.mxu0 0
      %6489 = vmatmul.mubr.bf16.gmra.mxu0 %v4723
      %v6490 = vpop.f32.mrf.mxu0
      %v6491 = vadd.f32 %v6330, %v6490
      %v6492 = vpop.f32.mrf.mxu0
      %v6493 = vpop.f32.mrf.mxu0
      %v6494 = vadd.f32 %v6333, %v6493
      %v6495 = vpop.f32.mrf.mxu0
      %6496 = vmatprep.mubr.bf16.mxu0 0
      %6497 = vmatmul.mubr.bf16.gmra.mxu0 %v4766
      %v6498 = vpop.f32.mrf.mxu0
      %v6499 = vadd.f32 %v6338, %v6498
      %v6500 = vpop.f32.mrf.mxu0
      %v6501 = vpop.f32.mrf.mxu0
      %v6502 = vadd.f32 %v6341, %v6501
      %v6503 = vpop.f32.mrf.mxu0
      %6504 = vmatprep.mubr.bf16.mxu0 0
      %6505 = vmatmul.mubr.bf16.gmra.mxu0 %v4809
      %v6506 = vpop.f32.mrf.mxu0
      %v6507 = vadd.f32 %v6346, %v6506
      %v6508 = vpop.f32.mrf.mxu0
      %v6509 = vpop.f32.mrf.mxu0
      %v6510 = vadd.f32 %v6349, %v6509
      %v6511 = vpop.f32.mrf.mxu0
      %6512 = vmatprep.mubr.bf16.mxu0 0
      %6513 = vmatmul.mubr.bf16.gmra.mxu0 %v4852
      %v6514 = vpop.f32.mrf.mxu0
      %v6515 = vadd.f32 %v6354, %v6514
      %v6516 = vpop.f32.mrf.mxu0
      %v6517 = vpop.f32.mrf.mxu0
      %v6518 = vadd.f32 %v6357, %v6517
      %v6519 = vpop.f32.mrf.mxu0
      %6520 = vmatprep.mubr.bf16.mxu0 0
      %6521 = vmatmul.mubr.bf16.gmra.mxu0 %v4991
      %v6522 = vpop.f32.mrf.mxu0
      %v6523 = vadd.f32 %v6362, %v6522
      %v6524 = vpop.f32.mrf.mxu0
      %v6525 = vpop.f32.mrf.mxu0
      %v6526 = vadd.f32 %v6365, %v6525
      %v6527 = vpop.f32.mrf.mxu0
      %6528 = vmatprep.mubr.bf16.mxu0 0
      %6529 = vmatmul.mubr.bf16.gmra.mxu0 %v6018
      %v6530 = vpop.f32.mrf.mxu0
      %v6531 = vadd.f32 %v6370, %v6530
      %v6532 = vpop.f32.mrf.mxu0
      %v6533 = vpop.f32.mrf.mxu0
      %v6534 = vadd.f32 %v6373, %v6533
      %v6535 = vpop.f32.mrf.mxu0
      %6536 = vdwg.mxu0
      %v6537 = vadd.f32 %v5850, %v6411
      %v6538 = vadd.f32 %v5853, %v6414
      %v6539 = vadd.f32 %v5858, %v6419
      %v6540 = vadd.f32 %v5861, %v6422
      %v6541 = vadd.f32 %v5866, %v6427
      %v6542 = vadd.f32 %v5869, %v6430
      %v6543 = vadd.f32 %v5874, %v6435
      %v6544 = vadd.f32 %v5877, %v6438
      %v6545 = vadd.f32 %v5882, %v6443
      %v6546 = vadd.f32 %v5885, %v6446
      %v6547 = vadd.f32 %v5890, %v6451
      %v6548 = vadd.f32 %v5893, %v6454
      %v6549 = vadd.f32 %v5898, %v6459
      %v6550 = vadd.f32 %v5901, %v6462
      %v6551 = vadd.f32 %v5906, %v6467
      %v6552 = vadd.f32 %v5909, %v6470
      %v6553 = vadd.f32 %v5914, %v6475
      %v6554 = vadd.f32 %v5917, %v6478
      %v6555 = vadd.f32 %v5922, %v6483
      %v6556 = vadd.f32 %v5925, %v6486
      %v6557 = vadd.f32 %v5930, %v6491
      %v6558 = vadd.f32 %v5933, %v6494
      %v6559 = vadd.f32 %v5938, %v6499
      %v6560 = vadd.f32 %v5941, %v6502
      %v6561 = vadd.f32 %v5946, %v6507
      %v6562 = vadd.f32 %v5949, %v6510
      %v6563 = vadd.f32 %v5954, %v6515
      %v6564 = vadd.f32 %v5957, %v6518
      %v6565 = vadd.f32 %v5962, %v6523
      %v6566 = vadd.f32 %v5965, %v6526
      %v6567 = vadd.f32 %v5970, %v6531
      %v6568 = vadd.f32 %v5973, %v6534
      %v6569 = vld [vmem:[%s5] sm:$0x1]
      %v6571 = vlaneseq
      %v6572 = vshrl.u32 %v6571, 7
      %v6573 = vsub.s32 0, %v6572
      %v6574 = vrot.slane %v6569, %v6573
      %v6576 = vmul.f32 %v6537, %v6574
      %v6577 = vmul.f32 %v6538, %v6574
      %v6578 = vmul.f32 %v6539, %v6574
      %v6579 = vmul.f32 %v6540, %v6574
      %v6580 = vmul.f32 %v6541, %v6574
      %v6581 = vmul.f32 %v6542, %v6574
      %v6582 = vmul.f32 %v6543, %v6574
      %v6583 = vmul.f32 %v6544, %v6574
      %v6584 = vmul.f32 %v6545, %v6574
      %v6585 = vmul.f32 %v6546, %v6574
      %v6586 = vmul.f32 %v6547, %v6574
      %v6587 = vmul.f32 %v6548, %v6574
      %v6588 = vmul.f32 %v6549, %v6574
      %v6589 = vmul.f32 %v6550, %v6574
      %v6590 = vmul.f32 %v6551, %v6574
      %v6591 = vmul.f32 %v6552, %v6574
      %v6592 = vmul.f32 %v6553, %v6574
      %v6593 = vmul.f32 %v6554, %v6574
      %v6594 = vmul.f32 %v6555, %v6574
      %v6595 = vmul.f32 %v6556, %v6574
      %v6596 = vmul.f32 %v6557, %v6574
      %v6597 = vmul.f32 %v6558, %v6574
      %v6598 = vmul.f32 %v6559, %v6574
      %v6599 = vmul.f32 %v6560, %v6574
      %v6600 = vmul.f32 %v6561, %v6574
      %v6601 = vmul.f32 %v6562, %v6574
      %v6602 = vmul.f32 %v6563, %v6574
      %v6603 = vmul.f32 %v6564, %v6574
      %v6604 = vmul.f32 %v6565, %v6574
      %v6605 = vmul.f32 %v6566, %v6574
      %v6606 = vmul.f32 %v6567, %v6574
      %v6607 = vmul.f32 %v6568, %v6574
      %v6608 = vld [vmem:[%s6] sm:$0x1]
      %v6610 = vlaneseq
      %v6611 = vshrl.u32 %v6610, 7
      %v6612 = vsub.s32 0, %v6611
      %v6613 = vrot.slane %v6608, %v6612
      %v6615 = vadd.f32 %v6576, %v6613
      %v6616 = vadd.f32 %v6577, %v6613
      %v6617 = vadd.f32 %v6578, %v6613
      %v6618 = vadd.f32 %v6579, %v6613
      %v6619 = vadd.f32 %v6580, %v6613
      %v6620 = vadd.f32 %v6581, %v6613
      %v6621 = vadd.f32 %v6582, %v6613
      %v6622 = vadd.f32 %v6583, %v6613
      %v6623 = vadd.f32 %v6584, %v6613
      %v6624 = vadd.f32 %v6585, %v6613
      %v6625 = vadd.f32 %v6586, %v6613
      %v6626 = vadd.f32 %v6587, %v6613
      %v6627 = vadd.f32 %v6588, %v6613
      %v6628 = vadd.f32 %v6589, %v6613
      %v6629 = vadd.f32 %v6590, %v6613
      %v6630 = vadd.f32 %v6591, %v6613
      %v6631 = vadd.f32 %v6592, %v6613
      %v6632 = vadd.f32 %v6593, %v6613
      %v6633 = vadd.f32 %v6594, %v6613
      %v6634 = vadd.f32 %v6595, %v6613
      %v6635 = vadd.f32 %v6596, %v6613
      %v6636 = vadd.f32 %v6597, %v6613
      %v6637 = vadd.f32 %v6598, %v6613
      %v6638 = vadd.f32 %v6599, %v6613
      %v6639 = vadd.f32 %v6600, %v6613
      %v6640 = vadd.f32 %v6601, %v6613
      %v6641 = vadd.f32 %v6602, %v6613
      %v6642 = vadd.f32 %v6603, %v6613
      %v6643 = vadd.f32 %v6604, %v6613
      %v6644 = vadd.f32 %v6605, %v6613
      %v6645 = vadd.f32 %v6606, %v6613
      %v6646 = vadd.f32 %v6607, %v6613
      %v6647 = vld [vmem:[%s7] sm:$0xf]
      %v6648 = vld [vmem:[%s7 + $0x4] sm:$0xf]
      %v6649 = vld [vmem:[%s7 + $0x8] sm:$0xf]
      %v6650 = vld [vmem:[%s7 + $0xc] sm:$0xf]
      %v6651 = vld [vmem:[%s7 + $0x10] sm:$0xf]
      %v6652 = vld [vmem:[%s7 + $0x14] sm:$0xf]
      %v6653 = vld [vmem:[%s7 + $0x18] sm:$0xf]
      %v6654 = vld [vmem:[%s7 + $0x1c] sm:$0xf]
      %v6655 = vld [vmem:[%s7 + $0x20] sm:$0xf]
      %v6656 = vld [vmem:[%s7 + $0x24] sm:$0xf]
      %v6657 = vld [vmem:[%s7 + $0x28] sm:$0xf]
      %v6658 = vld [vmem:[%s7 + $0x2c] sm:$0xf]
      %v6659 = vld [vmem:[%s7 + $0x30] sm:$0xf]
      %v6660 = vld [vmem:[%s7 + $0x34] sm:$0xf]
      %v6661 = vld [vmem:[%s7 + $0x38] sm:$0xf]
      %v6662 = vld [vmem:[%s7 + $0x3c] sm:$0xf]
      %v6695 = vunpack.c.l.b16 %v451
      %v6696 = vunpack.c.l.b16 %v452
      %v6697 = vunpack.c.l.b16 %v453
      %v6698 = vunpack.c.l.b16 %v454
      %v6699 = vunpack.c.l.b16 %v455
      %v6700 = vunpack.c.l.b16 %v456
      %v6701 = vunpack.c.l.b16 %v457
      %v6702 = vunpack.c.l.b16 %v458
      %v6703 = vunpack.c.l.b16 %v459
      %v6704 = vunpack.c.l.b16 %v460
      %v6705 = vunpack.c.l.b16 %v461
      %v6706 = vunpack.c.l.b16 %v462
      %v6707 = vunpack.c.l.b16 %v463
      %v6708 = vunpack.c.l.b16 %v464
      %v6709 = vunpack.c.l.b16 %v465
      %v6710 = vunpack.c.l.b16 %v466
      %v6711 = vunpack.c.l.b16 %v467
      %v6712 = vunpack.c.l.b16 %v468
      %v6713 = vunpack.c.l.b16 %v469
      %v6714 = vunpack.c.l.b16 %v470
      %v6715 = vunpack.c.l.b16 %v471
      %v6716 = vunpack.c.l.b16 %v472
      %v6717 = vunpack.c.l.b16 %v473
      %v6718 = vunpack.c.l.b16 %v474
      %v6719 = vunpack.c.l.b16 %v475
      %v6720 = vunpack.c.l.b16 %v476
      %v6721 = vunpack.c.l.b16 %v477
      %v6722 = vunpack.c.l.b16 %v478
      %v6723 = vunpack.c.l.b16 %v479
      %v6724 = vunpack.c.l.b16 %v480
      %v6725 = vunpack.c.l.b16 %v481
      %v6726 = vunpack.c.l.b16 %v482
      %v6727 = vpack.c.b16 %v6696, %v6695
      %v6728 = vpack.c.b16 %v6698, %v6697
      %v6729 = vpack.c.b16 %v6700, %v6699
      %v6730 = vpack.c.b16 %v6702, %v6701
      %v6731 = vpack.c.b16 %v6704, %v6703
      %v6732 = vpack.c.b16 %v6706, %v6705
      %v6733 = vpack.c.b16 %v6708, %v6707
      %v6734 = vpack.c.b16 %v6710, %v6709
      %v6735 = vpack.c.b16 %v6712, %v6711
      %v6736 = vpack.c.b16 %v6714, %v6713
      %v6737 = vpack.c.b16 %v6716, %v6715
      %v6738 = vpack.c.b16 %v6718, %v6717
      %v6739 = vpack.c.b16 %v6720, %v6719
      %v6740 = vpack.c.b16 %v6722, %v6721
      %v6741 = vpack.c.b16 %v6724, %v6723
      %v6742 = vpack.c.b16 %v6726, %v6725
      %v6775 = vunpack.c.l.b16 %v6647
      %v6776 = vunpack.c.l.b16 %v6648
      %v6777 = vunpack.c.l.b16 %v6649
      %v6778 = vunpack.c.l.b16 %v6650
      %v6779 = vunpack.c.l.b16 %v6651
      %v6780 = vunpack.c.l.b16 %v6652
      %v6781 = vunpack.c.l.b16 %v6653
      %v6782 = vunpack.c.l.b16 %v6654
      %v6783 = vunpack.c.l.b16 %v6655
      %v6784 = vunpack.c.l.b16 %v6656
      %v6785 = vunpack.c.l.b16 %v6657
      %v6786 = vunpack.c.l.b16 %v6658
      %v6787 = vunpack.c.l.b16 %v6659
      %v6788 = vunpack.c.l.b16 %v6660
      %v6789 = vunpack.c.l.b16 %v6661
      %v6790 = vunpack.c.l.b16 %v6662
      %v6791 = vpack.c.b16 %v6776, %v6775
      %v6792 = vpack.c.b16 %v6778, %v6777
      %v6793 = vpack.c.b16 %v6780, %v6779
      %v6794 = vpack.c.b16 %v6782, %v6781
      %v6795 = vpack.c.b16 %v6784, %v6783
      %v6796 = vpack.c.b16 %v6786, %v6785
      %v6797 = vpack.c.b16 %v6788, %v6787
      %v6798 = vpack.c.b16 %v6790, %v6789
      %6807 = vmatprep.subr.bf16.mxu0 0
      %6808 = vmatpush1.bf16.msra.mxu0 %v6798
      %6809 = vmatprep.subr.bf16.mxu0 0
      %6810 = vmatpush1.bf16.msra.mxu0 %v6797
      %6811 = vmatprep.subr.bf16.mxu0 0
      %6812 = vmatpush1.bf16.msra.mxu0 %v6796
      %6813 = vmatprep.subr.bf16.mxu0 0
      %6814 = vmatpush1.bf16.msra.mxu0 %v6795
      %6815 = vmatprep.subr.bf16.mxu0 0
      %6816 = vmatpush1.bf16.msra.mxu0 %v6794
      %6817 = vmatprep.subr.bf16.mxu0 0
      %6818 = vmatpush1.bf16.msra.mxu0 %v6793
      %6819 = vmatprep.subr.bf16.mxu0 0
      %6820 = vmatpush1.bf16.msra.mxu0 %v6792
      %6821 = vmatprep.subr.bf16.mxu0 0
      %6822 = vmatpush1.bf16.msra.mxu0 %v6791
      %6823 = vmatprep.subr.bf16.mxu0 0
      %6824 = vmatpush2.bf16.msra.mxu0 0
      %6825 = vmatprep.subr.bf16.mxu0 0
      %6826 = vmatpush2.bf16.msra.mxu0 0
      %6827 = vmatprep.subr.bf16.mxu0 0
      %6828 = vmatpush2.bf16.msra.mxu0 0
      %6829 = vmatprep.subr.bf16.mxu0 0
      %6830 = vmatpush2.bf16.msra.mxu0 0
      %6831 = vmatprep.subr.bf16.mxu0 0
      %6832 = vmatpush2.bf16.msra.mxu0 0
      %6833 = vmatprep.subr.bf16.mxu0 0
      %6834 = vmatpush2.bf16.msra.mxu0 0
      %6835 = vmatprep.subr.bf16.mxu0 0
      %6836 = vmatpush2.bf16.msra.mxu0 0
      %6837 = vmatprep.subr.bf16.mxu0 0
      %6838 = vmatpush2.bf16.msra.mxu0 0
      %6839 = vmatprep.mubr.bf16.mxu0 0
      %6840 = vmatmul.mubr.bf16.gmra.mxu0 %v6727
      %v6841 = vpop.f32.mrf.mxu0
      %v6842 = vadd.f32 0.0, %v6841
      %v6843 = vpop.f32.mrf.mxu0
      %v6844 = vpop.f32.mrf.mxu0
      %v6845 = vadd.f32 0.0, %v6844
      %v6846 = vpop.f32.mrf.mxu0
      %6847 = vmatprep.mubr.bf16.mxu0 0
      %6848 = vmatmul.mubr.bf16.gmra.mxu0 %v6728
      %v6849 = vpop.f32.mrf.mxu0
      %v6850 = vadd.f32 0.0, %v6849
      %v6851 = vpop.f32.mrf.mxu0
      %v6852 = vpop.f32.mrf.mxu0
      %v6853 = vadd.f32 0.0, %v6852
      %v6854 = vpop.f32.mrf.mxu0
      %6855 = vmatprep.mubr.bf16.mxu0 0
      %6856 = vmatmul.mubr.bf16.gmra.mxu0 %v6729
      %v6857 = vpop.f32.mrf.mxu0
      %v6858 = vadd.f32 0.0, %v6857
      %v6859 = vpop.f32.mrf.mxu0
      %v6860 = vpop.f32.mrf.mxu0
      %v6861 = vadd.f32 0.0, %v6860
      %v6862 = vpop.f32.mrf.mxu0
      %6863 = vmatprep.mubr.bf16.mxu0 0
      %6864 = vmatmul.mubr.bf16.gmra.mxu0 %v6730
      %v6865 = vpop.f32.mrf.mxu0
      %v6866 = vadd.f32 0.0, %v6865
      %v6867 = vpop.f32.mrf.mxu0
      %v6868 = vpop.f32.mrf.mxu0
      %v6869 = vadd.f32 0.0, %v6868
      %v6870 = vpop.f32.mrf.mxu0
      %6871 = vmatprep.mubr.bf16.mxu0 0
      %6872 = vmatmul.mubr.bf16.gmra.mxu0 %v6731
      %v6873 = vpop.f32.mrf.mxu0
      %v6874 = vadd.f32 0.0, %v6873
      %v6875 = vpop.f32.mrf.mxu0
      %v6876 = vpop.f32.mrf.mxu0
      %v6877 = vadd.f32 0.0, %v6876
      %v6878 = vpop.f32.mrf.mxu0
      %6879 = vmatprep.mubr.bf16.mxu0 0
      %6880 = vmatmul.mubr.bf16.gmra.mxu0 %v6732
      %v6881 = vpop.f32.mrf.mxu0
      %v6882 = vadd.f32 0.0, %v6881
      %v6883 = vpop.f32.mrf.mxu0
      %v6884 = vpop.f32.mrf.mxu0
      %v6885 = vadd.f32 0.0, %v6884
      %v6886 = vpop.f32.mrf.mxu0
      %6887 = vmatprep.mubr.bf16.mxu0 0
      %6888 = vmatmul.mubr.bf16.gmra.mxu0 %v6733
      %v6889 = vpop.f32.mrf.mxu0
      %v6890 = vadd.f32 0.0, %v6889
      %v6891 = vpop.f32.mrf.mxu0
      %v6892 = vpop.f32.mrf.mxu0
      %v6893 = vadd.f32 0.0, %v6892
      %v6894 = vpop.f32.mrf.mxu0
      %6895 = vmatprep.mubr.bf16.mxu0 0
      %6896 = vmatmul.mubr.bf16.gmra.mxu0 %v6734
      %v6897 = vpop.f32.mrf.mxu0
      %v6898 = vadd.f32 0.0, %v6897
      %v6899 = vpop.f32.mrf.mxu0
      %v6900 = vpop.f32.mrf.mxu0
      %v6901 = vadd.f32 0.0, %v6900
      %v6902 = vpop.f32.mrf.mxu0
      %6903 = vmatprep.mubr.bf16.mxu0 0
      %6904 = vmatmul.mubr.bf16.gmra.mxu0 %v6735
      %v6905 = vpop.f32.mrf.mxu0
      %v6906 = vadd.f32 0.0, %v6905
      %v6907 = vpop.f32.mrf.mxu0
      %v6908 = vpop.f32.mrf.mxu0
      %v6909 = vadd.f32 0.0, %v6908
      %v6910 = vpop.f32.mrf.mxu0
      %6911 = vmatprep.mubr.bf16.mxu0 0
      %6912 = vmatmul.mubr.bf16.gmra.mxu0 %v6736
      %v6913 = vpop.f32.mrf.mxu0
      %v6914 = vadd.f32 0.0, %v6913
      %v6915 = vpop.f32.mrf.mxu0
      %v6916 = vpop.f32.mrf.mxu0
      %v6917 = vadd.f32 0.0, %v6916
      %v6918 = vpop.f32.mrf.mxu0
      %6919 = vmatprep.mubr.bf16.mxu0 0
      %6920 = vmatmul.mubr.bf16.gmra.mxu0 %v6737
      %v6921 = vpop.f32.mrf.mxu0
      %v6922 = vadd.f32 0.0, %v6921
      %v6923 = vpop.f32.mrf.mxu0
      %v6924 = vpop.f32.mrf.mxu0
      %v6925 = vadd.f32 0.0, %v6924
      %v6926 = vpop.f32.mrf.mxu0
      %6927 = vmatprep.mubr.bf16.mxu0 0
      %6928 = vmatmul.mubr.bf16.gmra.mxu0 %v6738
      %v6929 = vpop.f32.mrf.mxu0
      %v6930 = vadd.f32 0.0, %v6929
      %v6931 = vpop.f32.mrf.mxu0
      %v6932 = vpop.f32.mrf.mxu0
      %v6933 = vadd.f32 0.0, %v6932
      %v6934 = vpop.f32.mrf.mxu0
      %6935 = vmatprep.mubr.bf16.mxu0 0
      %6936 = vmatmul.mubr.bf16.gmra.mxu0 %v6739
      %v6937 = vpop.f32.mrf.mxu0
      %v6938 = vadd.f32 0.0, %v6937
      %v6939 = vpop.f32.mrf.mxu0
      %v6940 = vpop.f32.mrf.mxu0
      %v6941 = vadd.f32 0.0, %v6940
      %v6942 = vpop.f32.mrf.mxu0
      %6943 = vmatprep.mubr.bf16.mxu0 0
      %6944 = vmatmul.mubr.bf16.gmra.mxu0 %v6740
      %v6945 = vpop.f32.mrf.mxu0
      %v6946 = vadd.f32 0.0, %v6945
      %v6947 = vpop.f32.mrf.mxu0
      %v6948 = vpop.f32.mrf.mxu0
      %v6949 = vadd.f32 0.0, %v6948
      %v6950 = vpop.f32.mrf.mxu0
      %6951 = vmatprep.mubr.bf16.mxu0 0
      %6952 = vmatmul.mubr.bf16.gmra.mxu0 %v6741
      %v6953 = vpop.f32.mrf.mxu0
      %v6954 = vadd.f32 0.0, %v6953
      %v6955 = vpop.f32.mrf.mxu0
      %v6956 = vpop.f32.mrf.mxu0
      %v6957 = vadd.f32 0.0, %v6956
      %v6958 = vpop.f32.mrf.mxu0
      %6959 = vmatprep.mubr.bf16.mxu0 0
      %6960 = vmatmul.mubr.bf16.gmra.mxu0 %v6742
      %v6961 = vpop.f32.mrf.mxu0
      %v6962 = vadd.f32 0.0, %v6961
      %v6963 = vpop.f32.mrf.mxu0
      %v6964 = vpop.f32.mrf.mxu0
      %v6965 = vadd.f32 0.0, %v6964
      %v6966 = vpop.f32.mrf.mxu0
      %6967 = vdwg.mxu0
      %v6968 = vld [vmem:[%s8] sm:$0x1]
      %v6970 = vlaneseq
      %v6971 = vshrl.u32 %v6970, 7
      %v6972 = vsub.s32 0, %v6971
      %v6973 = vrot.slane %v6968, %v6972
      %v6975 = vmul.f32 %v6842, %v6973
      %v6976 = vmul.f32 %v6845, %v6973
      %v6977 = vmul.f32 %v6850, %v6973
      %v6978 = vmul.f32 %v6853, %v6973
      %v6979 = vmul.f32 %v6858, %v6973
      %v6980 = vmul.f32 %v6861, %v6973
      %v6981 = vmul.f32 %v6866, %v6973
      %v6982 = vmul.f32 %v6869, %v6973
      %v6983 = vmul.f32 %v6874, %v6973
      %v6984 = vmul.f32 %v6877, %v6973
      %v6985 = vmul.f32 %v6882, %v6973
      %v6986 = vmul.f32 %v6885, %v6973
      %v6987 = vmul.f32 %v6890, %v6973
      %v6988 = vmul.f32 %v6893, %v6973
      %v6989 = vmul.f32 %v6898, %v6973
      %v6990 = vmul.f32 %v6901, %v6973
      %v6991 = vmul.f32 %v6906, %v6973
      %v6992 = vmul.f32 %v6909, %v6973
      %v6993 = vmul.f32 %v6914, %v6973
      %v6994 = vmul.f32 %v6917, %v6973
      %v6995 = vmul.f32 %v6922, %v6973
      %v6996 = vmul.f32 %v6925, %v6973
      %v6997 = vmul.f32 %v6930, %v6973
      %v6998 = vmul.f32 %v6933, %v6973
      %v6999 = vmul.f32 %v6938, %v6973
      %v7000 = vmul.f32 %v6941, %v6973
      %v7001 = vmul.f32 %v6946, %v6973
      %v7002 = vmul.f32 %v6949, %v6973
      %v7003 = vmul.f32 %v6954, %v6973
      %v7004 = vmul.f32 %v6957, %v6973
      %v7005 = vmul.f32 %v6962, %v6973
      %v7006 = vmul.f32 %v6965, %v6973
      %v7007 = vld [vmem:[%s9] sm:$0x1]
      %v7009 = vlaneseq
      %v7010 = vshrl.u32 %v7009, 7
      %v7011 = vsub.s32 0, %v7010
      %v7012 = vrot.slane %v7007, %v7011
      %v7014 = vadd.f32 %v6975, %v7012
      %v7015 = vadd.f32 %v6976, %v7012
      %v7016 = vadd.f32 %v6977, %v7012
      %v7017 = vadd.f32 %v6978, %v7012
      %v7018 = vadd.f32 %v6979, %v7012
      %v7019 = vadd.f32 %v6980, %v7012
      %v7020 = vadd.f32 %v6981, %v7012
      %v7021 = vadd.f32 %v6982, %v7012
      %v7022 = vadd.f32 %v6983, %v7012
      %v7023 = vadd.f32 %v6984, %v7012
      %v7024 = vadd.f32 %v6985, %v7012
      %v7025 = vadd.f32 %v6986, %v7012
      %v7026 = vadd.f32 %v6987, %v7012
      %v7027 = vadd.f32 %v6988, %v7012
      %v7028 = vadd.f32 %v6989, %v7012
      %v7029 = vadd.f32 %v6990, %v7012
      %v7030 = vadd.f32 %v6991, %v7012
      %v7031 = vadd.f32 %v6992, %v7012
      %v7032 = vadd.f32 %v6993, %v7012
      %v7033 = vadd.f32 %v6994, %v7012
      %v7034 = vadd.f32 %v6995, %v7012
      %v7035 = vadd.f32 %v6996, %v7012
      %v7036 = vadd.f32 %v6997, %v7012
      %v7037 = vadd.f32 %v6998, %v7012
      %v7038 = vadd.f32 %v6999, %v7012
      %v7039 = vadd.f32 %v7000, %v7012
      %v7040 = vadd.f32 %v7001, %v7012
      %v7041 = vadd.f32 %v7002, %v7012
      %v7042 = vadd.f32 %v7003, %v7012
      %v7043 = vadd.f32 %v7004, %v7012
      %v7044 = vadd.f32 %v7005, %v7012
      %v7045 = vadd.f32 %v7006, %v7012
      %v7046 = vadd.f32 %v6615, %v7014
      %v7047 = vadd.f32 %v6616, %v7015
      %v7048 = vadd.f32 %v6617, %v7016
      %v7049 = vadd.f32 %v6618, %v7017
      %v7050 = vadd.f32 %v6619, %v7018
      %v7051 = vadd.f32 %v6620, %v7019
      %v7052 = vadd.f32 %v6621, %v7020
      %v7053 = vadd.f32 %v6622, %v7021
      %v7054 = vadd.f32 %v6623, %v7022
      %v7055 = vadd.f32 %v6624, %v7023
      %v7056 = vadd.f32 %v6625, %v7024
      %v7057 = vadd.f32 %v6626, %v7025
      %v7058 = vadd.f32 %v6627, %v7026
      %v7059 = vadd.f32 %v6628, %v7027
      %v7060 = vadd.f32 %v6629, %v7028
      %v7061 = vadd.f32 %v6630, %v7029
      %v7062 = vadd.f32 %v6631, %v7030
      %v7063 = vadd.f32 %v6632, %v7031
      %v7064 = vadd.f32 %v6633, %v7032
      %v7065 = vadd.f32 %v6634, %v7033
      %v7066 = vadd.f32 %v6635, %v7034
      %v7067 = vadd.f32 %v6636, %v7035
      %v7068 = vadd.f32 %v6637, %v7036
      %v7069 = vadd.f32 %v6638, %v7037
      %v7070 = vadd.f32 %v6639, %v7038
      %v7071 = vadd.f32 %v6640, %v7039
      %v7072 = vadd.f32 %v6641, %v7040
      %v7073 = vadd.f32 %v6642, %v7041
      %v7074 = vadd.f32 %v6643, %v7042
      %v7075 = vadd.f32 %v6644, %v7043
      %v7076 = vadd.f32 %v6645, %v7044
      %v7077 = vadd.f32 %v6646, %v7045
      %v7078 = vmax.f32 %v7046, 0.0
      %v7079 = vmax.f32 %v7047, 0.0
      %v7080 = vmax.f32 %v7048, 0.0
      %v7081 = vmax.f32 %v7049, 0.0
      %v7082 = vmax.f32 %v7050, 0.0
      %v7083 = vmax.f32 %v7051, 0.0
      %v7084 = vmax.f32 %v7052, 0.0
      %v7085 = vmax.f32 %v7053, 0.0
      %v7086 = vmax.f32 %v7054, 0.0
      %v7087 = vmax.f32 %v7055, 0.0
      %v7088 = vmax.f32 %v7056, 0.0
      %v7089 = vmax.f32 %v7057, 0.0
      %v7090 = vmax.f32 %v7058, 0.0
      %v7091 = vmax.f32 %v7059, 0.0
      %v7092 = vmax.f32 %v7060, 0.0
      %v7093 = vmax.f32 %v7061, 0.0
      %v7094 = vmax.f32 %v7062, 0.0
      %v7095 = vmax.f32 %v7063, 0.0
      %v7096 = vmax.f32 %v7064, 0.0
      %v7097 = vmax.f32 %v7065, 0.0
      %v7098 = vmax.f32 %v7066, 0.0
      %v7099 = vmax.f32 %v7067, 0.0
      %v7100 = vmax.f32 %v7068, 0.0
      %v7101 = vmax.f32 %v7069, 0.0
      %v7102 = vmax.f32 %v7070, 0.0
      %v7103 = vmax.f32 %v7071, 0.0
      %v7104 = vmax.f32 %v7072, 0.0
      %v7105 = vmax.f32 %v7073, 0.0
      %v7106 = vmax.f32 %v7074, 0.0
      %v7107 = vmax.f32 %v7075, 0.0
      %v7108 = vmax.f32 %v7076, 0.0
      %v7109 = vmax.f32 %v7077, 0.0
      %v7110 = vpack.c.bf16 %v7079, %v7078
      %v7111 = vpack.c.bf16 %v7081, %v7080
      %v7112 = vpack.c.bf16 %v7083, %v7082
      %v7113 = vpack.c.bf16 %v7085, %v7084
      %v7114 = vpack.c.bf16 %v7087, %v7086
      %v7115 = vpack.c.bf16 %v7089, %v7088
      %v7116 = vpack.c.bf16 %v7091, %v7090
      %v7117 = vpack.c.bf16 %v7093, %v7092
      %v7118 = vpack.c.bf16 %v7095, %v7094
      %v7119 = vpack.c.bf16 %v7097, %v7096
      %v7120 = vpack.c.bf16 %v7099, %v7098
      %v7121 = vpack.c.bf16 %v7101, %v7100
      %v7122 = vpack.c.bf16 %v7103, %v7102
      %v7123 = vpack.c.bf16 %v7105, %v7104
      %v7124 = vpack.c.bf16 %v7107, %v7106
      %v7125 = vpack.c.bf16 %v7109, %v7108
      %v7142 = vunpack.c.l.b16 %v7110
      %v7143 = vunpack.c.h.b16 %v7110
      %v7144 = vunpack.c.l.b16 %v7111
      %v7145 = vunpack.c.h.b16 %v7111
      %v7146 = vunpack.c.l.b16 %v7112
      %v7147 = vunpack.c.h.b16 %v7112
      %v7148 = vunpack.c.l.b16 %v7113
      %v7149 = vunpack.c.h.b16 %v7113
      %v7150 = vunpack.c.l.b16 %v7114
      %v7151 = vunpack.c.h.b16 %v7114
      %v7152 = vunpack.c.l.b16 %v7115
      %v7153 = vunpack.c.h.b16 %v7115
      %v7154 = vunpack.c.l.b16 %v7116
      %v7155 = vunpack.c.h.b16 %v7116
      %v7156 = vunpack.c.l.b16 %v7117
      %v7157 = vunpack.c.h.b16 %v7117
      %v7158 = vunpack.c.l.b16 %v7118
      %v7159 = vunpack.c.h.b16 %v7118
      %v7160 = vunpack.c.l.b16 %v7119
      %v7161 = vunpack.c.h.b16 %v7119
      %v7162 = vunpack.c.l.b16 %v7120
      %v7163 = vunpack.c.h.b16 %v7120
      %v7164 = vunpack.c.l.b16 %v7121
      %v7165 = vunpack.c.h.b16 %v7121
      %v7166 = vunpack.c.l.b16 %v7122
      %v7167 = vunpack.c.h.b16 %v7122
      %v7168 = vunpack.c.l.b16 %v7123
      %v7169 = vunpack.c.h.b16 %v7123
      %v7170 = vunpack.c.l.b16 %v7124
      %v7171 = vunpack.c.h.b16 %v7124
      %v7172 = vunpack.c.l.b16 %v7125
      %v7173 = vunpack.c.h.b16 %v7125
      %v7174 = vpack.c.b16 %v7142, %v7142
      %v7175 = vpack.c.b16 %v7143, %v7143
      %v7176 = vpack.c.b16 %v7144, %v7144
      %v7177 = vpack.c.b16 %v7145, %v7145
      %v7178 = vpack.c.b16 %v7146, %v7146
      %v7179 = vpack.c.b16 %v7147, %v7147
      %v7180 = vpack.c.b16 %v7148, %v7148
      %v7181 = vpack.c.b16 %v7149, %v7149
      %v7182 = vpack.c.b16 %v7150, %v7150
      %v7183 = vpack.c.b16 %v7151, %v7151
      %v7184 = vpack.c.b16 %v7152, %v7152
      %v7185 = vpack.c.b16 %v7153, %v7153
      %v7186 = vpack.c.b16 %v7154, %v7154
      %v7187 = vpack.c.b16 %v7155, %v7155
      %v7188 = vpack.c.b16 %v7156, %v7156
      %v7189 = vpack.c.b16 %v7157, %v7157
      %v7190 = vpack.c.b16 %v7158, %v7158
      %v7191 = vpack.c.b16 %v7159, %v7159
      %v7192 = vpack.c.b16 %v7160, %v7160
      %v7193 = vpack.c.b16 %v7161, %v7161
      %v7194 = vpack.c.b16 %v7162, %v7162
      %v7195 = vpack.c.b16 %v7163, %v7163
      %v7196 = vpack.c.b16 %v7164, %v7164
      %v7197 = vpack.c.b16 %v7165, %v7165
      %v7198 = vpack.c.b16 %v7166, %v7166
      %v7199 = vpack.c.b16 %v7167, %v7167
      %v7200 = vpack.c.b16 %v7168, %v7168
      %v7201 = vpack.c.b16 %v7169, %v7169
      %v7202 = vpack.c.b16 %v7170, %v7170
      %v7203 = vpack.c.b16 %v7171, %v7171
      %v7204 = vpack.c.b16 %v7172, %v7172
      %v7205 = vpack.c.b16 %v7173, %v7173
      %7238 = vst [vmem:[%s359] sm:$0xf] %v7174
      %7239 = vst [vmem:[%s359 + $0x4] sm:$0xf] %v7175
      %7240 = vst [vmem:[%s359 + $0x8] sm:$0xf] %v7176
      %7241 = vst [vmem:[%s359 + $0xc] sm:$0xf] %v7177
      %7242 = vst [vmem:[%s359 + $0x10] sm:$0xf] %v7178
      %7243 = vst [vmem:[%s359 + $0x14] sm:$0xf] %v7179
      %7244 = vst [vmem:[%s359 + $0x18] sm:$0xf] %v7180
      %7245 = vst [vmem:[%s359 + $0x1c] sm:$0xf] %v7181
      %7246 = vst [vmem:[%s359 + $0x20] sm:$0xf] %v7182
      %7247 = vst [vmem:[%s359 + $0x24] sm:$0xf] %v7183
      %7248 = vst [vmem:[%s359 + $0x28] sm:$0xf] %v7184
      %7249 = vst [vmem:[%s359 + $0x2c] sm:$0xf] %v7185
      %7250 = vst [vmem:[%s359 + $0x30] sm:$0xf] %v7186
      %7251 = vst [vmem:[%s359 + $0x34] sm:$0xf] %v7187
      %7252 = vst [vmem:[%s359 + $0x38] sm:$0xf] %v7188
      %7253 = vst [vmem:[%s359 + $0x3c] sm:$0xf] %v7189
      %7254 = vst [vmem:[%s359 + $0x40] sm:$0xf] %v7190
      %7255 = vst [vmem:[%s359 + $0x44] sm:$0xf] %v7191
      %7256 = vst [vmem:[%s359 + $0x48] sm:$0xf] %v7192
      %7257 = vst [vmem:[%s359 + $0x4c] sm:$0xf] %v7193
      %7258 = vst [vmem:[%s359 + $0x50] sm:$0xf] %v7194
      %7259 = vst [vmem:[%s359 + $0x54] sm:$0xf] %v7195
      %7260 = vst [vmem:[%s359 + $0x58] sm:$0xf] %v7196
      %7261 = vst [vmem:[%s359 + $0x5c] sm:$0xf] %v7197
      %7262 = vst [vmem:[%s359 + $0x60] sm:$0xf] %v7198
      %7263 = vst [vmem:[%s359 + $0x64] sm:$0xf] %v7199
      %7264 = vst [vmem:[%s359 + $0x68] sm:$0xf] %v7200
      %7265 = vst [vmem:[%s359 + $0x6c] sm:$0xf] %v7201
      %7266 = vst [vmem:[%s359 + $0x70] sm:$0xf] %v7202
      %7267 = vst [vmem:[%s359 + $0x74] sm:$0xf] %v7203
      %7268 = vst [vmem:[%s359 + $0x78] sm:$0xf] %v7204
      %7269 = vst [vmem:[%s359 + $0x7c] sm:$0xf] %v7205
      %p7270 = scmp.lt.s32.totalorder %s21, 1
      %s7271 = scalar_select %p7270, %s21, 1
      %s7272 = smul.addr %s7271, 32
      %s7273 = smul.addr %s7272, 4
      %s7274 = scalar_lea.vmem %s10, %s7273
      // Predicated region
      $region61: #{basic_block_forward.1} parent=59 // pred_check
        %p7275 = pneg %p254
      $region62: #{basic_block_forward.1} parent=59 // pred_check_branch
        %7277 = sbr.rel (%p7275) target = $region64
      $region63: #{basic_block_forward.1} parent=59 // pred_region
        _
      $region64: #{basic_block_forward.1} parent=59 // pred_fallthru
        _
    $region60: #{basic_block_forward.1} parent=5 // pred_fallthru
      _
    %p7278 = scmp.le.s32.totalorder 2, %s16
    // Predicated region
    $region65: #{basic_block_forward.1} parent=5 // pred_check
      %p7279 = pneg %p7278
    $region66: #{basic_block_forward.1} parent=5 // pred_check_branch
      %7281 = sbr.rel (%p7279) target = $region68
    $region67: #{basic_block_forward.1} parent=5 // pred_region
      %s7282 = ssub.s32 %s16, 2
      // Predicated region
      $region69: #{basic_block_forward.1} parent=67 // pred_check
        %p7283 = pneg %p260
      $region70: #{basic_block_forward.1} parent=67 // pred_check_branch
        %7285 = sbr.rel (%p7283) target = $region72
      $region71: #{basic_block_forward.1} parent=67 // pred_region
        %p7286 = scmp.lt.s32.totalorder %s22, 1
        %s7287 = scalar_select %p7286, %s22, 1
        %s7288 = smul.addr %s7287, 32
        %s7289 = smul.addr %s7288, 4
        %s7290 = scalar_lea.vmem %s10, %s7289
      $region72: #{basic_block_forward.1} parent=67 // pred_fallthru
        _
    $region68: #{basic_block_forward.1} parent=5 // pred_fallthru
      _
  $region6: #{basic_block_forward.1} parent=0 // loop_footer
    %s20 = sadd.s32 1, %s16
  $region7: #{basic_block_forward.1} parent=0 // loop_footer_branch
    %15 = sbr.rel target = $region3
  $region8: #{basic_block_forward.1} parent=0 // loop_exit
    _

</llo_original>
